<compile_context>
chip_gen: v7x
topology: tpu7x:2x2x1
jax: 0.10.0
libtpu: 0.0.40
codegen_flags: <defaults>
</compile_context>

<pallas_src>
import numpy as np
import jax
import jax.numpy as jnp
from jax import lax
from jax.experimental import pallas as pl
from jax.experimental.pallas import tpu as pltpu


# ---------------------------------------------------------------------------
# Constants from the PyTorch module (view classifier weights).
# ---------------------------------------------------------------------------
_VIEW_W = np.array(
    [[-0.04579317872402952, -0.07575516143899245, -0.061679127638288714,
      0.02846023147369374, 0.9765938788126243, 1.310693443330605],
     [-1.7524712268232336, 1.6816010000146304, -0.10457518199789638,
      0.7600968544610555, 0.3062302844162186, 0.2499470378689073],
     [1.5898357864427095, -1.9611154042037333, 0.22473070108297732,
      -0.9235759306577322, -1.417853830070638, -1.459610511848043]],
    dtype=np.float32)
_VIEW_B = np.array([0.0009407975978420954, 0.3678460758384997,
                    -1.1950944844551188], dtype=np.float32)

_LANE = 128
_BLOCK_BUDGET_BYTES = 2 * 1024 * 1024       # per array, per pipeline buffer
_VMEM_LIMIT_BYTES = 32 * 1024 * 1024        # <= v7x 64 MiB physical, >= defaults


# ---------------------------------------------------------------------------
# Kernel: one (1, TD, H, TW) block of x and m per grid step.
#   depth flip : input block index already mirrored by the index_map; the TD
#                slices inside the block are reversed by an unrolled copy loop.
#   W flip     : input W-tile index already mirrored by the index_map; lanes
#                inside the 128-wide tile are reversed by one fused MXU matmul
#                (x and m concatenated on the sublane axis) with the resident
#                anti-diagonal permutation.
#   neither    : plain VMEM copy.
# ---------------------------------------------------------------------------
def _joint_flip_kernel(dflip_ref, wflip_ref, perm_ref, x_ref, m_ref,
                       xo_ref, mo_ref):
    b = pl.program_id(0)
    do_d = dflip_ref[b] != 0
    do_w = wflip_ref[b] != 0

    _, td, h, tw = x_ref.shape
    rows = td * h
    # 0/1 permutation matmul is exact in bf16; for f32 force the fp32 MXU path.
    prec = (lax.Precision.HIGHEST if perm_ref.dtype == jnp.float32
            else lax.Precision.DEFAULT)

    @pl.when(do_w)
    def _():
        x = x_ref[0].reshape(rows, tw).astype(perm_ref.dtype)
        m = m_ref[0].reshape(rows, tw).astype(perm_ref.dtype)
        xm = jnp.concatenate([x, m], axis=0)                 # (2*TD*H, TW)
        r = jnp.dot(xm, perm_ref[...], precision=prec,
                    preferred_element_type=jnp.float32)
        xo_ref[0] = r[:rows].reshape(td, h, tw).astype(xo_ref.dtype)
        mo_ref[0] = r[rows:].reshape(td, h, tw).astype(mo_ref.dtype)

    @pl.when(do_d)
    def _():
        # Reverse the TD depth slices inside the block (block order already
        # reversed by the input index_map) -> full flip along D.
        for i in range(td):
            xo_ref[0, i] = x_ref[0, td - 1 - i]
            mo_ref[0, i] = m_ref[0, td - 1 - i]

    @pl.when(jnp.logical_not(do_d | do_w))
    def _():
        xo_ref[...] = x_ref[...]
        mo_ref[...] = m_ref[...]


def _choose_block_depth(depth, per_slice_bytes, budget=_BLOCK_BUDGET_BYTES):
    best = 1
    for td in range(1, depth + 1):
        if depth % td == 0 and td * per_slice_bytes <= budget:
            best = td
    return best


def _conditional_flip_volume(x, m, depth_flip, w_flip, *, block_depth=None):
    """Per-sample flip of x/m ([B, D, H, W]) along D or W, per the flags."""
    B, D, H, W = x.shape
    TW = _LANE if W % _LANE == 0 else W       # 128-lane tiles (or full sub-128 W)
    WJ = W // TW
    itemsize = max(np.dtype(x.dtype).itemsize, np.dtype(m.dtype).itemsize)
    if block_depth is None:
        block_depth = _choose_block_depth(D, H * TW * itemsize)
    assert D % block_depth == 0
    TD = block_depth
    DJ = D // TD

    dflip_i = depth_flip.astype(jnp.int32)
    wflip_i = w_flip.astype(jnp.int32)

    # Anti-diagonal lane-reversal permutation — DMA'd once, stays resident.
    p_dtype = x.dtype if jnp.issubdtype(x.dtype, jnp.floating) else jnp.float32
    perm_np = np.zeros((TW, TW), dtype=np.dtype(p_dtype))
    perm_np[np.arange(TW), TW - 1 - np.arange(TW)] = 1
    perm = jnp.asarray(perm_np)

    def in_index_map(b, j, k, dflip_ref, wflip_ref):
        # Depth flip -> mirrored depth-block; W flip -> mirrored 128-lane tile.
        src_j = jnp.where(dflip_ref[b] != 0, DJ - 1 - j, j)
        src_k = jnp.where(wflip_ref[b] != 0, WJ - 1 - k, k)
        return (b, src_j, 0, src_k)

    def out_index_map(b, j, k, dflip_ref, wflip_ref):
        return (b, j, 0, k)

    def perm_index_map(b, j, k, dflip_ref, wflip_ref):
        return (0, 0)

    vol_in_spec = pl.BlockSpec((1, TD, H, TW), in_index_map)
    vol_out_spec = pl.BlockSpec((1, TD, H, TW), out_index_map)
    perm_spec = pl.BlockSpec((TW, TW), perm_index_map)

    bytes_x = x.size * np.dtype(x.dtype).itemsize
    bytes_m = m.size * np.dtype(m.dtype).itemsize
    cost = pl.CostEstimate(
        flops=4 * B * D * H * W * TW,          # upper bound: every block W-flipped
        transcendentals=0,
        bytes_accessed=2 * (bytes_x + bytes_m))

    xo, mo = pl.pallas_call(
        _joint_flip_kernel,
        out_shape=(jax.ShapeDtypeStruct(x.shape, x.dtype),
                   jax.ShapeDtypeStruct(m.shape, m.dtype)),
        grid_spec=pltpu.PrefetchScalarGridSpec(
            num_scalar_prefetch=2,
            grid=(B, DJ, WJ),
            in_specs=[perm_spec, vol_in_spec, vol_in_spec],
            out_specs=(vol_out_spec, vol_out_spec),
        ),
        compiler_params=pltpu.CompilerParams(
            dimension_semantics=("parallel", "parallel", "parallel"),
            vmem_limit_bytes=_VMEM_LIMIT_BYTES),
        cost_estimate=cost,
    )(dflip_i, wflip_i, perm, x, m)
    return xo, mo


# ---------------------------------------------------------------------------
# Host-side glue (tiny per-sample math, identical to the PyTorch module).
# ---------------------------------------------------------------------------
def _infer_view(affine):
    affine = affine.astype(jnp.float32)
    row_vec = affine[:, :3, 0]
    col_vec = affine[:, :3, 1]
    eps = jnp.float32(1e-12)   # guard against degenerate affines producing NaNs
    row_n = jnp.maximum(jnp.linalg.norm(row_vec, axis=1, keepdims=True), eps)
    col_n = jnp.maximum(jnp.linalg.norm(col_vec, axis=1, keepdims=True), eps)
    orient = jnp.concatenate([row_vec / row_n, col_vec / col_n], axis=1)
    scores = orient @ jnp.asarray(_VIEW_W).T + jnp.asarray(_VIEW_B)
    return jnp.argmax(scores, axis=1)


def _compute_flip_flags(affine1, key, p):
    B = affine1.shape[0]
    is_sagittal = _infer_view(affine1) == 1
    do_flip = jax.random.uniform(key, (B,)) < p
    not_sag = jnp.logical_not(is_sagittal)
    depth1 = do_flip & is_sagittal          # view 1: depth flip when sagittal
    wflip1 = do_flip & not_sag              # view 1: horizontal flip otherwise
    depth2 = do_flip & not_sag              # view 2: the opposite of view 1
    wflip2 = do_flip & is_sagittal
    return depth1, wflip1, depth2, wflip2


def _flip_affine(affine, depth_flip, w_flip, D, W):
    # horizontal flip: T[0,0]=-1, T[0,3]=W-1 ; depth flip: T[2,2]=-1, T[2,3]=D-1
    t_h = np.eye(4, dtype=np.float32); t_h[0, 0] = -1.0; t_h[0, 3] = W - 1
    t_d = np.eye(4, dtype=np.float32); t_d[2, 2] = -1.0; t_d[2, 3] = D - 1
    a_h = affine @ jnp.asarray(t_h)
    a_d = affine @ jnp.asarray(t_d)
    df = depth_flip[:, None, None]
    wf = w_flip[:, None, None]
    return jnp.where(df, a_d, jnp.where(wf, a_h, affine))


def random_joint_flip_forward(x1, m1, affine1, x2, m2, affine2, *, key, p=0.5):
    """Functional equivalent of RandomJointFlip.forward."""
    depth1, wflip1, depth2, wflip2 = _compute_flip_flags(affine1, key, p)

    x1o, m1o = _conditional_flip_volume(x1, m1, depth1, wflip1)
    x2o, m2o = _conditional_flip_volume(x2, m2, depth2, wflip2)

    affine1o = _flip_affine(affine1, depth1, wflip1, x1.shape[1], x1.shape[3])
    affine2o = _flip_affine(affine2, depth2, wflip2, x2.shape[1], x2.shape[3])
    return x1o, m1o, affine1o, x2o, m2o, affine2o


# ---------------------------------------------------------------------------
if __name__ == "__main__":
    key = jax.random.PRNGKey(0)
    k1, k2, k3, k4, kflip = jax.random.split(key, 5)

    B = 2
    D1, H1, W1 = 8, 16, 256      # view-1 volumes (two 128-lane W tiles)
    D2, H2, W2 = 4, 16, 128      # view-2 volumes (one 128-lane W tile)
    p = 1.0                      # deterministic: every sample flips

    x1 = jax.random.normal(k1, (B, D1, H1, W1), jnp.float32)
    m1 = (jax.random.uniform(k2, (B, D1, H1, W1)) > 0.5).astype(jnp.float32)
    x2 = jax.random.normal(k3, (B, D2, H2, W2), jnp.float32)
    m2 = (jax.random.uniform(k4, (B, D2, H2, W2)) > 0.5).astype(jnp.float32)

    # sample 0: axial-like orientation (view != 1); sample 1: sagittal (view == 1)
    a_ax = np.eye(4, dtype=np.float32)
    a_sag = np.eye(4, dtype=np.float32)
    a_sag[:3, 0] = [0.0, 1.0, 0.0]
    a_sag[:3, 1] = [0.0, 0.0, 1.0]
    a_sag[:3, 2] = [1.0, 0.0, 0.0]
    affine1 = jnp.asarray(np.stack([a_ax, a_sag]))
    affine2 = jnp.asarray(np.stack([a_sag, a_ax]))

    out = random_joint_flip_forward(x1, m1, affine1, x2, m2, affine2,
                                    key=kflip, p=p)
    x1o, m1o, a1o, x2o, m2o, a2o = jax.block_until_ready(out)

    # -------- pure-JAX reference for the Pallas data path --------
    depth1, wflip1, depth2, wflip2 = _compute_flip_flags(affine1, kflip, p)

    def ref_flip(x, m, df, wf):
        df4 = df[:, None, None, None]
        wf4 = wf[:, None, None, None]
        sel = lambda a: jnp.where(df4, jnp.flip(a, axis=1),
                                  jnp.where(wf4, jnp.flip(a, axis=3), a))
        return sel(x), sel(m)

    x1r, m1r = ref_flip(x1, m1, depth1, wflip1)
    x2r, m2r = ref_flip(x2, m2, depth2, wflip2)

    np.testing.assert_allclose(np.asarray(x1o), np.asarray(x1r), atol=1e-4)
    np.testing.assert_allclose(np.asarray(m1o), np.asarray(m1r), atol=1e-6)
    np.testing.assert_allclose(np.asarray(x2o), np.asarray(x2r), atol=1e-4)
    np.testing.assert_allclose(np.asarray(m2o), np.asarray(m2r), atol=1e-6)

    # -------- affine update reference (explicit per-sample numpy) --------
    def ref_affines(affine, df, wf, D, W):
        outv = np.array(affine)
        for i in range(B):
            T = np.eye(4, dtype=np.float32)
            if bool(df[i]):
                T[2, 2] = -1.0; T[2, 3] = D - 1
            elif bool(wf[i]):
                T[0, 0] = -1.0; T[0, 3] = W - 1
            outv[i] = outv[i] @ T
        return outv

    np.testing.assert_allclose(np.asarray(a1o),
                               ref_affines(affine1, depth1, wflip1, D1, W1),
                               atol=1e-5)
    np.testing.assert_allclose(np.asarray(a2o),
                               ref_affines(affine2, depth2, wflip2, D2, W2),
                               atol=1e-5)

    # -------- extra coverage: multi-block depth axis (DJ > 1) --------
    dflag = jnp.array([True, False])
    wflag = jnp.array([False, True])
    xe, me = _conditional_flip_volume(x2, m2, dflag, wflag, block_depth=2)
    xe, me = jax.block_until_ready((xe, me))
    xer, mer = ref_flip(x2, m2, dflag, wflag)
    np.testing.assert_allclose(np.asarray(xe), np.asarray(xer), atol=1e-4)
    np.testing.assert_allclose(np.asarray(me), np.asarray(mer), atol=1e-6)

    assert x1o.shape == x1.shape and x2o.shape == x2.shape
    assert a1o.shape == (B, 4, 4) and a2o.shape == (B, 4, 4)
    assert bool(jnp.all(jnp.isfinite(x1o))) and bool(jnp.all(jnp.isfinite(x2o)))
    print("KERNEL_OK")
</pallas_src>

<mosaic_0001>
module attributes {stable_mosaic.version = 11 : i64} {
  func.func @_joint_flip_kernel(%arg0: i32, %arg1: i32, %arg2: i32, %arg3: memref<2xi32, #tpu.memory_space<smem>>, %arg4: memref<2xi32, #tpu.memory_space<smem>>, %arg5: memref<128x128xf32, #tpu.memory_space<vmem>>, %arg6: memref<1x8x16x128xf32, #tpu.memory_space<vmem>>, %arg7: memref<1x8x16x128xf32, #tpu.memory_space<vmem>>, %arg8: memref<1x8x16x128xf32, #tpu.memory_space<vmem>>, %arg9: memref<1x8x16x128xf32, #tpu.memory_space<vmem>>) attributes {dimension_semantics = [#tpu.dimension_semantics<parallel>, #tpu.dimension_semantics<parallel>, #tpu.dimension_semantics<parallel>], iteration_bounds = array<i64: 2, 1, 2>, scalar_prefetch = 2 : i64, scratch_operands = 0 : i64, tpu.core_type = #tpu.core_type<tc>, window_params = [{pipeline_mode = #tpu.pipeline_mode<synchronous>, transform_indices = @transform_0, window_bounds = array<i64: 128, 128>}, {transform_indices = @transform_1, window_bounds = array<i64: 1, 8, 16, 128>}, {transform_indices = @transform_2, window_bounds = array<i64: 1, 8, 16, 128>}, {transform_indices = @transform_3, window_bounds = array<i64: 1, 8, 16, 128>}, {transform_indices = @transform_4, window_bounds = array<i64: 1, 8, 16, 128>}]} {
    %0 = arith.index_cast %arg0 : i32 to index
    %1 = memref.load %arg3[%0] : memref<2xi32, #tpu.memory_space<smem>>
    %c0_i32 = arith.constant 0 : i32
    %2 = arith.cmpi ne, %1, %c0_i32 : i32
    %3 = arith.index_cast %arg0 : i32 to index
    %4 = memref.load %arg4[%3] : memref<2xi32, #tpu.memory_space<smem>>
    %c0_i32_0 = arith.constant 0 : i32
    %5 = arith.cmpi ne, %4, %c0_i32_0 : i32
    %6 = arith.extui %5 : i1 to i32
    %c0_i32_1 = arith.constant 0 : i32
    %7 = arith.cmpi ne, %6, %c0_i32_1 : i32
    scf.if %7 {
      %c0 = arith.constant 0 : index
      %c0_4 = arith.constant 0 : index
      %c0_5 = arith.constant 0 : index
      %c0_6 = arith.constant 0 : index
      %14 = vector.load %arg6[%c0, %c0_4, %c0_5, %c0_6] : memref<1x8x16x128xf32, #tpu.memory_space<vmem>>, vector<1x8x16x128xf32>
      %15 = vector.shape_cast %14 : vector<1x8x16x128xf32> to vector<8x16x128xf32>
      %16 = vector.shape_cast %15 : vector<8x16x128xf32> to vector<128x128xf32>
      %c0_7 = arith.constant 0 : index
      %c0_8 = arith.constant 0 : index
      %c0_9 = arith.constant 0 : index
      %c0_10 = arith.constant 0 : index
      %17 = vector.load %arg7[%c0_7, %c0_8, %c0_9, %c0_10] : memref<1x8x16x128xf32, #tpu.memory_space<vmem>>, vector<1x8x16x128xf32>
      %18 = vector.shape_cast %17 : vector<1x8x16x128xf32> to vector<8x16x128xf32>
      %19 = vector.shape_cast %18 : vector<8x16x128xf32> to vector<128x128xf32>
      %20 = tpu.concatenate %16, %19 in 0 : vector<128x128xf32>, vector<128x128xf32> -> vector<256x128xf32>
      %c0_11 = arith.constant 0 : index
      %c0_12 = arith.constant 0 : index
      %21 = vector.load %arg5[%c0_11, %c0_12] : memref<128x128xf32, #tpu.memory_space<vmem>>, vector<128x128xf32>
      %cst = arith.constant dense<0.000000e+00> : vector<256x128xf32>
      %22 = tpu.matmul %20, %21, %cst {dimension_numbers = #tpu.dot_dimension_numbers<[1], [0], [0], [1], [0, 0, 1, 1], [], []>, precision = #tpu.contract_precision<fp32>} : vector<256x128xf32>, vector<128x128xf32>, vector<256x128xf32> -> vector<256x128xf32>
      %23 = vector.extract_strided_slice %22 {offsets = [0, 0], sizes = [128, 128], strides = [1, 1]} : vector<256x128xf32> to vector<128x128xf32>
      %24 = vector.shape_cast %23 : vector<128x128xf32> to vector<8x16x128xf32>
      %c0_13 = arith.constant 0 : index
      %c0_14 = arith.constant 0 : index
      %c0_15 = arith.constant 0 : index
      %c0_16 = arith.constant 0 : index
      %25 = vector.load %arg8[%c0_13, %c0_14, %c0_15, %c0_16] : memref<1x8x16x128xf32, #tpu.memory_space<vmem>>, vector<1x8x16x128xf32>
      %26 = vector.shape_cast %25 : vector<1x8x16x128xf32> to vector<8x16x128xf32>
      %27 = vector.shape_cast %24 : vector<8x16x128xf32> to vector<1x8x16x128xf32>
      tpu.vector_store %arg8[%c0_13, %c0_14, %c0_15, %c0_16], %27 {strides = array<i32>} : memref<1x8x16x128xf32, #tpu.memory_space<vmem>>, vector<1x8x16x128xf32>,
      %28 = vector.extract_strided_slice %22 {offsets = [128, 0], sizes = [128, 128], strides = [1, 1]} : vector<256x128xf32> to vector<128x128xf32>
      %29 = vector.shape_cast %28 : vector<128x128xf32> to vector<8x16x128xf32>
      %c0_17 = arith.constant 0 : index
      %c0_18 = arith.constant 0 : index
      %c0_19 = arith.constant 0 : index
      %c0_20 = arith.constant 0 : index
      %30 = vector.load %arg9[%c0_17, %c0_18, %c0_19, %c0_20] : memref<1x8x16x128xf32, #tpu.memory_space<vmem>>, vector<1x8x16x128xf32>
      %31 = vector.shape_cast %30 : vector<1x8x16x128xf32> to vector<8x16x128xf32>
      %32 = vector.shape_cast %29 : vector<8x16x128xf32> to vector<1x8x16x128xf32>
      tpu.vector_store %arg9[%c0_17, %c0_18, %c0_19, %c0_20], %32 {strides = array<i32>} : memref<1x8x16x128xf32, #tpu.memory_space<vmem>>, vector<1x8x16x128xf32>,
    } else {
    }
    %8 = arith.extui %2 : i1 to i32
    %c0_i32_2 = arith.constant 0 : i32
    %9 = arith.cmpi ne, %8, %c0_i32_2 : i32
    scf.if %9 {
      %c0 = arith.constant 0 : index
      %c7 = arith.constant 7 : index
      %c0_4 = arith.constant 0 : index
      %c0_5 = arith.constant 0 : index
      %14 = vector.load %arg6[%c0, %c7, %c0_4, %c0_5] : memref<1x8x16x128xf32, #tpu.memory_space<vmem>>, vector<1x1x16x128xf32>
      %15 = vector.shape_cast %14 : vector<1x1x16x128xf32> to vector<16x128xf32>
      %c0_6 = arith.constant 0 : index
      %c0_7 = arith.constant 0 : index
      %c0_8 = arith.constant 0 : index
      %c0_9 = arith.constant 0 : index
      %16 = vector.load %arg8[%c0_6, %c0_7, %c0_8, %c0_9] : memref<1x8x16x128xf32, #tpu.memory_space<vmem>>, vector<1x1x16x128xf32>
      %17 = vector.shape_cast %16 : vector<1x1x16x128xf32> to vector<16x128xf32>
      %18 = vector.shape_cast %15 : vector<16x128xf32> to vector<1x1x16x128xf32>
      tpu.vector_store %arg8[%c0_6, %c0_7, %c0_8, %c0_9], %18 {strides = array<i32>} : memref<1x8x16x128xf32, #tpu.memory_space<vmem>>, vector<1x1x16x128xf32>,
      %c0_10 = arith.constant 0 : index
      %c7_11 = arith.constant 7 : index
      %c0_12 = arith.constant 0 : index
      %c0_13 = arith.constant 0 : index
      %19 = vector.load %arg7[%c0_10, %c7_11, %c0_12, %c0_13] : memref<1x8x16x128xf32, #tpu.memory_space<vmem>>, vector<1x1x16x128xf32>
      %20 = vector.shape_cast %19 : vector<1x1x16x128xf32> to vector<16x128xf32>
      %c0_14 = arith.constant 0 : index
      %c0_15 = arith.constant 0 : index
      %c0_16 = arith.constant 0 : index
      %c0_17 = arith.constant 0 : index
      %21 = vector.load %arg9[%c0_14, %c0_15, %c0_16, %c0_17] : memref<1x8x16x128xf32, #tpu.memory_space<vmem>>, vector<1x1x16x128xf32>
      %22 = vector.shape_cast %21 : vector<1x1x16x128xf32> to vector<16x128xf32>
      %23 = vector.shape_cast %20 : vector<16x128xf32> to vector<1x1x16x128xf32>
      tpu.vector_store %arg9[%c0_14, %c0_15, %c0_16, %c0_17], %23 {strides = array<i32>} : memref<1x8x16x128xf32, #tpu.memory_space<vmem>>, vector<1x1x16x128xf32>,
      %c0_18 = arith.constant 0 : index
      %c6 = arith.constant 6 : index
      %c0_19 = arith.constant 0 : index
      %c0_20 = arith.constant 0 : index
      %24 = vector.load %arg6[%c0_18, %c6, %c0_19, %c0_20] : memref<1x8x16x128xf32, #tpu.memory_space<vmem>>, vector<1x1x16x128xf32>
      %25 = vector.shape_cast %24 : vector<1x1x16x128xf32> to vector<16x128xf32>
      %c0_21 = arith.constant 0 : index
      %c1 = arith.constant 1 : index
      %c0_22 = arith.constant 0 : index
      %c0_23 = arith.constant 0 : index
      %26 = vector.load %arg8[%c0_21, %c1, %c0_22, %c0_23] : memref<1x8x16x128xf32, #tpu.memory_space<vmem>>, vector<1x1x16x128xf32>
      %27 = vector.shape_cast %26 : vector<1x1x16x128xf32> to vector<16x128xf32>
      %28 = vector.shape_cast %25 : vector<16x128xf32> to vector<1x1x16x128xf32>
      tpu.vector_store %arg8[%c0_21, %c1, %c0_22, %c0_23], %28 {strides = array<i32>} : memref<1x8x16x128xf32, #tpu.memory_space<vmem>>, vector<1x1x16x128xf32>,
      %c0_24 = arith.constant 0 : index
      %c6_25 = arith.constant 6 : index
      %c0_26 = arith.constant 0 : index
      %c0_27 = arith.constant 0 : index
      %29 = vector.load %arg7[%c0_24, %c6_25, %c0_26, %c0_27] : memref<1x8x16x128xf32, #tpu.memory_space<vmem>>, vector<1x1x16x128xf32>
      %30 = vector.shape_cast %29 : vector<1x1x16x128xf32> to vector<16x128xf32>
      %c0_28 = arith.constant 0 : index
      %c1_29 = arith.constant 1 : index
      %c0_30 = arith.constant 0 : index
      %c0_31 = arith.constant 0 : index
      %31 = vector.load %arg9[%c0_28, %c1_29, %c0_30, %c0_31] : memref<1x8x16x128xf32, #tpu.memory_space<vmem>>, vector<1x1x16x128xf32>
      %32 = vector.shape_cast %31 : vector<1x1x16x128xf32> to vector<16x128xf32>
      %33 = vector.shape_cast %30 : vector<16x128xf32> to vector<1x1x16x128xf32>
      tpu.vector_store %arg9[%c0_28, %c1_29, %c0_30, %c0_31], %33 {strides = array<i32>} : memref<1x8x16x128xf32, #tpu.memory_space<vmem>>, vector<1x1x16x128xf32>,
      %c0_32 = arith.constant 0 : index
      %c5 = arith.constant 5 : index
      %c0_33 = arith.constant 0 : index
      %c0_34 = arith.constant 0 : index
      %34 = vector.load %arg6[%c0_32, %c5, %c0_33, %c0_34] : memref<1x8x16x128xf32, #tpu.memory_space<vmem>>, vector<1x1x16x128xf32>
      %35 = vector.shape_cast %34 : vector<1x1x16x128xf32> to vector<16x128xf32>
      %c0_35 = arith.constant 0 : index
      %c2 = arith.constant 2 : index
      %c0_36 = arith.constant 0 : index
      %c0_37 = arith.constant 0 : index
      %36 = vector.load %arg8[%c0_35, %c2, %c0_36, %c0_37] : memref<1x8x16x128xf32, #tpu.memory_space<vmem>>, vector<1x1x16x128xf32>
      %37 = vector.shape_cast %36 : vector<1x1x16x128xf32> to vector<16x128xf32>
      %38 = vector.shape_cast %35 : vector<16x128xf32> to vector<1x1x16x128xf32>
      tpu.vector_store %arg8[%c0_35, %c2, %c0_36, %c0_37], %38 {strides = array<i32>} : memref<1x8x16x128xf32, #tpu.memory_space<vmem>>, vector<1x1x16x128xf32>,
      %c0_38 = arith.constant 0 : index
      %c5_39 = arith.constant 5 : index
      %c0_40 = arith.constant 0 : index
      %c0_41 = arith.constant 0 : index
      %39 = vector.load %arg7[%c0_38, %c5_39, %c0_40, %c0_41] : memref<1x8x16x128xf32, #tpu.memory_space<vmem>>, vector<1x1x16x128xf32>
      %40 = vector.shape_cast %39 : vector<1x1x16x128xf32> to vector<16x128xf32>
      %c0_42 = arith.constant 0 : index
      %c2_43 = arith.constant 2 : index
      %c0_44 = arith.constant 0 : index
      %c0_45 = arith.constant 0 : index
      %41 = vector.load %arg9[%c0_42, %c2_43, %c0_44, %c0_45] : memref<1x8x16x128xf32, #tpu.memory_space<vmem>>, vector<1x1x16x128xf32>
      %42 = vector.shape_cast %41 : vector<1x1x16x128xf32> to vector<16x128xf32>
      %43 = vector.shape_cast %40 : vector<16x128xf32> to vector<1x1x16x128xf32>
      tpu.vector_store %arg9[%c0_42, %c2_43, %c0_44, %c0_45], %43 {strides = array<i32>} : memref<1x8x16x128xf32, #tpu.memory_space<vmem>>, vector<1x1x16x128xf32>,
      %c0_46 = arith.constant 0 : index
      %c4 = arith.constant 4 : index
      %c0_47 = arith.constant 0 : index
      %c0_48 = arith.constant 0 : index
      %44 = vector.load %arg6[%c0_46, %c4, %c0_47, %c0_48] : memref<1x8x16x128xf32, #tpu.memory_space<vmem>>, vector<1x1x16x128xf32>
      %45 = vector.shape_cast %44 : vector<1x1x16x128xf32> to vector<16x128xf32>
      %c0_49 = arith.constant 0 : index
      %c3 = arith.constant 3 : index
      %c0_50 = arith.constant 0 : index
      %c0_51 = arith.constant 0 : index
      %46 = vector.load %arg8[%c0_49, %c3, %c0_50, %c0_51] : memref<1x8x16x128xf32, #tpu.memory_space<vmem>>, vector<1x1x16x128xf32>
      %47 = vector.shape_cast %46 : vector<1x1x16x128xf32> to vector<16x128xf32>
      %48 = vector.shape_cast %45 : vector<16x128xf32> to vector<1x1x16x128xf32>
      tpu.vector_store %arg8[%c0_49, %c3, %c0_50, %c0_51], %48 {strides = array<i32>} : memref<1x8x16x128xf32, #tpu.memory_space<vmem>>, vector<1x1x16x128xf32>,
      %c0_52 = arith.constant 0 : index
      %c4_53 = arith.constant 4 : index
      %c0_54 = arith.constant 0 : index
      %c0_55 = arith.constant 0 : index
      %49 = vector.load %arg7[%c0_52, %c4_53, %c0_54, %c0_55] : memref<1x8x16x128xf32, #tpu.memory_space<vmem>>, vector<1x1x16x128xf32>
      %50 = vector.shape_cast %49 : vector<1x1x16x128xf32> to vector<16x128xf32>
      %c0_56 = arith.constant 0 : index
      %c3_57 = arith.constant 3 : index
      %c0_58 = arith.constant 0 : index
      %c0_59 = arith.constant 0 : index
      %51 = vector.load %arg9[%c0_56, %c3_57, %c0_58, %c0_59] : memref<1x8x16x128xf32, #tpu.memory_space<vmem>>, vector<1x1x16x128xf32>
      %52 = vector.shape_cast %51 : vector<1x1x16x128xf32> to vector<16x128xf32>
      %53 = vector.shape_cast %50 : vector<16x128xf32> to vector<1x1x16x128xf32>
      tpu.vector_store %arg9[%c0_56, %c3_57, %c0_58, %c0_59], %53 {strides = array<i32>} : memref<1x8x16x128xf32, #tpu.memory_space<vmem>>, vector<1x1x16x128xf32>,
      %c0_60 = arith.constant 0 : index
      %c3_61 = arith.constant 3 : index
      %c0_62 = arith.constant 0 : index
      %c0_63 = arith.constant 0 : index
      %54 = vector.load %arg6[%c0_60, %c3_61, %c0_62, %c0_63] : memref<1x8x16x128xf32, #tpu.memory_space<vmem>>, vector<1x1x16x128xf32>
      %55 = vector.shape_cast %54 : vector<1x1x16x128xf32> to vector<16x128xf32>
      %c0_64 = arith.constant 0 : index
      %c4_65 = arith.constant 4 : index
      %c0_66 = arith.constant 0 : index
      %c0_67 = arith.constant 0 : index
      %56 = vector.load %arg8[%c0_64, %c4_65, %c0_66, %c0_67] : memref<1x8x16x128xf32, #tpu.memory_space<vmem>>, vector<1x1x16x128xf32>
      %57 = vector.shape_cast %56 : vector<1x1x16x128xf32> to vector<16x128xf32>
      %58 = vector.shape_cast %55 : vector<16x128xf32> to vector<1x1x16x128xf32>
      tpu.vector_store %arg8[%c0_64, %c4_65, %c0_66, %c0_67], %58 {strides = array<i32>} : memref<1x8x16x128xf32, #tpu.memory_space<vmem>>, vector<1x1x16x128xf32>,
      %c0_68 = arith.constant 0 : index
      %c3_69 = arith.constant 3 : index
      %c0_70 = arith.constant 0 : index
      %c0_71 = arith.constant 0 : index
      %59 = vector.load %arg7[%c0_68, %c3_69, %c0_70, %c0_71] : memref<1x8x16x128xf32, #tpu.memory_space<vmem>>, vector<1x1x16x128xf32>
      %60 = vector.shape_cast %59 : vector<1x1x16x128xf32> to vector<16x128xf32>
      %c0_72 = arith.constant 0 : index
      %c4_73 = arith.constant 4 : index
      %c0_74 = arith.constant 0 : index
      %c0_75 = arith.constant 0 : index
      %61 = vector.load %arg9[%c0_72, %c4_73, %c0_74, %c0_75] : memref<1x8x16x128xf32, #tpu.memory_space<vmem>>, vector<1x1x16x128xf32>
      %62 = vector.shape_cast %61 : vector<1x1x16x128xf32> to vector<16x128xf32>
      %63 = vector.shape_cast %60 : vector<16x128xf32> to vector<1x1x16x128xf32>
      tpu.vector_store %arg9[%c0_72, %c4_73, %c0_74, %c0_75], %63 {strides = array<i32>} : memref<1x8x16x128xf32, #tpu.memory_space<vmem>>, vector<1x1x16x128xf32>,
      %c0_76 = arith.constant 0 : index
      %c2_77 = arith.constant 2 : index
      %c0_78 = arith.constant 0 : index
      %c0_79 = arith.constant 0 : index
      %64 = vector.load %arg6[%c0_76, %c2_77, %c0_78, %c0_79] : memref<1x8x16x128xf32, #tpu.memory_space<vmem>>, vector<1x1x16x128xf32>
      %65 = vector.shape_cast %64 : vector<1x1x16x128xf32> to vector<16x128xf32>
      %c0_80 = arith.constant 0 : index
      %c5_81 = arith.constant 5 : index
      %c0_82 = arith.constant 0 : index
      %c0_83 = arith.constant 0 : index
      %66 = vector.load %arg8[%c0_80, %c5_81, %c0_82, %c0_83] : memref<1x8x16x128xf32, #tpu.memory_space<vmem>>, vector<1x1x16x128xf32>
      %67 = vector.shape_cast %66 : vector<1x1x16x128xf32> to vector<16x128xf32>
      %68 = vector.shape_cast %65 : vector<16x128xf32> to vector<1x1x16x128xf32>
      tpu.vector_store %arg8[%c0_80, %c5_81, %c0_82, %c0_83], %68 {strides = array<i32>} : memref<1x8x16x128xf32, #tpu.memory_space<vmem>>, vector<1x1x16x128xf32>,
      %c0_84 = arith.constant 0 : index
      %c2_85 = arith.constant 2 : index
      %c0_86 = arith.constant 0 : index
      %c0_87 = arith.constant 0 : index
      %69 = vector.load %arg7[%c0_84, %c2_85, %c0_86, %c0_87] : memref<1x8x16x128xf32, #tpu.memory_space<vmem>>, vector<1x1x16x128xf32>
      %70 = vector.shape_cast %69 : vector<1x1x16x128xf32> to vector<16x128xf32>
      %c0_88 = arith.constant 0 : index
      %c5_89 = arith.constant 5 : index
      %c0_90 = arith.constant 0 : index
      %c0_91 = arith.constant 0 : index
      %71 = vector.load %arg9[%c0_88, %c5_89, %c0_90, %c0_91] : memref<1x8x16x128xf32, #tpu.memory_space<vmem>>, vector<1x1x16x128xf32>
      %72 = vector.shape_cast %71 : vector<1x1x16x128xf32> to vector<16x128xf32>
      %73 = vector.shape_cast %70 : vector<16x128xf32> to vector<1x1x16x128xf32>
      tpu.vector_store %arg9[%c0_88, %c5_89, %c0_90, %c0_91], %73 {strides = array<i32>} : memref<1x8x16x128xf32, #tpu.memory_space<vmem>>, vector<1x1x16x128xf32>,
      %c0_92 = arith.constant 0 : index
      %c1_93 = arith.constant 1 : index
      %c0_94 = arith.constant 0 : index
      %c0_95 = arith.constant 0 : index
      %74 = vector.load %arg6[%c0_92, %c1_93, %c0_94, %c0_95] : memref<1x8x16x128xf32, #tpu.memory_space<vmem>>, vector<1x1x16x128xf32>
      %75 = vector.shape_cast %74 : vector<1x1x16x128xf32> to vector<16x128xf32>
      %c0_96 = arith.constant 0 : index
      %c6_97 = arith.constant 6 : index
      %c0_98 = arith.constant 0 : index
      %c0_99 = arith.constant 0 : index
      %76 = vector.load %arg8[%c0_96, %c6_97, %c0_98, %c0_99] : memref<1x8x16x128xf32, #tpu.memory_space<vmem>>, vector<1x1x16x128xf32>
      %77 = vector.shape_cast %76 : vector<1x1x16x128xf32> to vector<16x128xf32>
      %78 = vector.shape_cast %75 : vector<16x128xf32> to vector<1x1x16x128xf32>
      tpu.vector_store %arg8[%c0_96, %c6_97, %c0_98, %c0_99], %78 {strides = array<i32>} : memref<1x8x16x128xf32, #tpu.memory_space<vmem>>, vector<1x1x16x128xf32>,
      %c0_100 = arith.constant 0 : index
      %c1_101 = arith.constant 1 : index
      %c0_102 = arith.constant 0 : index
      %c0_103 = arith.constant 0 : index
      %79 = vector.load %arg7[%c0_100, %c1_101, %c0_102, %c0_103] : memref<1x8x16x128xf32, #tpu.memory_space<vmem>>, vector<1x1x16x128xf32>
      %80 = vector.shape_cast %79 : vector<1x1x16x128xf32> to vector<16x128xf32>
      %c0_104 = arith.constant 0 : index
      %c6_105 = arith.constant 6 : index
      %c0_106 = arith.constant 0 : index
      %c0_107 = arith.constant 0 : index
      %81 = vector.load %arg9[%c0_104, %c6_105, %c0_106, %c0_107] : memref<1x8x16x128xf32, #tpu.memory_space<vmem>>, vector<1x1x16x128xf32>
      %82 = vector.shape_cast %81 : vector<1x1x16x128xf32> to vector<16x128xf32>
      %83 = vector.shape_cast %80 : vector<16x128xf32> to vector<1x1x16x128xf32>
      tpu.vector_store %arg9[%c0_104, %c6_105, %c0_106, %c0_107], %83 {strides = array<i32>} : memref<1x8x16x128xf32, #tpu.memory_space<vmem>>, vector<1x1x16x128xf32>,
      %c0_108 = arith.constant 0 : index
      %c0_109 = arith.constant 0 : index
      %c0_110 = arith.constant 0 : index
      %c0_111 = arith.constant 0 : index
      %84 = vector.load %arg6[%c0_108, %c0_109, %c0_110, %c0_111] : memref<1x8x16x128xf32, #tpu.memory_space<vmem>>, vector<1x1x16x128xf32>
      %85 = vector.shape_cast %84 : vector<1x1x16x128xf32> to vector<16x128xf32>
      %c0_112 = arith.constant 0 : index
      %c7_113 = arith.constant 7 : index
      %c0_114 = arith.constant 0 : index
      %c0_115 = arith.constant 0 : index
      %86 = vector.load %arg8[%c0_112, %c7_113, %c0_114, %c0_115] : memref<1x8x16x128xf32, #tpu.memory_space<vmem>>, vector<1x1x16x128xf32>
      %87 = vector.shape_cast %86 : vector<1x1x16x128xf32> to vector<16x128xf32>
      %88 = vector.shape_cast %85 : vector<16x128xf32> to vector<1x1x16x128xf32>
      tpu.vector_store %arg8[%c0_112, %c7_113, %c0_114, %c0_115], %88 {strides = array<i32>} : memref<1x8x16x128xf32, #tpu.memory_space<vmem>>, vector<1x1x16x128xf32>,
      %c0_116 = arith.constant 0 : index
      %c0_117 = arith.constant 0 : index
      %c0_118 = arith.constant 0 : index
      %c0_119 = arith.constant 0 : index
      %89 = vector.load %arg7[%c0_116, %c0_117, %c0_118, %c0_119] : memref<1x8x16x128xf32, #tpu.memory_space<vmem>>, vector<1x1x16x128xf32>
      %90 = vector.shape_cast %89 : vector<1x1x16x128xf32> to vector<16x128xf32>
      %c0_120 = arith.constant 0 : index
      %c7_121 = arith.constant 7 : index
      %c0_122 = arith.constant 0 : index
      %c0_123 = arith.constant 0 : index
      %91 = vector.load %arg9[%c0_120, %c7_121, %c0_122, %c0_123] : memref<1x8x16x128xf32, #tpu.memory_space<vmem>>, vector<1x1x16x128xf32>
      %92 = vector.shape_cast %91 : vector<1x1x16x128xf32> to vector<16x128xf32>
      %93 = vector.shape_cast %90 : vector<16x128xf32> to vector<1x1x16x128xf32>
      tpu.vector_store %arg9[%c0_120, %c7_121, %c0_122, %c0_123], %93 {strides = array<i32>} : memref<1x8x16x128xf32, #tpu.memory_space<vmem>>, vector<1x1x16x128xf32>,
    } else {
    }
    %10 = arith.ori %2, %5 : i1
    %true = arith.constant true
    %11 = arith.xori %10, %true : i1
    %12 = arith.extui %11 : i1 to i32
    %c0_i32_3 = arith.constant 0 : i32
    %13 = arith.cmpi ne, %12, %c0_i32_3 : i32
    scf.if %13 {
      %c0 = arith.constant 0 : index
      %c0_4 = arith.constant 0 : index
      %c0_5 = arith.constant 0 : index
      %c0_6 = arith.constant 0 : index
      %14 = vector.load %arg6[%c0, %c0_4, %c0_5, %c0_6] : memref<1x8x16x128xf32, #tpu.memory_space<vmem>>, vector<1x8x16x128xf32>
      %c0_7 = arith.constant 0 : index
      %c0_8 = arith.constant 0 : index
      %c0_9 = arith.constant 0 : index
      %c0_10 = arith.constant 0 : index
      %15 = vector.load %arg8[%c0_7, %c0_8, %c0_9, %c0_10] : memref<1x8x16x128xf32, #tpu.memory_space<vmem>>, vector<1x8x16x128xf32>
      tpu.vector_store %arg8[%c0_7, %c0_8, %c0_9, %c0_10], %14 {strides = array<i32>} : memref<1x8x16x128xf32, #tpu.memory_space<vmem>>, vector<1x8x16x128xf32>,
      %c0_11 = arith.constant 0 : index
      %c0_12 = arith.constant 0 : index
      %c0_13 = arith.constant 0 : index
      %c0_14 = arith.constant 0 : index
      %16 = vector.load %arg7[%c0_11, %c0_12, %c0_13, %c0_14] : memref<1x8x16x128xf32, #tpu.memory_space<vmem>>, vector<1x8x16x128xf32>
      %c0_15 = arith.constant 0 : index
      %c0_16 = arith.constant 0 : index
      %c0_17 = arith.constant 0 : index
      %c0_18 = arith.constant 0 : index
      %17 = vector.load %arg9[%c0_15, %c0_16, %c0_17, %c0_18] : memref<1x8x16x128xf32, #tpu.memory_space<vmem>>, vector<1x8x16x128xf32>
      tpu.vector_store %arg9[%c0_15, %c0_16, %c0_17, %c0_18], %16 {strides = array<i32>} : memref<1x8x16x128xf32, #tpu.memory_space<vmem>>, vector<1x8x16x128xf32>,
    } else {
    }
    return
  }
  func.func @transform_0(%arg0: i32, %arg1: i32, %arg2: i32, %arg3: memref<2xi32, #tpu.memory_space<smem>>, %arg4: memref<2xi32, #tpu.memory_space<smem>>) -> (i32, i32) {
    %c0_i32 = arith.constant 0 : i32
    %c0_i32_0 = arith.constant 0 : i32
    %c0_i32_1 = arith.constant 0 : i32
    return %c0_i32, %c0_i32_0 : i32, i32
  }
  func.func @transform_1(%arg0: i32, %arg1: i32, %arg2: i32, %arg3: memref<2xi32, #tpu.memory_space<smem>>, %arg4: memref<2xi32, #tpu.memory_space<smem>>) -> (i32, i32, i32, i32) {
    %0 = arith.index_cast %arg0 : i32 to index
    %1 = memref.load %arg3[%0] : memref<2xi32, #tpu.memory_space<smem>>
    %c0_i32 = arith.constant 0 : i32
    %2 = arith.cmpi ne, %1, %c0_i32 : i32
    %c0_i32_0 = arith.constant 0 : i32
    %3 = arith.subi %c0_i32_0, %arg1 : i32
    %4 = arith.select %2, %3, %arg1 : i32
    %5 = arith.index_cast %arg0 : i32 to index
    %6 = memref.load %arg4[%5] : memref<2xi32, #tpu.memory_space<smem>>
    %c0_i32_1 = arith.constant 0 : i32
    %7 = arith.cmpi ne, %6, %c0_i32_1 : i32
    %c1_i32 = arith.constant 1 : i32
    %8 = arith.subi %c1_i32, %arg2 : i32
    %9 = arith.select %7, %8, %arg2 : i32
    %c0_i32_2 = arith.constant 0 : i32
    %c0_i32_3 = arith.constant 0 : i32
    return %arg0, %4, %c0_i32_2, %9 : i32, i32, i32, i32
  }
  func.func @transform_2(%arg0: i32, %arg1: i32, %arg2: i32, %arg3: memref<2xi32, #tpu.memory_space<smem>>, %arg4: memref<2xi32, #tpu.memory_space<smem>>) -> (i32, i32, i32, i32) {
    %0 = arith.index_cast %arg0 : i32 to index
    %1 = memref.load %arg3[%0] : memref<2xi32, #tpu.memory_space<smem>>
    %c0_i32 = arith.constant 0 : i32
    %2 = arith.cmpi ne, %1, %c0_i32 : i32
    %c0_i32_0 = arith.constant 0 : i32
    %3 = arith.subi %c0_i32_0, %arg1 : i32
    %4 = arith.select %2, %3, %arg1 : i32
    %5 = arith.index_cast %arg0 : i32 to index
    %6 = memref.load %arg4[%5] : memref<2xi32, #tpu.memory_space<smem>>
    %c0_i32_1 = arith.constant 0 : i32
    %7 = arith.cmpi ne, %6, %c0_i32_1 : i32
    %c1_i32 = arith.constant 1 : i32
    %8 = arith.subi %c1_i32, %arg2 : i32
    %9 = arith.select %7, %8, %arg2 : i32
    %c0_i32_2 = arith.constant 0 : i32
    %c0_i32_3 = arith.constant 0 : i32
    return %arg0, %4, %c0_i32_2, %9 : i32, i32, i32, i32
  }
  func.func @transform_3(%arg0: i32, %arg1: i32, %arg2: i32, %arg3: memref<2xi32, #tpu.memory_space<smem>>, %arg4: memref<2xi32, #tpu.memory_space<smem>>) -> (i32, i32, i32, i32) {
    %c0_i32 = arith.constant 0 : i32
    %c0_i32_0 = arith.constant 0 : i32
    return %arg0, %arg1, %c0_i32, %arg2 : i32, i32, i32, i32
  }
  func.func @transform_4(%arg0: i32, %arg1: i32, %arg2: i32, %arg3: memref<2xi32, #tpu.memory_space<smem>>, %arg4: memref<2xi32, #tpu.memory_space<smem>>) -> (i32, i32, i32, i32) {
    %c0_i32 = arith.constant 0 : i32
    %c0_i32_0 = arith.constant 0 : i32
    return %arg0, %arg1, %c0_i32, %arg2 : i32, i32, i32, i32
  }
}

</mosaic_0001>

<llo_original>
// kernel: tpu_custom_call.1
$region0: #{tpu_custom_call.1}
  #allocation0 [shape = 'u32[]', space=smem, size = 0x4, offset = 0x4, fixed_abs, tag = 'smem constant byte address 0x4 - core index']
  #allocation1 [shape = 'u32[144,128]{1,0:T(1,128)}', space=vmem, size = 0x12000, scoped, tag = 'internal scratch']
  #allocation2 [shape = 's32[1]{0}', space=sflag, size = 0x4, scoped, tag = 'scoped memory for tpu_custom_call.1']
  #allocation3 [shape = 'u8[512]{0}', space=smem, size = 0x200, scoped, tag = 'prefetched SMEM operand 0']
  #allocation4 [shape = 'u8[512]{0}', space=smem, size = 0x200, scoped, tag = 'prefetched SMEM operand 1']
  %s0 = inlined_call_operand.hbm [shape: s32[2], index: 0, kind: input, shape index: {}]
  %s1 = inlined_call_operand.vmem [shape: s32[2], index: 1, kind: input, shape index: {}]
  %s2 = inlined_call_operand.hbm [shape: f32[128,128], index: 2, kind: input, shape index: {}]
  %s3 = inlined_call_operand.hbm [shape: f32[2,8,16,256], index: 3, kind: input, shape index: {}]
  %s4 = inlined_call_operand.hbm [shape: f32[2,8,16,256], index: 4, kind: input, shape index: {}]
  %s5 = inlined_call_operand.hbm [shape: f32[2,8,16,256], index: 5, kind: output, shape index: {0}]
  %s6 = inlined_call_operand.hbm [shape: f32[2,8,16,256], index: 6, kind: output, shape index: {1}]
  %7 = xla_tuple %s5, %s6
  %s8 = sld [smem:[#allocation0]]
  $region77: #{tpu_custom_call.1} parent=0
    _
  %s10 = ssub.s32 1, %s8
  %s11 = scalar_select 0, %s10, %s8
  %13 = dma.hbm_to_smem %s0, 16, [#allocation3], [#allocation2]
  %s14 = sshll.u32 %s1, 4
  %s15 = int_to_ptr.vmem [resolvable:$true] %s14
  %17 = dma.vmem_to_smem %s15, 16, [#allocation4], [#allocation2]
  %18 = dma.done [#allocation2], 32
  %19 = sfence
  $region1: #{tpu_custom_call.1} parent=0
    #allocation5 [shape = 'u8[65536]{0}', space=vmem, size = 0x10000, scoped, tag = 'input window, operand 2, single buffered']
    #allocation6 [shape = 's32[2]{0}', space=sflag, size = 0x8, scoped, tag = 'scoped memory for tpu_custom_call.1']
    #allocation7 [shape = 's32[2]{0}', space=sflag, size = 0x8, scoped, tag = 'scoped memory for tpu_custom_call.1']
    #allocation8 [shape = 'u8[131072]{0}', space=vmem, size = 0x20000, scoped, tag = 'input window, operand 3']
    #allocation9 [shape = 's32[2]{0}', space=sflag, size = 0x8, scoped, tag = 'scoped memory for tpu_custom_call.1']
    #allocation10 [shape = 'u8[131072]{0}', space=vmem, size = 0x20000, scoped, tag = 'input window, operand 4']
    #allocation11 [shape = 'u8[131072]{0}', space=vmem, size = 0x20000, scoped, tag = 'output window, operand 0']
    #allocation12 [shape = 'u8[131072]{0}', space=vmem, size = 0x20000, scoped, tag = 'output window, operand 1']
    #allocation13 [shape = 's32[2]{0}', space=sflag, size = 0x8, scoped, tag = 'scoped memory for tpu_custom_call.1']
    %20 = vsyncpa [#allocation6], 0
    %21 = vsyncpa [#allocation9], 0
    %s22 = scalar_lea.sflag [#allocation9], 1
    %23 = vsyncpa %s22, 0
    %24 = vsyncpa [#allocation7], 0
    %s25 = scalar_lea.sflag [#allocation7], 1
    %26 = vsyncpa %s25, 0
    %27 = vsyncpa [#allocation13], 0
    %s28 = scalar_lea.sflag [#allocation13], 1
    %29 = vsyncpa %s28, 0
    loop: start=0, step=1, limit=6
    $region2: #{tpu_custom_call.1} parent=1 // loop_pre_header
      _
    $region3: #{tpu_custom_call.1} parent=1 // loop_header
      %s31 = sphi 0, %s35
      %p32 = scmp.ge.s32.totalorder %s31, 6
      %s38 = sphi 0, %s57
      %s39 = sphi 0, %s53
      %s40 = sphi 0, %s49
      %s41 = sphi 0, %s38
      %s42 = sphi 0, %s39
      %s43 = sphi 0, %s40
      %s44 = sphi 0, %s41
      %s45 = sphi 0, %s42
      %s46 = sphi 0, %s43
      %s58 = sphi 0, %s58
      %s60 = sphi 0, %s58
      %s61 = sphi 0, %s60
      %s75 = sphi 0, %s61
      %s101 = sphi 0, %s103
      %s104 = sphi 0, %s101
      %s105 = sphi 0, %s104
      %s121 = sphi 0, %s105
      %s147 = sphi 0, %s149
      %s150 = sphi 0, %s147
      %s151 = sphi 0, %s150
      %s167 = sphi 0, %s151
      %s177 = sphi 0, %s179
      %s180 = sphi 0, %s177
      %s181 = sphi 0, %s180
      %s197 = sphi 0, %s181
      %s207 = sphi 0, %s209
      %s210 = sphi 0, %s207
      %s211 = sphi 0, %s210
      %s227 = sphi 0, %s211
    $region4: #{tpu_custom_call.1} parent=1 // loop_header_branch
      %34 = sbr.rel (%p32) target = $region8
    $region5: #{tpu_custom_call.1} parent=1 // loop_body
      %s36 = ssub.s32 %s31, 1
      %s37 = ssub.s32 %s31, 2
      %s47 = sadd.s32 1, %s40
      %p48 = scmp.ge.s32.totalorder %s47, 2
      %s49 = scalar_select %p48, 0, %s47
      %s50 = sadd.s32 1, %s39
      %s51 = scalar_select %p48, %s50, %s39
      %p52 = scmp.ge.s32.totalorder %s51, 1
      %s53 = scalar_select %p52, 0, %s51
      %s54 = sadd.s32 1, %s38
      %s55 = scalar_select %p52, %s54, %s38
      %p56 = scmp.ge.s32.totalorder %s55, 2
      %s57 = scalar_select %p56, 0, %s55
      %s59 = sadd.s32 %s58, 1
      %p62 = scmp.eq.s32.totalorder %s31, 3
      %p63 = scmp.ne.s32.totalorder %s58, %s60
      %p64 = scmp.eq.s32.totalorder %s31, 0
      %p65 = por %p63, %p64
      %p66 = scmp.ne.s32.totalorder %s58, %s60
      %p67 = scmp.eq.s32.totalorder %s36, 3
      %p68 = por %p66, %p67
      %p69 = scmp.ne.s32.totalorder %s60, %s61
      %p70 = scmp.eq.s32.totalorder %s36, 0
      %p71 = por %p69, %p70
      %p72 = scmp.ne.s32.totalorder %s60, %s61
      %p73 = scmp.eq.s32.totalorder %s37, 3
      %p74 = por %p72, %p73
      %p76 = scmp.ne.s32.totalorder %s61, %s75
      %p77 = scmp.eq.s32.totalorder %s37, 0
      %p78 = por %p76, %p77
      %s79 = sld [smem:[#allocation3 + %s38]]
      %p80 = scmp.ne.s32.totalorder %s79, 0
      %s81 = ssub.s32 0, %s39
      %s82 = scalar_select %p80, %s81, %s39
      %s83 = sld [smem:[#allocation4 + %s38]]
      %p84 = scmp.ne.s32.totalorder %s83, 0
      %s85 = ssub.s32 1, %s40
      %s86 = scalar_select %p84, %s85, %s40
      %s87 = sld [smem:[#allocation3 + %s57]]
      %p88 = scmp.ne.s32.totalorder %s87, 0
      %s89 = ssub.s32 0, %s53
      %s90 = scalar_select %p88, %s89, %s53
      %s91 = sld [smem:[#allocation4 + %s57]]
      %p92 = scmp.ne.s32.totalorder %s91, 0
      %s93 = ssub.s32 1, %s49
      %s94 = scalar_select %p92, %s93, %s49
      %s95 = ssub.s32 %s38, %s57
      %s96 = ssub.s32 %s82, %s90
      %s97 = sor.u32 %s95, %s96
      %s98 = ssub.s32 %s86, %s94
      %s99 = sor.u32 %s97, %s98
      %p100 = scmp.eq.s32.totalorder %s99, 0
      %s102 = sadd.s32 %s101, 1
      %s103 = scalar_select %p100, %s101, %s102
      %p106 = pneg %p100
      %p107 = scmp.eq.s32.totalorder %s31, 3
      %p108 = por %p106, %p107
      %p109 = scmp.ne.s32.totalorder %s101, %s104
      %p110 = scmp.eq.s32.totalorder %s31, 0
      %p111 = por %p109, %p110
      %p112 = scmp.ne.s32.totalorder %s101, %s104
      %p113 = scmp.eq.s32.totalorder %s36, 3
      %p114 = por %p112, %p113
      %p115 = scmp.ne.s32.totalorder %s104, %s105
      %p116 = scmp.eq.s32.totalorder %s36, 0
      %p117 = por %p115, %p116
      %p118 = scmp.ne.s32.totalorder %s104, %s105
      %p119 = scmp.eq.s32.totalorder %s37, 3
      %p120 = por %p118, %p119
      %p122 = scmp.ne.s32.totalorder %s105, %s121
      %p123 = scmp.eq.s32.totalorder %s37, 0
      %p124 = por %p122, %p123
      %s125 = sld [smem:[#allocation3 + %s38]]
      %p126 = scmp.ne.s32.totalorder %s125, 0
      %s127 = ssub.s32 0, %s39
      %s128 = scalar_select %p126, %s127, %s39
      %s129 = sld [smem:[#allocation4 + %s38]]
      %p130 = scmp.ne.s32.totalorder %s129, 0
      %s131 = ssub.s32 1, %s40
      %s132 = scalar_select %p130, %s131, %s40
      %s133 = sld [smem:[#allocation3 + %s57]]
      %p134 = scmp.ne.s32.totalorder %s133, 0
      %s135 = ssub.s32 0, %s53
      %s136 = scalar_select %p134, %s135, %s53
      %s137 = sld [smem:[#allocation4 + %s57]]
      %p138 = scmp.ne.s32.totalorder %s137, 0
      %s139 = ssub.s32 1, %s49
      %s140 = scalar_select %p138, %s139, %s49
      %s141 = ssub.s32 %s38, %s57
      %s142 = ssub.s32 %s128, %s136
      %s143 = sor.u32 %s141, %s142
      %s144 = ssub.s32 %s132, %s140
      %s145 = sor.u32 %s143, %s144
      %p146 = scmp.eq.s32.totalorder %s145, 0
      %s148 = sadd.s32 %s147, 1
      %s149 = scalar_select %p146, %s147, %s148
      %p152 = pneg %p146
      %p153 = scmp.eq.s32.totalorder %s31, 3
      %p154 = por %p152, %p153
      %p155 = scmp.ne.s32.totalorder %s147, %s150
      %p156 = scmp.eq.s32.totalorder %s31, 0
      %p157 = por %p155, %p156
      %p158 = scmp.ne.s32.totalorder %s147, %s150
      %p159 = scmp.eq.s32.totalorder %s36, 3
      %p160 = por %p158, %p159
      %p161 = scmp.ne.s32.totalorder %s150, %s151
      %p162 = scmp.eq.s32.totalorder %s36, 0
      %p163 = por %p161, %p162
      %p164 = scmp.ne.s32.totalorder %s150, %s151
      %p165 = scmp.eq.s32.totalorder %s37, 3
      %p166 = por %p164, %p165
      %p168 = scmp.ne.s32.totalorder %s151, %s167
      %p169 = scmp.eq.s32.totalorder %s37, 0
      %p170 = por %p168, %p169
      %s171 = ssub.s32 %s38, %s57
      %s172 = ssub.s32 %s39, %s53
      %s173 = sor.u32 %s171, %s172
      %s174 = ssub.s32 %s40, %s49
      %s175 = sor.u32 %s173, %s174
      %p176 = scmp.eq.s32.totalorder %s175, 0
      %s178 = sadd.s32 %s177, 1
      %s179 = scalar_select %p176, %s177, %s178
      %p182 = pneg %p176
      %p183 = scmp.eq.s32.totalorder %s31, 3
      %p184 = por %p182, %p183
      %p185 = scmp.ne.s32.totalorder %s177, %s180
      %p186 = scmp.eq.s32.totalorder %s31, 0
      %p187 = por %p185, %p186
      %p188 = scmp.ne.s32.totalorder %s177, %s180
      %p189 = scmp.eq.s32.totalorder %s36, 3
      %p190 = por %p188, %p189
      %p191 = scmp.ne.s32.totalorder %s180, %s181
      %p192 = scmp.eq.s32.totalorder %s36, 0
      %p193 = por %p191, %p192
      %p194 = scmp.ne.s32.totalorder %s180, %s181
      %p195 = scmp.eq.s32.totalorder %s37, 3
      %p196 = por %p194, %p195
      %p198 = scmp.ne.s32.totalorder %s181, %s197
      %p199 = scmp.eq.s32.totalorder %s37, 0
      %p200 = por %p198, %p199
      %s201 = ssub.s32 %s38, %s57
      %s202 = ssub.s32 %s39, %s53
      %s203 = sor.u32 %s201, %s202
      %s204 = ssub.s32 %s40, %s49
      %s205 = sor.u32 %s203, %s204
      %p206 = scmp.eq.s32.totalorder %s205, 0
      %s208 = sadd.s32 %s207, 1
      %s209 = scalar_select %p206, %s207, %s208
      %p212 = pneg %p206
      %p213 = scmp.eq.s32.totalorder %s31, 3
      %p214 = por %p212, %p213
      %p215 = scmp.ne.s32.totalorder %s207, %s210
      %p216 = scmp.eq.s32.totalorder %s31, 0
      %p217 = por %p215, %p216
      %p218 = scmp.ne.s32.totalorder %s207, %s210
      %p219 = scmp.eq.s32.totalorder %s36, 3
      %p220 = por %p218, %p219
      %p221 = scmp.ne.s32.totalorder %s210, %s211
      %p222 = scmp.eq.s32.totalorder %s36, 0
      %p223 = por %p221, %p222
      %p224 = scmp.ne.s32.totalorder %s210, %s211
      %p225 = scmp.eq.s32.totalorder %s37, 3
      %p226 = por %p224, %p225
      %p228 = scmp.ne.s32.totalorder %s211, %s227
      %p229 = scmp.eq.s32.totalorder %s37, 0
      %p230 = por %p228, %p229
      %p231 = scmp.le.s32.totalorder 1, %s31
      %p232 = scmp.lt.s32.totalorder %s31, 5
      %p233 = pnand %p231, %p232
      %p234 = pneg %p233
      // Predicated region
      $region9: #{tpu_custom_call.1} parent=5 // pred_check
        _
      $region10: #{tpu_custom_call.1} parent=5 // pred_check_branch
        %236 = sbr.rel (%p233) target = $region12
      $region11: #{tpu_custom_call.1} parent=5 // pred_region
        %s237 = ssub.s32 %s31, 1
        // Predicated region
        $region13: #{tpu_custom_call.1} parent=11 // pred_check
          %p238 = pneg %p71
        $region14: #{tpu_custom_call.1} parent=11 // pred_check_branch
          %240 = sbr.rel (%p238) target = $region16
        $region15: #{tpu_custom_call.1} parent=11 // pred_region
          %s242 = ssub.s32 2048, 2048
          %243 = vsyncadd [#allocation6], %s242
          %s244 = sshll.u32 [#allocation5], 4
          %s245 = int_to_ptr.vmem [resolvable:$true] %s244
          %250 = dma.hbm_to_vmem [thread:$0]  %s2, 2048, %s245, [#allocation6], 128, 128, 8
        $region16: #{tpu_custom_call.1} parent=11 // pred_fallthru
          _
      $region12: #{tpu_custom_call.1} parent=5 // pred_fallthru
        _
      %p251 = scmp.lt.s32.totalorder %s31, 4
      // Predicated region
      $region17: #{tpu_custom_call.1} parent=5 // pred_check
        %p252 = pneg %p251
      $region18: #{tpu_custom_call.1} parent=5 // pred_check_branch
        %254 = sbr.rel (%p252) target = $region20
      $region19: #{tpu_custom_call.1} parent=5 // pred_region
        // Predicated region
        $region21: #{tpu_custom_call.1} parent=19 // pred_check
          %p255 = pneg %p111
        $region22: #{tpu_custom_call.1} parent=19 // pred_check_branch
          %257 = sbr.rel (%p255) target = $region24
        $region23: #{tpu_custom_call.1} parent=19 // pred_region
          %s258 = sand.u32 %s31, 1
          %s259 = scalar_lea.sflag [#allocation9], %s258
          %s260 = sand.u32 %s101, 1
          %s261 = smul.addr %s260, 128
          %s262 = scalar_lea.vmem [#allocation8], %s261
          %s263 = sld [smem:[#allocation3 + %s38]]
          %p264 = scmp.ne.s32.totalorder %s263, 0
          %s265 = ssub.s32 0, %s39
          %s266 = scalar_select %p264, %s265, %s39
          %s267 = sld [smem:[#allocation4 + %s38]]
          %p268 = scmp.ne.s32.totalorder %s267, 0
          %s269 = ssub.s32 1, %s40
          %s270 = scalar_select %p268, %s269, %s40
          %s271 = smul.u32 8, %s266
          %s273 = ssub.s32 2048, 2048
          %274 = vsyncadd %s259, %s273
          %s275 = smul.addr %s271, 4
          %s276 = sadd.s32 %s270, %s275
          %s277 = smul.addr %s38, 32
          %s278 = sadd.s32 %s276, %s277
          %s279 = smul.addr %s278, 128
          %s280 = scalar_lea.hbm %s3, %s279
          %s281 = sshll.u32 %s262, 4
          %s282 = int_to_ptr.vmem [resolvable:$true] %s281
          %287 = dma.hbm_to_vmem [thread:$0]  %s280, 2048, %s282, %s259, 256, 128, 8
        $region24: #{tpu_custom_call.1} parent=19 // pred_fallthru
          _
        // Predicated region
        $region25: #{tpu_custom_call.1} parent=19 // pred_check
          %p288 = pneg %p157
        $region26: #{tpu_custom_call.1} parent=19 // pred_check_branch
          %290 = sbr.rel (%p288) target = $region28
        $region27: #{tpu_custom_call.1} parent=19 // pred_region
          %s291 = sand.u32 %s31, 1
          %s292 = scalar_lea.sflag [#allocation9], %s291
          %s293 = sand.u32 %s147, 1
          %s294 = smul.addr %s293, 128
          %s295 = scalar_lea.vmem [#allocation10], %s294
          %s296 = sld [smem:[#allocation3 + %s38]]
          %p297 = scmp.ne.s32.totalorder %s296, 0
          %s298 = ssub.s32 0, %s39
          %s299 = scalar_select %p297, %s298, %s39
          %s300 = sld [smem:[#allocation4 + %s38]]
          %p301 = scmp.ne.s32.totalorder %s300, 0
          %s302 = ssub.s32 1, %s40
          %s303 = scalar_select %p301, %s302, %s40
          %s304 = smul.u32 8, %s299
          %s306 = ssub.s32 2048, 2048
          %307 = vsyncadd %s292, %s306
          %s308 = smul.addr %s304, 4
          %s309 = sadd.s32 %s303, %s308
          %s310 = smul.addr %s38, 32
          %s311 = sadd.s32 %s309, %s310
          %s312 = smul.addr %s311, 128
          %s313 = scalar_lea.hbm %s4, %s312
          %s314 = sshll.u32 %s295, 4
          %s315 = int_to_ptr.vmem [resolvable:$true] %s314
          %320 = dma.hbm_to_vmem [thread:$0]  %s313, 2048, %s315, %s292, 256, 128, 8
        $region28: #{tpu_custom_call.1} parent=19 // pred_fallthru
          _
      $region20: #{tpu_custom_call.1} parent=5 // pred_fallthru
        _
      %p321 = scmp.le.s32.totalorder 1, %s31
      %p322 = scmp.lt.s32.totalorder %s31, 5
      %p323 = pnand %p321, %p322
      %p324 = pneg %p323
      // Predicated region
      $region29: #{tpu_custom_call.1} parent=5 // pred_check
        _
      $region30: #{tpu_custom_call.1} parent=5 // pred_check_branch
        %326 = sbr.rel (%p323) target = $region32
      $region31: #{tpu_custom_call.1} parent=5 // pred_region
        %s327 = ssub.s32 %s31, 1
        // Predicated region
        $region33: #{tpu_custom_call.1} parent=31 // pred_check
          %p328 = pneg %p71
        $region34: #{tpu_custom_call.1} parent=31 // pred_check_branch
          %330 = sbr.rel (%p328) target = $region36
        $region35: #{tpu_custom_call.1} parent=31 // pred_region
          %331 = dma.done [#allocation6], 2048
        $region36: #{tpu_custom_call.1} parent=31 // pred_fallthru
          _
        %s332 = sand.u32 %s36, 1
        %s333 = scalar_lea.sflag [#allocation9], %s332
        %s334 = sand.u32 %s104, 1
        %s335 = smul.addr %s334, 128
        %s336 = scalar_lea.vmem [#allocation8], %s335
        // Predicated region
        $region37: #{tpu_custom_call.1} parent=31 // pred_check
          %p337 = pneg %p117
        $region38: #{tpu_custom_call.1} parent=31 // pred_check_branch
          %339 = sbr.rel (%p337) target = $region40
        $region39: #{tpu_custom_call.1} parent=31 // pred_region
          %340 = dma.done %s333, 2048
        $region40: #{tpu_custom_call.1} parent=31 // pred_fallthru
          _
        %s341 = sand.u32 %s36, 1
        %s342 = scalar_lea.sflag [#allocation9], %s341
        %s343 = sand.u32 %s150, 1
        %s344 = smul.addr %s343, 128
        %s345 = scalar_lea.vmem [#allocation10], %s344
        // Predicated region
        $region41: #{tpu_custom_call.1} parent=31 // pred_check
          %p346 = pneg %p163
        $region42: #{tpu_custom_call.1} parent=31 // pred_check_branch
          %348 = sbr.rel (%p346) target = $region44
        $region43: #{tpu_custom_call.1} parent=31 // pred_region
          %349 = dma.done %s342, 2048
        $region44: #{tpu_custom_call.1} parent=31 // pred_fallthru
          _
        %p350 = pneg %p71
        %p351 = pneg %p68
        %s352 = sand.u32 %s36, 1
        %s353 = scalar_lea.sflag [#allocation9], %s352
        %s354 = sand.u32 %s104, 1
        %s355 = smul.addr %s354, 128
        %s356 = scalar_lea.vmem [#allocation8], %s355
        %p357 = pneg %p117
        %p358 = pneg %p114
        %s359 = sand.u32 %s36, 1
        %s360 = scalar_lea.sflag [#allocation9], %s359
        %s361 = sand.u32 %s150, 1
        %s362 = smul.addr %s361, 128
        %s363 = scalar_lea.vmem [#allocation10], %s362
        %p364 = pneg %p163
        %p365 = pneg %p160
        %p366 = pneg %p193
        %p367 = pneg %p190
        %s368 = sand.u32 %s180, 1
        %s369 = scalar_lea.sflag [#allocation7], %s368
        %s370 = sand.u32 %s180, 1
        %s371 = smul.addr %s370, 128
        %s372 = scalar_lea.vmem [#allocation11], %s371
        %p373 = pneg %p223
        %p374 = pneg %p220
        %s375 = sand.u32 %s210, 1
        %s376 = scalar_lea.sflag [#allocation13], %s375
        %s377 = sand.u32 %s210, 1
        %s378 = smul.addr %s377, 128
        %s379 = scalar_lea.vmem [#allocation12], %s378
        %s380 = sld [smem:[#allocation3 + %s41]]
        %p381 = scmp.ne.s32.totalorder %s380, 0
        %s382 = ssub.s32 0, %s42
        %s383 = scalar_select %p381, %s382, %s42
        %s384 = sld [smem:[#allocation4 + %s41]]
        %p385 = scmp.ne.s32.totalorder %s384, 0
        %s386 = ssub.s32 1, %s43
        %s387 = scalar_select %p385, %s386, %s43
        %s388 = smul.u32 8, %s383
        %s389 = sld [smem:[#allocation3 + %s41]]
        %p390 = scmp.ne.s32.totalorder %s389, 0
        %s391 = ssub.s32 0, %s42
        %s392 = scalar_select %p390, %s391, %s42
        %s393 = sld [smem:[#allocation4 + %s41]]
        %p394 = scmp.ne.s32.totalorder %s393, 0
        %s395 = ssub.s32 1, %s43
        %s396 = scalar_select %p394, %s395, %s43
        %s397 = smul.u32 8, %s392
        %s398 = smul.u32 8, %s42
        %s399 = smul.u32 8, %s42
        %s400 = sld [smem:[#allocation3 + %s41]]
        %p401 = scmp.ne.s32.totalorder %s400, 0
        %s402 = sld [smem:[#allocation4 + %s41]]
        %p403 = scmp.ne.s32.totalorder %s402, 0
        // Predicated region
        $region45: #{tpu_custom_call.1} parent=31 // pred_check
          %p404 = pneg %p403
        $region46: #{tpu_custom_call.1} parent=31 // pred_check_branch
          %406 = sbr.rel (%p404) target = $region48
        $region47: #{tpu_custom_call.1} parent=31 // pred_region
          %v407 = vld [vmem:[%s336] sm:$0xff]
          %v408 = vld [vmem:[%s336 + $0x8] sm:$0xff]
          %v409 = vld [vmem:[%s336 + $0x10] sm:$0xff]
          %v410 = vld [vmem:[%s336 + $0x18] sm:$0xff]
          %v411 = vld [vmem:[%s336 + $0x20] sm:$0xff]
          %v412 = vld [vmem:[%s336 + $0x28] sm:$0xff]
          %v413 = vld [vmem:[%s336 + $0x30] sm:$0xff]
          %v414 = vld [vmem:[%s336 + $0x38] sm:$0xff]
          %v415 = vld [vmem:[%s336 + $0x40] sm:$0xff]
          %v416 = vld [vmem:[%s336 + $0x48] sm:$0xff]
          %v417 = vld [vmem:[%s336 + $0x50] sm:$0xff]
          %v418 = vld [vmem:[%s336 + $0x58] sm:$0xff]
          %v419 = vld [vmem:[%s336 + $0x60] sm:$0xff]
          %v420 = vld [vmem:[%s336 + $0x68] sm:$0xff]
          %v421 = vld [vmem:[%s336 + $0x70] sm:$0xff]
          %v422 = vld [vmem:[%s336 + $0x78] sm:$0xff]
          %v423 = vld [vmem:[%s345] sm:$0xff]
          %v424 = vld [vmem:[%s345 + $0x8] sm:$0xff]
          %v425 = vld [vmem:[%s345 + $0x10] sm:$0xff]
          %v426 = vld [vmem:[%s345 + $0x18] sm:$0xff]
          %v427 = vld [vmem:[%s345 + $0x20] sm:$0xff]
          %v428 = vld [vmem:[%s345 + $0x28] sm:$0xff]
          %v429 = vld [vmem:[%s345 + $0x30] sm:$0xff]
          %v430 = vld [vmem:[%s345 + $0x38] sm:$0xff]
          %v431 = vld [vmem:[%s345 + $0x40] sm:$0xff]
          %v432 = vld [vmem:[%s345 + $0x48] sm:$0xff]
          %v433 = vld [vmem:[%s345 + $0x50] sm:$0xff]
          %v434 = vld [vmem:[%s345 + $0x58] sm:$0xff]
          %v435 = vld [vmem:[%s345 + $0x60] sm:$0xff]
          %v436 = vld [vmem:[%s345 + $0x68] sm:$0xff]
          %v437 = vld [vmem:[%s345 + $0x70] sm:$0xff]
          %v438 = vld [vmem:[%s345 + $0x78] sm:$0xff]
          %v439 = vld [vmem:[#allocation5] sm:$0xff]
          %v440 = vld [vmem:[#allocation5 + $0x8] sm:$0xff]
          %v441 = vld [vmem:[#allocation5 + $0x10] sm:$0xff]
          %v442 = vld [vmem:[#allocation5 + $0x18] sm:$0xff]
          %v443 = vld [vmem:[#allocation5 + $0x20] sm:$0xff]
          %v444 = vld [vmem:[#allocation5 + $0x28] sm:$0xff]
          %v445 = vld [vmem:[#allocation5 + $0x30] sm:$0xff]
          %v446 = vld [vmem:[#allocation5 + $0x38] sm:$0xff]
          %v447 = vld [vmem:[#allocation5 + $0x40] sm:$0xff]
          %v448 = vld [vmem:[#allocation5 + $0x48] sm:$0xff]
          %v449 = vld [vmem:[#allocation5 + $0x50] sm:$0xff]
          %v450 = vld [vmem:[#allocation5 + $0x58] sm:$0xff]
          %v451 = vld [vmem:[#allocation5 + $0x60] sm:$0xff]
          %v452 = vld [vmem:[#allocation5 + $0x68] sm:$0xff]
          %v453 = vld [vmem:[#allocation5 + $0x70] sm:$0xff]
          %v454 = vld [vmem:[#allocation5 + $0x78] sm:$0xff]
          %455 = vmatprep.subr.mxu0 0.0
          %v456 = vand.u32 %v439, 4294901760
          %457 = vmatpush1.msra.mxu0 %v456
          %458 = vmatprep.subr.mxu0 0.0
          %v459 = vand.u32 %v440, 4294901760
          %460 = vmatpush1.msra.mxu0 %v459
          %461 = vmatprep.subr.mxu0 0.0
          %v462 = vand.u32 %v441, 4294901760
          %463 = vmatpush1.msra.mxu0 %v462
          %464 = vmatprep.subr.mxu0 0.0
          %v465 = vand.u32 %v442, 4294901760
          %466 = vmatpush1.msra.mxu0 %v465
          %467 = vmatprep.subr.mxu0 0.0
          %v468 = vand.u32 %v443, 4294901760
          %469 = vmatpush1.msra.mxu0 %v468
          %470 = vmatprep.subr.mxu0 0.0
          %v471 = vand.u32 %v444, 4294901760
          %472 = vmatpush1.msra.mxu0 %v471
          %473 = vmatprep.subr.mxu0 0.0
          %v474 = vand.u32 %v445, 4294901760
          %475 = vmatpush1.msra.mxu0 %v474
          %476 = vmatprep.subr.mxu0 0.0
          %v477 = vand.u32 %v446, 4294901760
          %478 = vmatpush1.msra.mxu0 %v477
          %479 = vmatprep.subr.mxu0 0.0
          %v480 = vand.u32 %v447, 4294901760
          %481 = vmatpush1.msra.mxu0 %v480
          %482 = vmatprep.subr.mxu0 0.0
          %v483 = vand.u32 %v448, 4294901760
          %484 = vmatpush1.msra.mxu0 %v483
          %485 = vmatprep.subr.mxu0 0.0
          %v486 = vand.u32 %v449, 4294901760
          %487 = vmatpush1.msra.mxu0 %v486
          %488 = vmatprep.subr.mxu0 0.0
          %v489 = vand.u32 %v450, 4294901760
          %490 = vmatpush1.msra.mxu0 %v489
          %491 = vmatprep.subr.mxu0 0.0
          %v492 = vand.u32 %v451, 4294901760
          %493 = vmatpush1.msra.mxu0 %v492
          %494 = vmatprep.subr.mxu0 0.0
          %v495 = vand.u32 %v452, 4294901760
          %496 = vmatpush1.msra.mxu0 %v495
          %497 = vmatprep.subr.mxu0 0.0
          %v498 = vand.u32 %v453, 4294901760
          %499 = vmatpush1.msra.mxu0 %v498
          %500 = vmatprep.subr.mxu0 0.0
          %v501 = vand.u32 %v454, 4294901760
          %502 = vmatpush1.msra.mxu0 %v501
          %503 = vmatprep.subr.mxu0 0.0
          %504 = vmatpush1.msra.mxu0 0.0
          %505 = vmatprep.subr.mxu0 0.0
          %506 = vmatpush1.msra.mxu0 0.0
          %507 = vmatprep.subr.mxu0 0.0
          %508 = vmatpush1.msra.mxu0 0.0
          %509 = vmatprep.subr.mxu0 0.0
          %510 = vmatpush1.msra.mxu0 0.0
          %511 = vmatprep.subr.mxu0 0.0
          %512 = vmatpush1.msra.mxu0 0.0
          %513 = vmatprep.subr.mxu0 0.0
          %514 = vmatpush1.msra.mxu0 0.0
          %515 = vmatprep.subr.mxu0 0.0
          %516 = vmatpush1.msra.mxu0 0.0
          %517 = vmatprep.subr.mxu0 0.0
          %518 = vmatpush1.msra.mxu0 0.0
          %519 = vmatprep.subr.mxu0 0.0
          %520 = vmatpush1.msra.mxu0 0.0
          %521 = vmatprep.subr.mxu0 0.0
          %522 = vmatpush1.msra.mxu0 0.0
          %523 = vmatprep.subr.mxu0 0.0
          %524 = vmatpush1.msra.mxu0 0.0
          %525 = vmatprep.subr.mxu0 0.0
          %526 = vmatpush1.msra.mxu0 0.0
          %527 = vmatprep.subr.mxu0 0.0
          %528 = vmatpush1.msra.mxu0 0.0
          %529 = vmatprep.subr.mxu0 0.0
          %530 = vmatpush1.msra.mxu0 0.0
          %531 = vmatprep.subr.mxu0 0.0
          %532 = vmatpush1.msra.mxu0 0.0
          %533 = vmatprep.subr.mxu0 0.0
          %534 = vmatpush1.msra.mxu0 0.0
          %535 = vmatprep.mubr.f32.mxu0 0.0
          %v536 = vand.u32 %v407, 4294901760
          %v537 = vsub.f32 %v407, %v536
          %v538 = vand.u32 %v537, 4294901760
          %v539 = vsub.f32 %v537, %v538
          %v540 = vand.u32 %v539, 4294901760
          %541 = vmatmul.mubr.f32.gmra.mrb[0].mxu0 %v540
          %v542 = vpop.f32.mrb[0].mxu0
          %v543 = vadd.f32 0.0, %v542
          %v544 = vpop.f32.mrb[0].mxu0
          %545 = vmatprep.mubr.f32.mxu0 0.0
          %v546 = vand.u32 %v408, 4294901760
          %v547 = vsub.f32 %v408, %v546
          %v548 = vand.u32 %v547, 4294901760
          %v549 = vsub.f32 %v547, %v548
          %v550 = vand.u32 %v549, 4294901760
          %551 = vmatmul.mubr.f32.gmra.mrb[0].mxu0 %v550
          %v552 = vpop.f32.mrb[0].mxu0
          %v553 = vadd.f32 0.0, %v552
          %v554 = vpop.f32.mrb[0].mxu0
          %555 = vmatprep.mubr.f32.mxu0 0.0
          %v556 = vand.u32 %v409, 4294901760
          %v557 = vsub.f32 %v409, %v556
          %v558 = vand.u32 %v557, 4294901760
          %v559 = vsub.f32 %v557, %v558
          %v560 = vand.u32 %v559, 4294901760
          %561 = vmatmul.mubr.f32.gmra.mrb[0].mxu0 %v560
          %v562 = vpop.f32.mrb[0].mxu0
          %v563 = vadd.f32 0.0, %v562
          %v564 = vpop.f32.mrb[0].mxu0
          %565 = vmatprep.mubr.f32.mxu0 0.0
          %v566 = vand.u32 %v410, 4294901760
          %v567 = vsub.f32 %v410, %v566
          %v568 = vand.u32 %v567, 4294901760
          %v569 = vsub.f32 %v567, %v568
          %v570 = vand.u32 %v569, 4294901760
          %571 = vmatmul.mubr.f32.gmra.mrb[0].mxu0 %v570
          %v572 = vpop.f32.mrb[0].mxu0
          %v573 = vadd.f32 0.0, %v572
          %v574 = vpop.f32.mrb[0].mxu0
          %575 = vmatprep.mubr.f32.mxu0 0.0
          %v576 = vand.u32 %v411, 4294901760
          %v577 = vsub.f32 %v411, %v576
          %v578 = vand.u32 %v577, 4294901760
          %v579 = vsub.f32 %v577, %v578
          %v580 = vand.u32 %v579, 4294901760
          %581 = vmatmul.mubr.f32.gmra.mrb[0].mxu0 %v580
          %v582 = vpop.f32.mrb[0].mxu0
          %v583 = vadd.f32 0.0, %v582
          %v584 = vpop.f32.mrb[0].mxu0
          %585 = vmatprep.mubr.f32.mxu0 0.0
          %v586 = vand.u32 %v412, 4294901760
          %v587 = vsub.f32 %v412, %v586
          %v588 = vand.u32 %v587, 4294901760
          %v589 = vsub.f32 %v587, %v588
          %v590 = vand.u32 %v589, 4294901760
          %591 = vmatmul.mubr.f32.gmra.mrb[0].mxu0 %v590
          %v592 = vpop.f32.mrb[0].mxu0
          %v593 = vadd.f32 0.0, %v592
          %v594 = vpop.f32.mrb[0].mxu0
          %595 = vmatprep.mubr.f32.mxu0 0.0
          %v596 = vand.u32 %v413, 4294901760
          %v597 = vsub.f32 %v413, %v596
          %v598 = vand.u32 %v597, 4294901760
          %v599 = vsub.f32 %v597, %v598
          %v600 = vand.u32 %v599, 4294901760
          %601 = vmatmul.mubr.f32.gmra.mrb[0].mxu0 %v600
          %v602 = vpop.f32.mrb[0].mxu0
          %v603 = vadd.f32 0.0, %v602
          %v604 = vpop.f32.mrb[0].mxu0
          %605 = vmatprep.mubr.f32.mxu0 0.0
          %v606 = vand.u32 %v414, 4294901760
          %v607 = vsub.f32 %v414, %v606
          %v608 = vand.u32 %v607, 4294901760
          %v609 = vsub.f32 %v607, %v608
          %v610 = vand.u32 %v609, 4294901760
          %611 = vmatmul.mubr.f32.gmra.mrb[0].mxu0 %v610
          %v612 = vpop.f32.mrb[0].mxu0
          %v613 = vadd.f32 0.0, %v612
          %v614 = vpop.f32.mrb[0].mxu0
          %615 = vmatprep.mubr.f32.mxu0 0.0
          %v616 = vand.u32 %v415, 4294901760
          %v617 = vsub.f32 %v415, %v616
          %v618 = vand.u32 %v617, 4294901760
          %v619 = vsub.f32 %v617, %v618
          %v620 = vand.u32 %v619, 4294901760
          %621 = vmatmul.mubr.f32.gmra.mrb[0].mxu0 %v620
          %v622 = vpop.f32.mrb[0].mxu0
          %v623 = vadd.f32 0.0, %v622
          %v624 = vpop.f32.mrb[0].mxu0
          %625 = vmatprep.mubr.f32.mxu0 0.0
          %v626 = vand.u32 %v416, 4294901760
          %v627 = vsub.f32 %v416, %v626
          %v628 = vand.u32 %v627, 4294901760
          %v629 = vsub.f32 %v627, %v628
          %v630 = vand.u32 %v629, 4294901760
          %631 = vmatmul.mubr.f32.gmra.mrb[0].mxu0 %v630
          %v632 = vpop.f32.mrb[0].mxu0
          %v633 = vadd.f32 0.0, %v632
          %v634 = vpop.f32.mrb[0].mxu0
          %635 = vmatprep.mubr.f32.mxu0 0.0
          %v636 = vand.u32 %v417, 4294901760
          %v637 = vsub.f32 %v417, %v636
          %v638 = vand.u32 %v637, 4294901760
          %v639 = vsub.f32 %v637, %v638
          %v640 = vand.u32 %v639, 4294901760
          %641 = vmatmul.mubr.f32.gmra.mrb[0].mxu0 %v640
          %v642 = vpop.f32.mrb[0].mxu0
          %v643 = vadd.f32 0.0, %v642
          %v644 = vpop.f32.mrb[0].mxu0
          %645 = vmatprep.mubr.f32.mxu0 0.0
          %v646 = vand.u32 %v418, 4294901760
          %v647 = vsub.f32 %v418, %v646
          %v648 = vand.u32 %v647, 4294901760
          %v649 = vsub.f32 %v647, %v648
          %v650 = vand.u32 %v649, 4294901760
          %651 = vmatmul.mubr.f32.gmra.mrb[0].mxu0 %v650
          %v652 = vpop.f32.mrb[0].mxu0
          %v653 = vadd.f32 0.0, %v652
          %v654 = vpop.f32.mrb[0].mxu0
          %655 = vmatprep.mubr.f32.mxu0 0.0
          %v656 = vand.u32 %v419, 4294901760
          %v657 = vsub.f32 %v419, %v656
          %v658 = vand.u32 %v657, 4294901760
          %v659 = vsub.f32 %v657, %v658
          %v660 = vand.u32 %v659, 4294901760
          %661 = vmatmul.mubr.f32.gmra.mrb[0].mxu0 %v660
          %v662 = vpop.f32.mrb[0].mxu0
          %v663 = vadd.f32 0.0, %v662
          %v664 = vpop.f32.mrb[0].mxu0
          %665 = vmatprep.mubr.f32.mxu0 0.0
          %v666 = vand.u32 %v420, 4294901760
          %v667 = vsub.f32 %v420, %v666
          %v668 = vand.u32 %v667, 4294901760
          %v669 = vsub.f32 %v667, %v668
          %v670 = vand.u32 %v669, 4294901760
          %671 = vmatmul.mubr.f32.gmra.mrb[0].mxu0 %v670
          %v672 = vpop.f32.mrb[0].mxu0
          %v673 = vadd.f32 0.0, %v672
          %v674 = vpop.f32.mrb[0].mxu0
          %675 = vmatprep.mubr.f32.mxu0 0.0
          %v676 = vand.u32 %v421, 4294901760
          %v677 = vsub.f32 %v421, %v676
          %v678 = vand.u32 %v677, 4294901760
          %v679 = vsub.f32 %v677, %v678
          %v680 = vand.u32 %v679, 4294901760
          %681 = vmatmul.mubr.f32.gmra.mrb[0].mxu0 %v680
          %v682 = vpop.f32.mrb[0].mxu0
          %v683 = vadd.f32 0.0, %v682
          %v684 = vpop.f32.mrb[0].mxu0
          %685 = vmatprep.mubr.f32.mxu0 0.0
          %v686 = vand.u32 %v422, 4294901760
          %v687 = vsub.f32 %v422, %v686
          %v688 = vand.u32 %v687, 4294901760
          %v689 = vsub.f32 %v687, %v688
          %v690 = vand.u32 %v689, 4294901760
          %691 = vmatmul.mubr.f32.gmra.mrb[0].mxu0 %v690
          %v692 = vpop.f32.mrb[0].mxu0
          %v693 = vadd.f32 0.0, %v692
          %v694 = vpop.f32.mrb[0].mxu0
          %695 = vmatprep.mubr.f32.mxu0 0.0
          %v696 = vand.u32 %v423, 4294901760
          %v697 = vsub.f32 %v423, %v696
          %v698 = vand.u32 %v697, 4294901760
          %v699 = vsub.f32 %v697, %v698
          %v700 = vand.u32 %v699, 4294901760
          %701 = vmatmul.mubr.f32.gmra.mrb[0].mxu0 %v700
          %v702 = vpop.f32.mrb[0].mxu0
          %v703 = vadd.f32 0.0, %v702
          %v704 = vpop.f32.mrb[0].mxu0
          %705 = vmatprep.mubr.f32.mxu0 0.0
          %v706 = vand.u32 %v424, 4294901760
          %v707 = vsub.f32 %v424, %v706
          %v708 = vand.u32 %v707, 4294901760
          %v709 = vsub.f32 %v707, %v708
          %v710 = vand.u32 %v709, 4294901760
          %711 = vmatmul.mubr.f32.gmra.mrb[0].mxu0 %v710
          %v712 = vpop.f32.mrb[0].mxu0
          %v713 = vadd.f32 0.0, %v712
          %v714 = vpop.f32.mrb[0].mxu0
          %715 = vmatprep.mubr.f32.mxu0 0.0
          %v716 = vand.u32 %v425, 4294901760
          %v717 = vsub.f32 %v425, %v716
          %v718 = vand.u32 %v717, 4294901760
          %v719 = vsub.f32 %v717, %v718
          %v720 = vand.u32 %v719, 4294901760
          %721 = vmatmul.mubr.f32.gmra.mrb[0].mxu0 %v720
          %v722 = vpop.f32.mrb[0].mxu0
          %v723 = vadd.f32 0.0, %v722
          %v724 = vpop.f32.mrb[0].mxu0
          %725 = vmatprep.mubr.f32.mxu0 0.0
          %v726 = vand.u32 %v426, 4294901760
          %v727 = vsub.f32 %v426, %v726
          %v728 = vand.u32 %v727, 4294901760
          %v729 = vsub.f32 %v727, %v728
          %v730 = vand.u32 %v729, 4294901760
          %731 = vmatmul.mubr.f32.gmra.mrb[0].mxu0 %v730
          %v732 = vpop.f32.mrb[0].mxu0
          %v733 = vadd.f32 0.0, %v732
          %v734 = vpop.f32.mrb[0].mxu0
          %735 = vmatprep.mubr.f32.mxu0 0.0
          %v736 = vand.u32 %v427, 4294901760
          %v737 = vsub.f32 %v427, %v736
          %v738 = vand.u32 %v737, 4294901760
          %v739 = vsub.f32 %v737, %v738
          %v740 = vand.u32 %v739, 4294901760
          %741 = vmatmul.mubr.f32.gmra.mrb[0].mxu0 %v740
          %v742 = vpop.f32.mrb[0].mxu0
          %v743 = vadd.f32 0.0, %v742
          %v744 = vpop.f32.mrb[0].mxu0
          %745 = vmatprep.mubr.f32.mxu0 0.0
          %v746 = vand.u32 %v428, 4294901760
          %v747 = vsub.f32 %v428, %v746
          %v748 = vand.u32 %v747, 4294901760
          %v749 = vsub.f32 %v747, %v748
          %v750 = vand.u32 %v749, 4294901760
          %751 = vmatmul.mubr.f32.gmra.mrb[0].mxu0 %v750
          %v752 = vpop.f32.mrb[0].mxu0
          %v753 = vadd.f32 0.0, %v752
          %v754 = vpop.f32.mrb[0].mxu0
          %755 = vmatprep.mubr.f32.mxu0 0.0
          %v756 = vand.u32 %v429, 4294901760
          %v757 = vsub.f32 %v429, %v756
          %v758 = vand.u32 %v757, 4294901760
          %v759 = vsub.f32 %v757, %v758
          %v760 = vand.u32 %v759, 4294901760
          %761 = vmatmul.mubr.f32.gmra.mrb[0].mxu0 %v760
          %v762 = vpop.f32.mrb[0].mxu0
          %v763 = vadd.f32 0.0, %v762
          %v764 = vpop.f32.mrb[0].mxu0
          %765 = vmatprep.mubr.f32.mxu0 0.0
          %v766 = vand.u32 %v430, 4294901760
          %v767 = vsub.f32 %v430, %v766
          %v768 = vand.u32 %v767, 4294901760
          %v769 = vsub.f32 %v767, %v768
          %v770 = vand.u32 %v769, 4294901760
          %771 = vmatmul.mubr.f32.gmra.mrb[0].mxu0 %v770
          %v772 = vpop.f32.mrb[0].mxu0
          %v773 = vadd.f32 0.0, %v772
          %v774 = vpop.f32.mrb[0].mxu0
          %775 = vmatprep.mubr.f32.mxu0 0.0
          %v776 = vand.u32 %v431, 4294901760
          %v777 = vsub.f32 %v431, %v776
          %v778 = vand.u32 %v777, 4294901760
          %v779 = vsub.f32 %v777, %v778
          %v780 = vand.u32 %v779, 4294901760
          %781 = vmatmul.mubr.f32.gmra.mrb[0].mxu0 %v780
          %v782 = vpop.f32.mrb[0].mxu0
          %v783 = vadd.f32 0.0, %v782
          %v784 = vpop.f32.mrb[0].mxu0
          %785 = vmatprep.mubr.f32.mxu0 0.0
          %v786 = vand.u32 %v432, 4294901760
          %v787 = vsub.f32 %v432, %v786
          %v788 = vand.u32 %v787, 4294901760
          %v789 = vsub.f32 %v787, %v788
          %v790 = vand.u32 %v789, 4294901760
          %791 = vmatmul.mubr.f32.gmra.mrb[0].mxu0 %v790
          %v792 = vpop.f32.mrb[0].mxu0
          %v793 = vadd.f32 0.0, %v792
          %v794 = vpop.f32.mrb[0].mxu0
          %795 = vmatprep.mubr.f32.mxu0 0.0
          %v796 = vand.u32 %v433, 4294901760
          %v797 = vsub.f32 %v433, %v796
          %v798 = vand.u32 %v797, 4294901760
          %v799 = vsub.f32 %v797, %v798
          %v800 = vand.u32 %v799, 4294901760
          %801 = vmatmul.mubr.f32.gmra.mrb[0].mxu0 %v800
          %v802 = vpop.f32.mrb[0].mxu0
          %v803 = vadd.f32 0.0, %v802
          %v804 = vpop.f32.mrb[0].mxu0
          %805 = vmatprep.mubr.f32.mxu0 0.0
          %v806 = vand.u32 %v434, 4294901760
          %v807 = vsub.f32 %v434, %v806
          %v808 = vand.u32 %v807, 4294901760
          %v809 = vsub.f32 %v807, %v808
          %v810 = vand.u32 %v809, 4294901760
          %811 = vmatmul.mubr.f32.gmra.mrb[0].mxu0 %v810
          %v812 = vpop.f32.mrb[0].mxu0
          %v813 = vadd.f32 0.0, %v812
          %v814 = vpop.f32.mrb[0].mxu0
          %815 = vmatprep.mubr.f32.mxu0 0.0
          %v816 = vand.u32 %v435, 4294901760
          %v817 = vsub.f32 %v435, %v816
          %v818 = vand.u32 %v817, 4294901760
          %v819 = vsub.f32 %v817, %v818
          %v820 = vand.u32 %v819, 4294901760
          %821 = vmatmul.mubr.f32.gmra.mrb[0].mxu0 %v820
          %v822 = vpop.f32.mrb[0].mxu0
          %v823 = vadd.f32 0.0, %v822
          %v824 = vpop.f32.mrb[0].mxu0
          %825 = vmatprep.mubr.f32.mxu0 0.0
          %v826 = vand.u32 %v436, 4294901760
          %v827 = vsub.f32 %v436, %v826
          %v828 = vand.u32 %v827, 4294901760
          %v829 = vsub.f32 %v827, %v828
          %v830 = vand.u32 %v829, 4294901760
          %831 = vmatmul.mubr.f32.gmra.mrb[0].mxu0 %v830
          %v832 = vpop.f32.mrb[0].mxu0
          %v833 = vadd.f32 0.0, %v832
          %v834 = vpop.f32.mrb[0].mxu0
          %835 = vmatprep.mubr.f32.mxu0 0.0
          %v836 = vand.u32 %v437, 4294901760
          %v837 = vsub.f32 %v437, %v836
          %v838 = vand.u32 %v837, 4294901760
          %v839 = vsub.f32 %v837, %v838
          %v840 = vand.u32 %v839, 4294901760
          %841 = vmatmul.mubr.f32.gmra.mrb[0].mxu0 %v840
          %v842 = vpop.f32.mrb[0].mxu0
          %v843 = vadd.f32 0.0, %v842
          %v844 = vpop.f32.mrb[0].mxu0
          %845 = vmatprep.mubr.f32.mxu0 0.0
          %v846 = vand.u32 %v438, 4294901760
          %v847 = vsub.f32 %v438, %v846
          %v848 = vand.u32 %v847, 4294901760
          %v849 = vsub.f32 %v847, %v848
          %v850 = vand.u32 %v849, 4294901760
          %851 = vmatmul.mubr.f32.gmra.mrb[0].mxu0 %v850
          %v852 = vpop.f32.mrb[0].mxu0
          %v853 = vadd.f32 0.0, %v852
          %v854 = vpop.f32.mrb[0].mxu0
          %855 = vdwg.mxu0
          %856 = vmatprep.subr.mxu0 0.0
          %v857 = vand.u32 %v439, 4294901760
          %v858 = vsub.f32 %v439, %v857
          %v859 = vand.u32 %v858, 4294901760
          %v860 = vsub.f32 %v858, %v859
          %v861 = vand.u32 %v860, 4294901760
          %862 = vmatpush1.msra.mxu0 %v861
          %863 = vmatprep.subr.mxu0 0.0
          %v864 = vand.u32 %v440, 4294901760
          %v865 = vsub.f32 %v440, %v864
          %v866 = vand.u32 %v865, 4294901760
          %v867 = vsub.f32 %v865, %v866
          %v868 = vand.u32 %v867, 4294901760
          %869 = vmatpush1.msra.mxu0 %v868
          %870 = vmatprep.subr.mxu0 0.0
          %v871 = vand.u32 %v441, 4294901760
          %v872 = vsub.f32 %v441, %v871
          %v873 = vand.u32 %v872, 4294901760
          %v874 = vsub.f32 %v872, %v873
          %v875 = vand.u32 %v874, 4294901760
          %876 = vmatpush1.msra.mxu0 %v875
          %877 = vmatprep.subr.mxu0 0.0
          %v878 = vand.u32 %v442, 4294901760
          %v879 = vsub.f32 %v442, %v878
          %v880 = vand.u32 %v879, 4294901760
          %v881 = vsub.f32 %v879, %v880
          %v882 = vand.u32 %v881, 4294901760
          %883 = vmatpush1.msra.mxu0 %v882
          %884 = vmatprep.subr.mxu0 0.0
          %v885 = vand.u32 %v443, 4294901760
          %v886 = vsub.f32 %v443, %v885
          %v887 = vand.u32 %v886, 4294901760
          %v888 = vsub.f32 %v886, %v887
          %v889 = vand.u32 %v888, 4294901760
          %890 = vmatpush1.msra.mxu0 %v889
          %891 = vmatprep.subr.mxu0 0.0
          %v892 = vand.u32 %v444, 4294901760
          %v893 = vsub.f32 %v444, %v892
          %v894 = vand.u32 %v893, 4294901760
          %v895 = vsub.f32 %v893, %v894
          %v896 = vand.u32 %v895, 4294901760
          %897 = vmatpush1.msra.mxu0 %v896
          %898 = vmatprep.subr.mxu0 0.0
          %v899 = vand.u32 %v445, 4294901760
          %v900 = vsub.f32 %v445, %v899
          %v901 = vand.u32 %v900, 4294901760
          %v902 = vsub.f32 %v900, %v901
          %v903 = vand.u32 %v902, 4294901760
          %904 = vmatpush1.msra.mxu0 %v903
          %905 = vmatprep.subr.mxu0 0.0
          %v906 = vand.u32 %v446, 4294901760
          %v907 = vsub.f32 %v446, %v906
          %v908 = vand.u32 %v907, 4294901760
          %v909 = vsub.f32 %v907, %v908
          %v910 = vand.u32 %v909, 4294901760
          %911 = vmatpush1.msra.mxu0 %v910
          %912 = vmatprep.subr.mxu0 0.0
          %v913 = vand.u32 %v447, 4294901760
          %v914 = vsub.f32 %v447, %v913
          %v915 = vand.u32 %v914, 4294901760
          %v916 = vsub.f32 %v914, %v915
          %v917 = vand.u32 %v916, 4294901760
          %918 = vmatpush1.msra.mxu0 %v917
          %919 = vmatprep.subr.mxu0 0.0
          %v920 = vand.u32 %v448, 4294901760
          %v921 = vsub.f32 %v448, %v920
          %v922 = vand.u32 %v921, 4294901760
          %v923 = vsub.f32 %v921, %v922
          %v924 = vand.u32 %v923, 4294901760
          %925 = vmatpush1.msra.mxu0 %v924
          %926 = vmatprep.subr.mxu0 0.0
          %v927 = vand.u32 %v449, 4294901760
          %v928 = vsub.f32 %v449, %v927
          %v929 = vand.u32 %v928, 4294901760
          %v930 = vsub.f32 %v928, %v929
          %v931 = vand.u32 %v930, 4294901760
          %932 = vmatpush1.msra.mxu0 %v931
          %933 = vmatprep.subr.mxu0 0.0
          %v934 = vand.u32 %v450, 4294901760
          %v935 = vsub.f32 %v450, %v934
          %v936 = vand.u32 %v935, 4294901760
          %v937 = vsub.f32 %v935, %v936
          %v938 = vand.u32 %v937, 4294901760
          %939 = vmatpush1.msra.mxu0 %v938
          %940 = vmatprep.subr.mxu0 0.0
          %v941 = vand.u32 %v451, 4294901760
          %v942 = vsub.f32 %v451, %v941
          %v943 = vand.u32 %v942, 4294901760
          %v944 = vsub.f32 %v942, %v943
          %v945 = vand.u32 %v944, 4294901760
          %946 = vmatpush1.msra.mxu0 %v945
          %947 = vmatprep.subr.mxu0 0.0
          %v948 = vand.u32 %v452, 4294901760
          %v949 = vsub.f32 %v452, %v948
          %v950 = vand.u32 %v949, 4294901760
          %v951 = vsub.f32 %v949, %v950
          %v952 = vand.u32 %v951, 4294901760
          %953 = vmatpush1.msra.mxu0 %v952
          %954 = vmatprep.subr.mxu0 0.0
          %v955 = vand.u32 %v453, 4294901760
          %v956 = vsub.f32 %v453, %v955
          %v957 = vand.u32 %v956, 4294901760
          %v958 = vsub.f32 %v956, %v957
          %v959 = vand.u32 %v958, 4294901760
          %960 = vmatpush1.msra.mxu0 %v959
          %961 = vmatprep.subr.mxu0 0.0
          %v962 = vand.u32 %v454, 4294901760
          %v963 = vsub.f32 %v454, %v962
          %v964 = vand.u32 %v963, 4294901760
          %v965 = vsub.f32 %v963, %v964
          %v966 = vand.u32 %v965, 4294901760
          %967 = vmatpush1.msra.mxu0 %v966
          %968 = vmatprep.subr.mxu0 0.0
          %969 = vmatpush1.msra.mxu0 0.0
          %970 = vmatprep.subr.mxu0 0.0
          %971 = vmatpush1.msra.mxu0 0.0
          %972 = vmatprep.subr.mxu0 0.0
          %973 = vmatpush1.msra.mxu0 0.0
          %974 = vmatprep.subr.mxu0 0.0
          %975 = vmatpush1.msra.mxu0 0.0
          %976 = vmatprep.subr.mxu0 0.0
          %977 = vmatpush1.msra.mxu0 0.0
          %978 = vmatprep.subr.mxu0 0.0
          %979 = vmatpush1.msra.mxu0 0.0
          %980 = vmatprep.subr.mxu0 0.0
          %981 = vmatpush1.msra.mxu0 0.0
          %982 = vmatprep.subr.mxu0 0.0
          %983 = vmatpush1.msra.mxu0 0.0
          %984 = vmatprep.subr.mxu0 0.0
          %985 = vmatpush1.msra.mxu0 0.0
          %986 = vmatprep.subr.mxu0 0.0
          %987 = vmatpush1.msra.mxu0 0.0
          %988 = vmatprep.subr.mxu0 0.0
          %989 = vmatpush1.msra.mxu0 0.0
          %990 = vmatprep.subr.mxu0 0.0
          %991 = vmatpush1.msra.mxu0 0.0
          %992 = vmatprep.subr.mxu0 0.0
          %993 = vmatpush1.msra.mxu0 0.0
          %994 = vmatprep.subr.mxu0 0.0
          %995 = vmatpush1.msra.mxu0 0.0
          %996 = vmatprep.subr.mxu0 0.0
          %997 = vmatpush1.msra.mxu0 0.0
          %998 = vmatprep.subr.mxu0 0.0
          %999 = vmatpush1.msra.mxu0 0.0
          %1000 = vmatprep.mubr.f32.mxu0 0.0
          %v1001 = vand.u32 %v407, 4294901760
          %1002 = vmatmul.mubr.f32.gmra.mrb[0].mxu0 %v1001
          %v1003 = vpop.f32.mrb[0].mxu0
          %v1004 = vadd.f32 %v543, %v1003
          %v1005 = vpop.f32.mrb[0].mxu0
          %1006 = vmatprep.mubr.f32.mxu0 0.0
          %v1007 = vand.u32 %v408, 4294901760
          %1008 = vmatmul.mubr.f32.gmra.mrb[0].mxu0 %v1007
          %v1009 = vpop.f32.mrb[0].mxu0
          %v1010 = vadd.f32 %v553, %v1009
          %v1011 = vpop.f32.mrb[0].mxu0
          %1012 = vmatprep.mubr.f32.mxu0 0.0
          %v1013 = vand.u32 %v409, 4294901760
          %1014 = vmatmul.mubr.f32.gmra.mrb[0].mxu0 %v1013
          %v1015 = vpop.f32.mrb[0].mxu0
          %v1016 = vadd.f32 %v563, %v1015
          %v1017 = vpop.f32.mrb[0].mxu0
          %1018 = vmatprep.mubr.f32.mxu0 0.0
          %v1019 = vand.u32 %v410, 4294901760
          %1020 = vmatmul.mubr.f32.gmra.mrb[0].mxu0 %v1019
          %v1021 = vpop.f32.mrb[0].mxu0
          %v1022 = vadd.f32 %v573, %v1021
          %v1023 = vpop.f32.mrb[0].mxu0
          %1024 = vmatprep.mubr.f32.mxu0 0.0
          %v1025 = vand.u32 %v411, 4294901760
          %1026 = vmatmul.mubr.f32.gmra.mrb[0].mxu0 %v1025
          %v1027 = vpop.f32.mrb[0].mxu0
          %v1028 = vadd.f32 %v583, %v1027
          %v1029 = vpop.f32.mrb[0].mxu0
          %1030 = vmatprep.mubr.f32.mxu0 0.0
          %v1031 = vand.u32 %v412, 4294901760
          %1032 = vmatmul.mubr.f32.gmra.mrb[0].mxu0 %v1031
          %v1033 = vpop.f32.mrb[0].mxu0
          %v1034 = vadd.f32 %v593, %v1033
          %v1035 = vpop.f32.mrb[0].mxu0
          %1036 = vmatprep.mubr.f32.mxu0 0.0
          %v1037 = vand.u32 %v413, 4294901760
          %1038 = vmatmul.mubr.f32.gmra.mrb[0].mxu0 %v1037
          %v1039 = vpop.f32.mrb[0].mxu0
          %v1040 = vadd.f32 %v603, %v1039
          %v1041 = vpop.f32.mrb[0].mxu0
          %1042 = vmatprep.mubr.f32.mxu0 0.0
          %v1043 = vand.u32 %v414, 4294901760
          %1044 = vmatmul.mubr.f32.gmra.mrb[0].mxu0 %v1043
          %v1045 = vpop.f32.mrb[0].mxu0
          %v1046 = vadd.f32 %v613, %v1045
          %v1047 = vpop.f32.mrb[0].mxu0
          %1048 = vmatprep.mubr.f32.mxu0 0.0
          %v1049 = vand.u32 %v415, 4294901760
          %1050 = vmatmul.mubr.f32.gmra.mrb[0].mxu0 %v1049
          %v1051 = vpop.f32.mrb[0].mxu0
          %v1052 = vadd.f32 %v623, %v1051
          %v1053 = vpop.f32.mrb[0].mxu0
          %1054 = vmatprep.mubr.f32.mxu0 0.0
          %v1055 = vand.u32 %v416, 4294901760
          %1056 = vmatmul.mubr.f32.gmra.mrb[0].mxu0 %v1055
          %v1057 = vpop.f32.mrb[0].mxu0
          %v1058 = vadd.f32 %v633, %v1057
          %v1059 = vpop.f32.mrb[0].mxu0
          %1060 = vmatprep.mubr.f32.mxu0 0.0
          %v1061 = vand.u32 %v417, 4294901760
          %1062 = vmatmul.mubr.f32.gmra.mrb[0].mxu0 %v1061
          %v1063 = vpop.f32.mrb[0].mxu0
          %v1064 = vadd.f32 %v643, %v1063
          %v1065 = vpop.f32.mrb[0].mxu0
          %1066 = vmatprep.mubr.f32.mxu0 0.0
          %v1067 = vand.u32 %v418, 4294901760
          %1068 = vmatmul.mubr.f32.gmra.mrb[0].mxu0 %v1067
          %v1069 = vpop.f32.mrb[0].mxu0
          %v1070 = vadd.f32 %v653, %v1069
          %v1071 = vpop.f32.mrb[0].mxu0
          %1072 = vmatprep.mubr.f32.mxu0 0.0
          %v1073 = vand.u32 %v419, 4294901760
          %1074 = vmatmul.mubr.f32.gmra.mrb[0].mxu0 %v1073
          %v1075 = vpop.f32.mrb[0].mxu0
          %v1076 = vadd.f32 %v663, %v1075
          %v1077 = vpop.f32.mrb[0].mxu0
          %1078 = vmatprep.mubr.f32.mxu0 0.0
          %v1079 = vand.u32 %v420, 4294901760
          %1080 = vmatmul.mubr.f32.gmra.mrb[0].mxu0 %v1079
          %v1081 = vpop.f32.mrb[0].mxu0
          %v1082 = vadd.f32 %v673, %v1081
          %v1083 = vpop.f32.mrb[0].mxu0
          %1084 = vmatprep.mubr.f32.mxu0 0.0
          %v1085 = vand.u32 %v421, 4294901760
          %1086 = vmatmul.mubr.f32.gmra.mrb[0].mxu0 %v1085
          %v1087 = vpop.f32.mrb[0].mxu0
          %v1088 = vadd.f32 %v683, %v1087
          %v1089 = vpop.f32.mrb[0].mxu0
          %1090 = vmatprep.mubr.f32.mxu0 0.0
          %v1091 = vand.u32 %v422, 4294901760
          %1092 = vmatmul.mubr.f32.gmra.mrb[0].mxu0 %v1091
          %v1093 = vpop.f32.mrb[0].mxu0
          %v1094 = vadd.f32 %v693, %v1093
          %v1095 = vpop.f32.mrb[0].mxu0
          %1096 = vmatprep.mubr.f32.mxu0 0.0
          %v1097 = vand.u32 %v423, 4294901760
          %1098 = vmatmul.mubr.f32.gmra.mrb[0].mxu0 %v1097
          %v1099 = vpop.f32.mrb[0].mxu0
          %v1100 = vadd.f32 %v703, %v1099
          %v1101 = vpop.f32.mrb[0].mxu0
          %1102 = vmatprep.mubr.f32.mxu0 0.0
          %v1103 = vand.u32 %v424, 4294901760
          %1104 = vmatmul.mubr.f32.gmra.mrb[0].mxu0 %v1103
          %v1105 = vpop.f32.mrb[0].mxu0
          %v1106 = vadd.f32 %v713, %v1105
          %v1107 = vpop.f32.mrb[0].mxu0
          %1108 = vmatprep.mubr.f32.mxu0 0.0
          %v1109 = vand.u32 %v425, 4294901760
          %1110 = vmatmul.mubr.f32.gmra.mrb[0].mxu0 %v1109
          %v1111 = vpop.f32.mrb[0].mxu0
          %v1112 = vadd.f32 %v723, %v1111
          %v1113 = vpop.f32.mrb[0].mxu0
          %1114 = vmatprep.mubr.f32.mxu0 0.0
          %v1115 = vand.u32 %v426, 4294901760
          %1116 = vmatmul.mubr.f32.gmra.mrb[0].mxu0 %v1115
          %v1117 = vpop.f32.mrb[0].mxu0
          %v1118 = vadd.f32 %v733, %v1117
          %v1119 = vpop.f32.mrb[0].mxu0
          %1120 = vmatprep.mubr.f32.mxu0 0.0
          %v1121 = vand.u32 %v427, 4294901760
          %1122 = vmatmul.mubr.f32.gmra.mrb[0].mxu0 %v1121
          %v1123 = vpop.f32.mrb[0].mxu0
          %v1124 = vadd.f32 %v743, %v1123
          %v1125 = vpop.f32.mrb[0].mxu0
          %1126 = vmatprep.mubr.f32.mxu0 0.0
          %v1127 = vand.u32 %v428, 4294901760
          %1128 = vmatmul.mubr.f32.gmra.mrb[0].mxu0 %v1127
          %v1129 = vpop.f32.mrb[0].mxu0
          %v1130 = vadd.f32 %v753, %v1129
          %v1131 = vpop.f32.mrb[0].mxu0
          %1132 = vmatprep.mubr.f32.mxu0 0.0
          %v1133 = vand.u32 %v429, 4294901760
          %1134 = vmatmul.mubr.f32.gmra.mrb[0].mxu0 %v1133
          %v1135 = vpop.f32.mrb[0].mxu0
          %v1136 = vadd.f32 %v763, %v1135
          %v1137 = vpop.f32.mrb[0].mxu0
          %1138 = vmatprep.mubr.f32.mxu0 0.0
          %v1139 = vand.u32 %v430, 4294901760
          %1140 = vmatmul.mubr.f32.gmra.mrb[0].mxu0 %v1139
          %v1141 = vpop.f32.mrb[0].mxu0
          %v1142 = vadd.f32 %v773, %v1141
          %v1143 = vpop.f32.mrb[0].mxu0
          %1144 = vmatprep.mubr.f32.mxu0 0.0
          %v1145 = vand.u32 %v431, 4294901760
          %1146 = vmatmul.mubr.f32.gmra.mrb[0].mxu0 %v1145
          %v1147 = vpop.f32.mrb[0].mxu0
          %v1148 = vadd.f32 %v783, %v1147
          %v1149 = vpop.f32.mrb[0].mxu0
          %1150 = vmatprep.mubr.f32.mxu0 0.0
          %v1151 = vand.u32 %v432, 4294901760
          %1152 = vmatmul.mubr.f32.gmra.mrb[0].mxu0 %v1151
          %v1153 = vpop.f32.mrb[0].mxu0
          %v1154 = vadd.f32 %v793, %v1153
          %v1155 = vpop.f32.mrb[0].mxu0
          %1156 = vmatprep.mubr.f32.mxu0 0.0
          %v1157 = vand.u32 %v433, 4294901760
          %1158 = vmatmul.mubr.f32.gmra.mrb[0].mxu0 %v1157
          %v1159 = vpop.f32.mrb[0].mxu0
          %v1160 = vadd.f32 %v803, %v1159
          %v1161 = vpop.f32.mrb[0].mxu0
          %1162 = vmatprep.mubr.f32.mxu0 0.0
          %v1163 = vand.u32 %v434, 4294901760
          %1164 = vmatmul.mubr.f32.gmra.mrb[0].mxu0 %v1163
          %v1165 = vpop.f32.mrb[0].mxu0
          %v1166 = vadd.f32 %v813, %v1165
          %v1167 = vpop.f32.mrb[0].mxu0
          %1168 = vmatprep.mubr.f32.mxu0 0.0
          %v1169 = vand.u32 %v435, 4294901760
          %1170 = vmatmul.mubr.f32.gmra.mrb[0].mxu0 %v1169
          %v1171 = vpop.f32.mrb[0].mxu0
          %v1172 = vadd.f32 %v823, %v1171
          %v1173 = vpop.f32.mrb[0].mxu0
          %1174 = vmatprep.mubr.f32.mxu0 0.0
          %v1175 = vand.u32 %v436, 4294901760
          %1176 = vmatmul.mubr.f32.gmra.mrb[0].mxu0 %v1175
          %v1177 = vpop.f32.mrb[0].mxu0
          %v1178 = vadd.f32 %v833, %v1177
          %v1179 = vpop.f32.mrb[0].mxu0
          %1180 = vmatprep.mubr.f32.mxu0 0.0
          %v1181 = vand.u32 %v437, 4294901760
          %1182 = vmatmul.mubr.f32.gmra.mrb[0].mxu0 %v1181
          %v1183 = vpop.f32.mrb[0].mxu0
          %v1184 = vadd.f32 %v843, %v1183
          %v1185 = vpop.f32.mrb[0].mxu0
          %1186 = vmatprep.mubr.f32.mxu0 0.0
          %v1187 = vand.u32 %v438, 4294901760
          %1188 = vmatmul.mubr.f32.gmra.mrb[0].mxu0 %v1187
          %v1189 = vpop.f32.mrb[0].mxu0
          %v1190 = vadd.f32 %v853, %v1189
          %v1191 = vpop.f32.mrb[0].mxu0
          %1192 = vdwg.mxu0
          %1193 = vmatprep.subr.mxu0 0.0
          %v1194 = vand.u32 %v439, 4294901760
          %v1195 = vsub.f32 %v439, %v1194
          %1196 = vmatpush1.msra.mxu0 %v1195
          %1197 = vmatprep.subr.mxu0 0.0
          %v1198 = vand.u32 %v440, 4294901760
          %v1199 = vsub.f32 %v440, %v1198
          %1200 = vmatpush1.msra.mxu0 %v1199
          %1201 = vmatprep.subr.mxu0 0.0
          %v1202 = vand.u32 %v441, 4294901760
          %v1203 = vsub.f32 %v441, %v1202
          %1204 = vmatpush1.msra.mxu0 %v1203
          %1205 = vmatprep.subr.mxu0 0.0
          %v1206 = vand.u32 %v442, 4294901760
          %v1207 = vsub.f32 %v442, %v1206
          %1208 = vmatpush1.msra.mxu0 %v1207
          %1209 = vmatprep.subr.mxu0 0.0
          %v1210 = vand.u32 %v443, 4294901760
          %v1211 = vsub.f32 %v443, %v1210
          %1212 = vmatpush1.msra.mxu0 %v1211
          %1213 = vmatprep.subr.mxu0 0.0
          %v1214 = vand.u32 %v444, 4294901760
          %v1215 = vsub.f32 %v444, %v1214
          %1216 = vmatpush1.msra.mxu0 %v1215
          %1217 = vmatprep.subr.mxu0 0.0
          %v1218 = vand.u32 %v445, 4294901760
          %v1219 = vsub.f32 %v445, %v1218
          %1220 = vmatpush1.msra.mxu0 %v1219
          %1221 = vmatprep.subr.mxu0 0.0
          %v1222 = vand.u32 %v446, 4294901760
          %v1223 = vsub.f32 %v446, %v1222
          %1224 = vmatpush1.msra.mxu0 %v1223
          %1225 = vmatprep.subr.mxu0 0.0
          %v1226 = vand.u32 %v447, 4294901760
          %v1227 = vsub.f32 %v447, %v1226
          %1228 = vmatpush1.msra.mxu0 %v1227
          %1229 = vmatprep.subr.mxu0 0.0
          %v1230 = vand.u32 %v448, 4294901760
          %v1231 = vsub.f32 %v448, %v1230
          %1232 = vmatpush1.msra.mxu0 %v1231
          %1233 = vmatprep.subr.mxu0 0.0
          %v1234 = vand.u32 %v449, 4294901760
          %v1235 = vsub.f32 %v449, %v1234
          %1236 = vmatpush1.msra.mxu0 %v1235
          %1237 = vmatprep.subr.mxu0 0.0
          %v1238 = vand.u32 %v450, 4294901760
          %v1239 = vsub.f32 %v450, %v1238
          %1240 = vmatpush1.msra.mxu0 %v1239
          %1241 = vmatprep.subr.mxu0 0.0
          %v1242 = vand.u32 %v451, 4294901760
          %v1243 = vsub.f32 %v451, %v1242
          %1244 = vmatpush1.msra.mxu0 %v1243
          %1245 = vmatprep.subr.mxu0 0.0
          %v1246 = vand.u32 %v452, 4294901760
          %v1247 = vsub.f32 %v452, %v1246
          %1248 = vmatpush1.msra.mxu0 %v1247
          %1249 = vmatprep.subr.mxu0 0.0
          %v1250 = vand.u32 %v453, 4294901760
          %v1251 = vsub.f32 %v453, %v1250
          %1252 = vmatpush1.msra.mxu0 %v1251
          %1253 = vmatprep.subr.mxu0 0.0
          %v1254 = vand.u32 %v454, 4294901760
          %v1255 = vsub.f32 %v454, %v1254
          %1256 = vmatpush1.msra.mxu0 %v1255
          %1257 = vmatprep.subr.mxu0 0.0
          %1258 = vmatpush1.msra.mxu0 0.0
          %1259 = vmatprep.subr.mxu0 0.0
          %1260 = vmatpush1.msra.mxu0 0.0
          %1261 = vmatprep.subr.mxu0 0.0
          %1262 = vmatpush1.msra.mxu0 0.0
          %1263 = vmatprep.subr.mxu0 0.0
          %1264 = vmatpush1.msra.mxu0 0.0
          %1265 = vmatprep.subr.mxu0 0.0
          %1266 = vmatpush1.msra.mxu0 0.0
          %1267 = vmatprep.subr.mxu0 0.0
          %1268 = vmatpush1.msra.mxu0 0.0
          %1269 = vmatprep.subr.mxu0 0.0
          %1270 = vmatpush1.msra.mxu0 0.0
          %1271 = vmatprep.subr.mxu0 0.0
          %1272 = vmatpush1.msra.mxu0 0.0
          %1273 = vmatprep.subr.mxu0 0.0
          %1274 = vmatpush1.msra.mxu0 0.0
          %1275 = vmatprep.subr.mxu0 0.0
          %1276 = vmatpush1.msra.mxu0 0.0
          %1277 = vmatprep.subr.mxu0 0.0
          %1278 = vmatpush1.msra.mxu0 0.0
          %1279 = vmatprep.subr.mxu0 0.0
          %1280 = vmatpush1.msra.mxu0 0.0
          %1281 = vmatprep.subr.mxu0 0.0
          %1282 = vmatpush1.msra.mxu0 0.0
          %1283 = vmatprep.subr.mxu0 0.0
          %1284 = vmatpush1.msra.mxu0 0.0
          %1285 = vmatprep.subr.mxu0 0.0
          %1286 = vmatpush1.msra.mxu0 0.0
          %1287 = vmatprep.subr.mxu0 0.0
          %1288 = vmatpush1.msra.mxu0 0.0
          %1289 = vmatprep.mubr.f32.mxu0 0.0
          %v1290 = vand.u32 %v407, 4294901760
          %v1291 = vsub.f32 %v407, %v1290
          %1292 = vmatmul.mubr.f32.gmra.mrb[0].mxu0 %v1291
          %v1293 = vpop.f32.mrb[0].mxu0
          %v1294 = vadd.f32 %v1004, %v1293
          %v1295 = vpop.f32.mrb[0].mxu0
          %1296 = vmatprep.mubr.f32.mxu0 0.0
          %v1297 = vand.u32 %v408, 4294901760
          %v1298 = vsub.f32 %v408, %v1297
          %1299 = vmatmul.mubr.f32.gmra.mrb[0].mxu0 %v1298
          %v1300 = vpop.f32.mrb[0].mxu0
          %v1301 = vadd.f32 %v1010, %v1300
          %v1302 = vpop.f32.mrb[0].mxu0
          %1303 = vmatprep.mubr.f32.mxu0 0.0
          %v1304 = vand.u32 %v409, 4294901760
          %v1305 = vsub.f32 %v409, %v1304
          %1306 = vmatmul.mubr.f32.gmra.mrb[0].mxu0 %v1305
          %v1307 = vpop.f32.mrb[0].mxu0
          %v1308 = vadd.f32 %v1016, %v1307
          %v1309 = vpop.f32.mrb[0].mxu0
          %1310 = vmatprep.mubr.f32.mxu0 0.0
          %v1311 = vand.u32 %v410, 4294901760
          %v1312 = vsub.f32 %v410, %v1311
          %1313 = vmatmul.mubr.f32.gmra.mrb[0].mxu0 %v1312
          %v1314 = vpop.f32.mrb[0].mxu0
          %v1315 = vadd.f32 %v1022, %v1314
          %v1316 = vpop.f32.mrb[0].mxu0
          %1317 = vmatprep.mubr.f32.mxu0 0.0
          %v1318 = vand.u32 %v411, 4294901760
          %v1319 = vsub.f32 %v411, %v1318
          %1320 = vmatmul.mubr.f32.gmra.mrb[0].mxu0 %v1319
          %v1321 = vpop.f32.mrb[0].mxu0
          %v1322 = vadd.f32 %v1028, %v1321
          %v1323 = vpop.f32.mrb[0].mxu0
          %1324 = vmatprep.mubr.f32.mxu0 0.0
          %v1325 = vand.u32 %v412, 4294901760
          %v1326 = vsub.f32 %v412, %v1325
          %1327 = vmatmul.mubr.f32.gmra.mrb[0].mxu0 %v1326
          %v1328 = vpop.f32.mrb[0].mxu0
          %v1329 = vadd.f32 %v1034, %v1328
          %v1330 = vpop.f32.mrb[0].mxu0
          %1331 = vmatprep.mubr.f32.mxu0 0.0
          %v1332 = vand.u32 %v413, 4294901760
          %v1333 = vsub.f32 %v413, %v1332
          %1334 = vmatmul.mubr.f32.gmra.mrb[0].mxu0 %v1333
          %v1335 = vpop.f32.mrb[0].mxu0
          %v1336 = vadd.f32 %v1040, %v1335
          %v1337 = vpop.f32.mrb[0].mxu0
          %1338 = vmatprep.mubr.f32.mxu0 0.0
          %v1339 = vand.u32 %v414, 4294901760
          %v1340 = vsub.f32 %v414, %v1339
          %1341 = vmatmul.mubr.f32.gmra.mrb[0].mxu0 %v1340
          %v1342 = vpop.f32.mrb[0].mxu0
          %v1343 = vadd.f32 %v1046, %v1342
          %v1344 = vpop.f32.mrb[0].mxu0
          %1345 = vmatprep.mubr.f32.mxu0 0.0
          %v1346 = vand.u32 %v415, 4294901760
          %v1347 = vsub.f32 %v415, %v1346
          %1348 = vmatmul.mubr.f32.gmra.mrb[0].mxu0 %v1347
          %v1349 = vpop.f32.mrb[0].mxu0
          %v1350 = vadd.f32 %v1052, %v1349
          %v1351 = vpop.f32.mrb[0].mxu0
          %1352 = vmatprep.mubr.f32.mxu0 0.0
          %v1353 = vand.u32 %v416, 4294901760
          %v1354 = vsub.f32 %v416, %v1353
          %1355 = vmatmul.mubr.f32.gmra.mrb[0].mxu0 %v1354
          %v1356 = vpop.f32.mrb[0].mxu0
          %v1357 = vadd.f32 %v1058, %v1356
          %v1358 = vpop.f32.mrb[0].mxu0
          %1359 = vmatprep.mubr.f32.mxu0 0.0
          %v1360 = vand.u32 %v417, 4294901760
          %v1361 = vsub.f32 %v417, %v1360
          %1362 = vmatmul.mubr.f32.gmra.mrb[0].mxu0 %v1361
          %v1363 = vpop.f32.mrb[0].mxu0
          %v1364 = vadd.f32 %v1064, %v1363
          %v1365 = vpop.f32.mrb[0].mxu0
          %1366 = vmatprep.mubr.f32.mxu0 0.0
          %v1367 = vand.u32 %v418, 4294901760
          %v1368 = vsub.f32 %v418, %v1367
          %1369 = vmatmul.mubr.f32.gmra.mrb[0].mxu0 %v1368
          %v1370 = vpop.f32.mrb[0].mxu0
          %v1371 = vadd.f32 %v1070, %v1370
          %v1372 = vpop.f32.mrb[0].mxu0
          %1373 = vmatprep.mubr.f32.mxu0 0.0
          %v1374 = vand.u32 %v419, 4294901760
          %v1375 = vsub.f32 %v419, %v1374
          %1376 = vmatmul.mubr.f32.gmra.mrb[0].mxu0 %v1375
          %v1377 = vpop.f32.mrb[0].mxu0
          %v1378 = vadd.f32 %v1076, %v1377
          %v1379 = vpop.f32.mrb[0].mxu0
          %1380 = vmatprep.mubr.f32.mxu0 0.0
          %v1381 = vand.u32 %v420, 4294901760
          %v1382 = vsub.f32 %v420, %v1381
          %1383 = vmatmul.mubr.f32.gmra.mrb[0].mxu0 %v1382
          %v1384 = vpop.f32.mrb[0].mxu0
          %v1385 = vadd.f32 %v1082, %v1384
          %v1386 = vpop.f32.mrb[0].mxu0
          %1387 = vmatprep.mubr.f32.mxu0 0.0
          %v1388 = vand.u32 %v421, 4294901760
          %v1389 = vsub.f32 %v421, %v1388
          %1390 = vmatmul.mubr.f32.gmra.mrb[0].mxu0 %v1389
          %v1391 = vpop.f32.mrb[0].mxu0
          %v1392 = vadd.f32 %v1088, %v1391
          %v1393 = vpop.f32.mrb[0].mxu0
          %1394 = vmatprep.mubr.f32.mxu0 0.0
          %v1395 = vand.u32 %v422, 4294901760
          %v1396 = vsub.f32 %v422, %v1395
          %1397 = vmatmul.mubr.f32.gmra.mrb[0].mxu0 %v1396
          %v1398 = vpop.f32.mrb[0].mxu0
          %v1399 = vadd.f32 %v1094, %v1398
          %v1400 = vpop.f32.mrb[0].mxu0
          %1401 = vmatprep.mubr.f32.mxu0 0.0
          %v1402 = vand.u32 %v423, 4294901760
          %v1403 = vsub.f32 %v423, %v1402
          %1404 = vmatmul.mubr.f32.gmra.mrb[0].mxu0 %v1403
          %v1405 = vpop.f32.mrb[0].mxu0
          %v1406 = vadd.f32 %v1100, %v1405
          %v1407 = vpop.f32.mrb[0].mxu0
          %1408 = vmatprep.mubr.f32.mxu0 0.0
          %v1409 = vand.u32 %v424, 4294901760
          %v1410 = vsub.f32 %v424, %v1409
          %1411 = vmatmul.mubr.f32.gmra.mrb[0].mxu0 %v1410
          %v1412 = vpop.f32.mrb[0].mxu0
          %v1413 = vadd.f32 %v1106, %v1412
          %v1414 = vpop.f32.mrb[0].mxu0
          %1415 = vmatprep.mubr.f32.mxu0 0.0
          %v1416 = vand.u32 %v425, 4294901760
          %v1417 = vsub.f32 %v425, %v1416
          %1418 = vmatmul.mubr.f32.gmra.mrb[0].mxu0 %v1417
          %v1419 = vpop.f32.mrb[0].mxu0
          %v1420 = vadd.f32 %v1112, %v1419
          %v1421 = vpop.f32.mrb[0].mxu0
          %1422 = vmatprep.mubr.f32.mxu0 0.0
          %v1423 = vand.u32 %v426, 4294901760
          %v1424 = vsub.f32 %v426, %v1423
          %1425 = vmatmul.mubr.f32.gmra.mrb[0].mxu0 %v1424
          %v1426 = vpop.f32.mrb[0].mxu0
          %v1427 = vadd.f32 %v1118, %v1426
          %v1428 = vpop.f32.mrb[0].mxu0
          %1429 = vmatprep.mubr.f32.mxu0 0.0
          %v1430 = vand.u32 %v427, 4294901760
          %v1431 = vsub.f32 %v427, %v1430
          %1432 = vmatmul.mubr.f32.gmra.mrb[0].mxu0 %v1431
          %v1433 = vpop.f32.mrb[0].mxu0
          %v1434 = vadd.f32 %v1124, %v1433
          %v1435 = vpop.f32.mrb[0].mxu0
          %1436 = vmatprep.mubr.f32.mxu0 0.0
          %v1437 = vand.u32 %v428, 4294901760
          %v1438 = vsub.f32 %v428, %v1437
          %1439 = vmatmul.mubr.f32.gmra.mrb[0].mxu0 %v1438
          %v1440 = vpop.f32.mrb[0].mxu0
          %v1441 = vadd.f32 %v1130, %v1440
          %v1442 = vpop.f32.mrb[0].mxu0
          %1443 = vmatprep.mubr.f32.mxu0 0.0
          %v1444 = vand.u32 %v429, 4294901760
          %v1445 = vsub.f32 %v429, %v1444
          %1446 = vmatmul.mubr.f32.gmra.mrb[0].mxu0 %v1445
          %v1447 = vpop.f32.mrb[0].mxu0
          %v1448 = vadd.f32 %v1136, %v1447
          %v1449 = vpop.f32.mrb[0].mxu0
          %1450 = vmatprep.mubr.f32.mxu0 0.0
          %v1451 = vand.u32 %v430, 4294901760
          %v1452 = vsub.f32 %v430, %v1451
          %1453 = vmatmul.mubr.f32.gmra.mrb[0].mxu0 %v1452
          %v1454 = vpop.f32.mrb[0].mxu0
          %v1455 = vadd.f32 %v1142, %v1454
          %v1456 = vpop.f32.mrb[0].mxu0
          %1457 = vmatprep.mubr.f32.mxu0 0.0
          %v1458 = vand.u32 %v431, 4294901760
          %v1459 = vsub.f32 %v431, %v1458
          %1460 = vmatmul.mubr.f32.gmra.mrb[0].mxu0 %v1459
          %v1461 = vpop.f32.mrb[0].mxu0
          %v1462 = vadd.f32 %v1148, %v1461
          %v1463 = vpop.f32.mrb[0].mxu0
          %1464 = vmatprep.mubr.f32.mxu0 0.0
          %v1465 = vand.u32 %v432, 4294901760
          %v1466 = vsub.f32 %v432, %v1465
          %1467 = vmatmul.mubr.f32.gmra.mrb[0].mxu0 %v1466
          %v1468 = vpop.f32.mrb[0].mxu0
          %v1469 = vadd.f32 %v1154, %v1468
          %v1470 = vpop.f32.mrb[0].mxu0
          %1471 = vmatprep.mubr.f32.mxu0 0.0
          %v1472 = vand.u32 %v433, 4294901760
          %v1473 = vsub.f32 %v433, %v1472
          %1474 = vmatmul.mubr.f32.gmra.mrb[0].mxu0 %v1473
          %v1475 = vpop.f32.mrb[0].mxu0
          %v1476 = vadd.f32 %v1160, %v1475
          %v1477 = vpop.f32.mrb[0].mxu0
          %1478 = vmatprep.mubr.f32.mxu0 0.0
          %v1479 = vand.u32 %v434, 4294901760
          %v1480 = vsub.f32 %v434, %v1479
          %1481 = vmatmul.mubr.f32.gmra.mrb[0].mxu0 %v1480
          %v1482 = vpop.f32.mrb[0].mxu0
          %v1483 = vadd.f32 %v1166, %v1482
          %v1484 = vpop.f32.mrb[0].mxu0
          %1485 = vmatprep.mubr.f32.mxu0 0.0
          %v1486 = vand.u32 %v435, 4294901760
          %v1487 = vsub.f32 %v435, %v1486
          %1488 = vmatmul.mubr.f32.gmra.mrb[0].mxu0 %v1487
          %v1489 = vpop.f32.mrb[0].mxu0
          %v1490 = vadd.f32 %v1172, %v1489
          %v1491 = vpop.f32.mrb[0].mxu0
          %1492 = vmatprep.mubr.f32.mxu0 0.0
          %v1493 = vand.u32 %v436, 4294901760
          %v1494 = vsub.f32 %v436, %v1493
          %1495 = vmatmul.mubr.f32.gmra.mrb[0].mxu0 %v1494
          %v1496 = vpop.f32.mrb[0].mxu0
          %v1497 = vadd.f32 %v1178, %v1496
          %v1498 = vpop.f32.mrb[0].mxu0
          %1499 = vmatprep.mubr.f32.mxu0 0.0
          %v1500 = vand.u32 %v437, 4294901760
          %v1501 = vsub.f32 %v437, %v1500
          %1502 = vmatmul.mubr.f32.gmra.mrb[0].mxu0 %v1501
          %v1503 = vpop.f32.mrb[0].mxu0
          %v1504 = vadd.f32 %v1184, %v1503
          %v1505 = vpop.f32.mrb[0].mxu0
          %1506 = vmatprep.mubr.f32.mxu0 0.0
          %v1507 = vand.u32 %v438, 4294901760
          %v1508 = vsub.f32 %v438, %v1507
          %1509 = vmatmul.mubr.f32.gmra.mrb[0].mxu0 %v1508
          %v1510 = vpop.f32.mrb[0].mxu0
          %v1511 = vadd.f32 %v1190, %v1510
          %v1512 = vpop.f32.mrb[0].mxu0
          %1513 = vdwg.mxu0
          %1514 = vmatprep.subr.mxu0 0.0
          %v1515 = vand.u32 %v439, 4294901760
          %1516 = vmatpush1.msra.mxu0 %v1515
          %1517 = vmatprep.subr.mxu0 0.0
          %v1518 = vand.u32 %v440, 4294901760
          %1519 = vmatpush1.msra.mxu0 %v1518
          %1520 = vmatprep.subr.mxu0 0.0
          %v1521 = vand.u32 %v441, 4294901760
          %1522 = vmatpush1.msra.mxu0 %v1521
          %1523 = vmatprep.subr.mxu0 0.0
          %v1524 = vand.u32 %v442, 4294901760
          %1525 = vmatpush1.msra.mxu0 %v1524
          %1526 = vmatprep.subr.mxu0 0.0
          %v1527 = vand.u32 %v443, 4294901760
          %1528 = vmatpush1.msra.mxu0 %v1527
          %1529 = vmatprep.subr.mxu0 0.0
          %v1530 = vand.u32 %v444, 4294901760
          %1531 = vmatpush1.msra.mxu0 %v1530
          %1532 = vmatprep.subr.mxu0 0.0
          %v1533 = vand.u32 %v445, 4294901760
          %1534 = vmatpush1.msra.mxu0 %v1533
          %1535 = vmatprep.subr.mxu0 0.0
          %v1536 = vand.u32 %v446, 4294901760
          %1537 = vmatpush1.msra.mxu0 %v1536
          %1538 = vmatprep.subr.mxu0 0.0
          %v1539 = vand.u32 %v447, 4294901760
          %1540 = vmatpush1.msra.mxu0 %v1539
          %1541 = vmatprep.subr.mxu0 0.0
          %v1542 = vand.u32 %v448, 4294901760
          %1543 = vmatpush1.msra.mxu0 %v1542
          %1544 = vmatprep.subr.mxu0 0.0
          %v1545 = vand.u32 %v449, 4294901760
          %1546 = vmatpush1.msra.mxu0 %v1545
          %1547 = vmatprep.subr.mxu0 0.0
          %v1548 = vand.u32 %v450, 4294901760
          %1549 = vmatpush1.msra.mxu0 %v1548
          %1550 = vmatprep.subr.mxu0 0.0
          %v1551 = vand.u32 %v451, 4294901760
          %1552 = vmatpush1.msra.mxu0 %v1551
          %1553 = vmatprep.subr.mxu0 0.0
          %v1554 = vand.u32 %v452, 4294901760
          %1555 = vmatpush1.msra.mxu0 %v1554
          %1556 = vmatprep.subr.mxu0 0.0
          %v1557 = vand.u32 %v453, 4294901760
          %1558 = vmatpush1.msra.mxu0 %v1557
          %1559 = vmatprep.subr.mxu0 0.0
          %v1560 = vand.u32 %v454, 4294901760
          %1561 = vmatpush1.msra.mxu0 %v1560
          %1562 = vmatprep.subr.mxu0 0.0
          %1563 = vmatpush1.msra.mxu0 0.0
          %1564 = vmatprep.subr.mxu0 0.0
          %1565 = vmatpush1.msra.mxu0 0.0
          %1566 = vmatprep.subr.mxu0 0.0
          %1567 = vmatpush1.msra.mxu0 0.0
          %1568 = vmatprep.subr.mxu0 0.0
          %1569 = vmatpush1.msra.mxu0 0.0
          %1570 = vmatprep.subr.mxu0 0.0
          %1571 = vmatpush1.msra.mxu0 0.0
          %1572 = vmatprep.subr.mxu0 0.0
          %1573 = vmatpush1.msra.mxu0 0.0
          %1574 = vmatprep.subr.mxu0 0.0
          %1575 = vmatpush1.msra.mxu0 0.0
          %1576 = vmatprep.subr.mxu0 0.0
          %1577 = vmatpush1.msra.mxu0 0.0
          %1578 = vmatprep.subr.mxu0 0.0
          %1579 = vmatpush1.msra.mxu0 0.0
          %1580 = vmatprep.subr.mxu0 0.0
          %1581 = vmatpush1.msra.mxu0 0.0
          %1582 = vmatprep.subr.mxu0 0.0
          %1583 = vmatpush1.msra.mxu0 0.0
          %1584 = vmatprep.subr.mxu0 0.0
          %1585 = vmatpush1.msra.mxu0 0.0
          %1586 = vmatprep.subr.mxu0 0.0
          %1587 = vmatpush1.msra.mxu0 0.0
          %1588 = vmatprep.subr.mxu0 0.0
          %1589 = vmatpush1.msra.mxu0 0.0
          %1590 = vmatprep.subr.mxu0 0.0
          %1591 = vmatpush1.msra.mxu0 0.0
          %1592 = vmatprep.subr.mxu0 0.0
          %1593 = vmatpush1.msra.mxu0 0.0
          %1594 = vmatprep.mubr.f32.mxu0 0.0
          %v1595 = vand.u32 %v407, 4294901760
          %v1596 = vsub.f32 %v407, %v1595
          %v1597 = vand.u32 %v1596, 4294901760
          %1598 = vmatmul.mubr.f32.gmra.mrb[0].mxu0 %v1597
          %v1599 = vpop.f32.mrb[0].mxu0
          %v1600 = vadd.f32 %v1294, %v1599
          %v1601 = vpop.f32.mrb[0].mxu0
          %1602 = vmatprep.mubr.f32.mxu0 0.0
          %v1603 = vand.u32 %v408, 4294901760
          %v1604 = vsub.f32 %v408, %v1603
          %v1605 = vand.u32 %v1604, 4294901760
          %1606 = vmatmul.mubr.f32.gmra.mrb[0].mxu0 %v1605
          %v1607 = vpop.f32.mrb[0].mxu0
          %v1608 = vadd.f32 %v1301, %v1607
          %v1609 = vpop.f32.mrb[0].mxu0
          %1610 = vmatprep.mubr.f32.mxu0 0.0
          %v1611 = vand.u32 %v409, 4294901760
          %v1612 = vsub.f32 %v409, %v1611
          %v1613 = vand.u32 %v1612, 4294901760
          %1614 = vmatmul.mubr.f32.gmra.mrb[0].mxu0 %v1613
          %v1615 = vpop.f32.mrb[0].mxu0
          %v1616 = vadd.f32 %v1308, %v1615
          %v1617 = vpop.f32.mrb[0].mxu0
          %1618 = vmatprep.mubr.f32.mxu0 0.0
          %v1619 = vand.u32 %v410, 4294901760
          %v1620 = vsub.f32 %v410, %v1619
          %v1621 = vand.u32 %v1620, 4294901760
          %1622 = vmatmul.mubr.f32.gmra.mrb[0].mxu0 %v1621
          %v1623 = vpop.f32.mrb[0].mxu0
          %v1624 = vadd.f32 %v1315, %v1623
          %v1625 = vpop.f32.mrb[0].mxu0
          %1626 = vmatprep.mubr.f32.mxu0 0.0
          %v1627 = vand.u32 %v411, 4294901760
          %v1628 = vsub.f32 %v411, %v1627
          %v1629 = vand.u32 %v1628, 4294901760
          %1630 = vmatmul.mubr.f32.gmra.mrb[0].mxu0 %v1629
          %v1631 = vpop.f32.mrb[0].mxu0
          %v1632 = vadd.f32 %v1322, %v1631
          %v1633 = vpop.f32.mrb[0].mxu0
          %1634 = vmatprep.mubr.f32.mxu0 0.0
          %v1635 = vand.u32 %v412, 4294901760
          %v1636 = vsub.f32 %v412, %v1635
          %v1637 = vand.u32 %v1636, 4294901760
          %1638 = vmatmul.mubr.f32.gmra.mrb[0].mxu0 %v1637
          %v1639 = vpop.f32.mrb[0].mxu0
          %v1640 = vadd.f32 %v1329, %v1639
          %v1641 = vpop.f32.mrb[0].mxu0
          %1642 = vmatprep.mubr.f32.mxu0 0.0
          %v1643 = vand.u32 %v413, 4294901760
          %v1644 = vsub.f32 %v413, %v1643
          %v1645 = vand.u32 %v1644, 4294901760
          %1646 = vmatmul.mubr.f32.gmra.mrb[0].mxu0 %v1645
          %v1647 = vpop.f32.mrb[0].mxu0
          %v1648 = vadd.f32 %v1336, %v1647
          %v1649 = vpop.f32.mrb[0].mxu0
          %1650 = vmatprep.mubr.f32.mxu0 0.0
          %v1651 = vand.u32 %v414, 4294901760
          %v1652 = vsub.f32 %v414, %v1651
          %v1653 = vand.u32 %v1652, 4294901760
          %1654 = vmatmul.mubr.f32.gmra.mrb[0].mxu0 %v1653
          %v1655 = vpop.f32.mrb[0].mxu0
          %v1656 = vadd.f32 %v1343, %v1655
          %v1657 = vpop.f32.mrb[0].mxu0
          %1658 = vmatprep.mubr.f32.mxu0 0.0
          %v1659 = vand.u32 %v415, 4294901760
          %v1660 = vsub.f32 %v415, %v1659
          %v1661 = vand.u32 %v1660, 4294901760
          %1662 = vmatmul.mubr.f32.gmra.mrb[0].mxu0 %v1661
          %v1663 = vpop.f32.mrb[0].mxu0
          %v1664 = vadd.f32 %v1350, %v1663
          %v1665 = vpop.f32.mrb[0].mxu0
          %1666 = vmatprep.mubr.f32.mxu0 0.0
          %v1667 = vand.u32 %v416, 4294901760
          %v1668 = vsub.f32 %v416, %v1667
          %v1669 = vand.u32 %v1668, 4294901760
          %1670 = vmatmul.mubr.f32.gmra.mrb[0].mxu0 %v1669
          %v1671 = vpop.f32.mrb[0].mxu0
          %v1672 = vadd.f32 %v1357, %v1671
          %v1673 = vpop.f32.mrb[0].mxu0
          %1674 = vmatprep.mubr.f32.mxu0 0.0
          %v1675 = vand.u32 %v417, 4294901760
          %v1676 = vsub.f32 %v417, %v1675
          %v1677 = vand.u32 %v1676, 4294901760
          %1678 = vmatmul.mubr.f32.gmra.mrb[0].mxu0 %v1677
          %v1679 = vpop.f32.mrb[0].mxu0
          %v1680 = vadd.f32 %v1364, %v1679
          %v1681 = vpop.f32.mrb[0].mxu0
          %1682 = vmatprep.mubr.f32.mxu0 0.0
          %v1683 = vand.u32 %v418, 4294901760
          %v1684 = vsub.f32 %v418, %v1683
          %v1685 = vand.u32 %v1684, 4294901760
          %1686 = vmatmul.mubr.f32.gmra.mrb[0].mxu0 %v1685
          %v1687 = vpop.f32.mrb[0].mxu0
          %v1688 = vadd.f32 %v1371, %v1687
          %v1689 = vpop.f32.mrb[0].mxu0
          %1690 = vmatprep.mubr.f32.mxu0 0.0
          %v1691 = vand.u32 %v419, 4294901760
          %v1692 = vsub.f32 %v419, %v1691
          %v1693 = vand.u32 %v1692, 4294901760
          %1694 = vmatmul.mubr.f32.gmra.mrb[0].mxu0 %v1693
          %v1695 = vpop.f32.mrb[0].mxu0
          %v1696 = vadd.f32 %v1378, %v1695
          %v1697 = vpop.f32.mrb[0].mxu0
          %1698 = vmatprep.mubr.f32.mxu0 0.0
          %v1699 = vand.u32 %v420, 4294901760
          %v1700 = vsub.f32 %v420, %v1699
          %v1701 = vand.u32 %v1700, 4294901760
          %1702 = vmatmul.mubr.f32.gmra.mrb[0].mxu0 %v1701
          %v1703 = vpop.f32.mrb[0].mxu0
          %v1704 = vadd.f32 %v1385, %v1703
          %v1705 = vpop.f32.mrb[0].mxu0
          %1706 = vmatprep.mubr.f32.mxu0 0.0
          %v1707 = vand.u32 %v421, 4294901760
          %v1708 = vsub.f32 %v421, %v1707
          %v1709 = vand.u32 %v1708, 4294901760
          %1710 = vmatmul.mubr.f32.gmra.mrb[0].mxu0 %v1709
          %v1711 = vpop.f32.mrb[0].mxu0
          %v1712 = vadd.f32 %v1392, %v1711
          %v1713 = vpop.f32.mrb[0].mxu0
          %1714 = vmatprep.mubr.f32.mxu0 0.0
          %v1715 = vand.u32 %v422, 4294901760
          %v1716 = vsub.f32 %v422, %v1715
          %v1717 = vand.u32 %v1716, 4294901760
          %1718 = vmatmul.mubr.f32.gmra.mrb[0].mxu0 %v1717
          %v1719 = vpop.f32.mrb[0].mxu0
          %v1720 = vadd.f32 %v1399, %v1719
          %v1721 = vpop.f32.mrb[0].mxu0
          %1722 = vmatprep.mubr.f32.mxu0 0.0
          %v1723 = vand.u32 %v423, 4294901760
          %v1724 = vsub.f32 %v423, %v1723
          %v1725 = vand.u32 %v1724, 4294901760
          %1726 = vmatmul.mubr.f32.gmra.mrb[0].mxu0 %v1725
          %v1727 = vpop.f32.mrb[0].mxu0
          %v1728 = vadd.f32 %v1406, %v1727
          %v1729 = vpop.f32.mrb[0].mxu0
          %1730 = vmatprep.mubr.f32.mxu0 0.0
          %v1731 = vand.u32 %v424, 4294901760
          %v1732 = vsub.f32 %v424, %v1731
          %v1733 = vand.u32 %v1732, 4294901760
          %1734 = vmatmul.mubr.f32.gmra.mrb[0].mxu0 %v1733
          %v1735 = vpop.f32.mrb[0].mxu0
          %v1736 = vadd.f32 %v1413, %v1735
          %v1737 = vpop.f32.mrb[0].mxu0
          %1738 = vmatprep.mubr.f32.mxu0 0.0
          %v1739 = vand.u32 %v425, 4294901760
          %v1740 = vsub.f32 %v425, %v1739
          %v1741 = vand.u32 %v1740, 4294901760
          %1742 = vmatmul.mubr.f32.gmra.mrb[0].mxu0 %v1741
          %v1743 = vpop.f32.mrb[0].mxu0
          %v1744 = vadd.f32 %v1420, %v1743
          %v1745 = vpop.f32.mrb[0].mxu0
          %1746 = vmatprep.mubr.f32.mxu0 0.0
          %v1747 = vand.u32 %v426, 4294901760
          %v1748 = vsub.f32 %v426, %v1747
          %v1749 = vand.u32 %v1748, 4294901760
          %1750 = vmatmul.mubr.f32.gmra.mrb[0].mxu0 %v1749
          %v1751 = vpop.f32.mrb[0].mxu0
          %v1752 = vadd.f32 %v1427, %v1751
          %v1753 = vpop.f32.mrb[0].mxu0
          %1754 = vmatprep.mubr.f32.mxu0 0.0
          %v1755 = vand.u32 %v427, 4294901760
          %v1756 = vsub.f32 %v427, %v1755
          %v1757 = vand.u32 %v1756, 4294901760
          %1758 = vmatmul.mubr.f32.gmra.mrb[0].mxu0 %v1757
          %v1759 = vpop.f32.mrb[0].mxu0
          %v1760 = vadd.f32 %v1434, %v1759
          %v1761 = vpop.f32.mrb[0].mxu0
          %1762 = vmatprep.mubr.f32.mxu0 0.0
          %v1763 = vand.u32 %v428, 4294901760
          %v1764 = vsub.f32 %v428, %v1763
          %v1765 = vand.u32 %v1764, 4294901760
          %1766 = vmatmul.mubr.f32.gmra.mrb[0].mxu0 %v1765
          %v1767 = vpop.f32.mrb[0].mxu0
          %v1768 = vadd.f32 %v1441, %v1767
          %v1769 = vpop.f32.mrb[0].mxu0
          %1770 = vmatprep.mubr.f32.mxu0 0.0
          %v1771 = vand.u32 %v429, 4294901760
          %v1772 = vsub.f32 %v429, %v1771
          %v1773 = vand.u32 %v1772, 4294901760
          %1774 = vmatmul.mubr.f32.gmra.mrb[0].mxu0 %v1773
          %v1775 = vpop.f32.mrb[0].mxu0
          %v1776 = vadd.f32 %v1448, %v1775
          %v1777 = vpop.f32.mrb[0].mxu0
          %1778 = vmatprep.mubr.f32.mxu0 0.0
          %v1779 = vand.u32 %v430, 4294901760
          %v1780 = vsub.f32 %v430, %v1779
          %v1781 = vand.u32 %v1780, 4294901760
          %1782 = vmatmul.mubr.f32.gmra.mrb[0].mxu0 %v1781
          %v1783 = vpop.f32.mrb[0].mxu0
          %v1784 = vadd.f32 %v1455, %v1783
          %v1785 = vpop.f32.mrb[0].mxu0
          %1786 = vmatprep.mubr.f32.mxu0 0.0
          %v1787 = vand.u32 %v431, 4294901760
          %v1788 = vsub.f32 %v431, %v1787
          %v1789 = vand.u32 %v1788, 4294901760
          %1790 = vmatmul.mubr.f32.gmra.mrb[0].mxu0 %v1789
          %v1791 = vpop.f32.mrb[0].mxu0
          %v1792 = vadd.f32 %v1462, %v1791
          %v1793 = vpop.f32.mrb[0].mxu0
          %1794 = vmatprep.mubr.f32.mxu0 0.0
          %v1795 = vand.u32 %v432, 4294901760
          %v1796 = vsub.f32 %v432, %v1795
          %v1797 = vand.u32 %v1796, 4294901760
          %1798 = vmatmul.mubr.f32.gmra.mrb[0].mxu0 %v1797
          %v1799 = vpop.f32.mrb[0].mxu0
          %v1800 = vadd.f32 %v1469, %v1799
          %v1801 = vpop.f32.mrb[0].mxu0
          %1802 = vmatprep.mubr.f32.mxu0 0.0
          %v1803 = vand.u32 %v433, 4294901760
          %v1804 = vsub.f32 %v433, %v1803
          %v1805 = vand.u32 %v1804, 4294901760
          %1806 = vmatmul.mubr.f32.gmra.mrb[0].mxu0 %v1805
          %v1807 = vpop.f32.mrb[0].mxu0
          %v1808 = vadd.f32 %v1476, %v1807
          %v1809 = vpop.f32.mrb[0].mxu0
          %1810 = vmatprep.mubr.f32.mxu0 0.0
          %v1811 = vand.u32 %v434, 4294901760
          %v1812 = vsub.f32 %v434, %v1811
          %v1813 = vand.u32 %v1812, 4294901760
          %1814 = vmatmul.mubr.f32.gmra.mrb[0].mxu0 %v1813
          %v1815 = vpop.f32.mrb[0].mxu0
          %v1816 = vadd.f32 %v1483, %v1815
          %v1817 = vpop.f32.mrb[0].mxu0
          %1818 = vmatprep.mubr.f32.mxu0 0.0
          %v1819 = vand.u32 %v435, 4294901760
          %v1820 = vsub.f32 %v435, %v1819
          %v1821 = vand.u32 %v1820, 4294901760
          %1822 = vmatmul.mubr.f32.gmra.mrb[0].mxu0 %v1821
          %v1823 = vpop.f32.mrb[0].mxu0
          %v1824 = vadd.f32 %v1490, %v1823
          %v1825 = vpop.f32.mrb[0].mxu0
          %1826 = vmatprep.mubr.f32.mxu0 0.0
          %v1827 = vand.u32 %v436, 4294901760
          %v1828 = vsub.f32 %v436, %v1827
          %v1829 = vand.u32 %v1828, 4294901760
          %1830 = vmatmul.mubr.f32.gmra.mrb[0].mxu0 %v1829
          %v1831 = vpop.f32.mrb[0].mxu0
          %v1832 = vadd.f32 %v1497, %v1831
          %v1833 = vpop.f32.mrb[0].mxu0
          %1834 = vmatprep.mubr.f32.mxu0 0.0
          %v1835 = vand.u32 %v437, 4294901760
          %v1836 = vsub.f32 %v437, %v1835
          %v1837 = vand.u32 %v1836, 4294901760
          %1838 = vmatmul.mubr.f32.gmra.mrb[0].mxu0 %v1837
          %v1839 = vpop.f32.mrb[0].mxu0
          %v1840 = vadd.f32 %v1504, %v1839
          %v1841 = vpop.f32.mrb[0].mxu0
          %1842 = vmatprep.mubr.f32.mxu0 0.0
          %v1843 = vand.u32 %v438, 4294901760
          %v1844 = vsub.f32 %v438, %v1843
          %v1845 = vand.u32 %v1844, 4294901760
          %1846 = vmatmul.mubr.f32.gmra.mrb[0].mxu0 %v1845
          %v1847 = vpop.f32.mrb[0].mxu0
          %v1848 = vadd.f32 %v1511, %v1847
          %v1849 = vpop.f32.mrb[0].mxu0
          %1850 = vdwg.mxu0
          %1851 = vmatprep.subr.mxu0 0.0
          %v1852 = vand.u32 %v439, 4294901760
          %v1853 = vsub.f32 %v439, %v1852
          %v1854 = vand.u32 %v1853, 4294901760
          %1855 = vmatpush1.msra.mxu0 %v1854
          %1856 = vmatprep.subr.mxu0 0.0
          %v1857 = vand.u32 %v440, 4294901760
          %v1858 = vsub.f32 %v440, %v1857
          %v1859 = vand.u32 %v1858, 4294901760
          %1860 = vmatpush1.msra.mxu0 %v1859
          %1861 = vmatprep.subr.mxu0 0.0
          %v1862 = vand.u32 %v441, 4294901760
          %v1863 = vsub.f32 %v441, %v1862
          %v1864 = vand.u32 %v1863, 4294901760
          %1865 = vmatpush1.msra.mxu0 %v1864
          %1866 = vmatprep.subr.mxu0 0.0
          %v1867 = vand.u32 %v442, 4294901760
          %v1868 = vsub.f32 %v442, %v1867
          %v1869 = vand.u32 %v1868, 4294901760
          %1870 = vmatpush1.msra.mxu0 %v1869
          %1871 = vmatprep.subr.mxu0 0.0
          %v1872 = vand.u32 %v443, 4294901760
          %v1873 = vsub.f32 %v443, %v1872
          %v1874 = vand.u32 %v1873, 4294901760
          %1875 = vmatpush1.msra.mxu0 %v1874
          %1876 = vmatprep.subr.mxu0 0.0
          %v1877 = vand.u32 %v444, 4294901760
          %v1878 = vsub.f32 %v444, %v1877
          %v1879 = vand.u32 %v1878, 4294901760
          %1880 = vmatpush1.msra.mxu0 %v1879
          %1881 = vmatprep.subr.mxu0 0.0
          %v1882 = vand.u32 %v445, 4294901760
          %v1883 = vsub.f32 %v445, %v1882
          %v1884 = vand.u32 %v1883, 4294901760
          %1885 = vmatpush1.msra.mxu0 %v1884
          %1886 = vmatprep.subr.mxu0 0.0
          %v1887 = vand.u32 %v446, 4294901760
          %v1888 = vsub.f32 %v446, %v1887
          %v1889 = vand.u32 %v1888, 4294901760
          %1890 = vmatpush1.msra.mxu0 %v1889
          %1891 = vmatprep.subr.mxu0 0.0
          %v1892 = vand.u32 %v447, 4294901760
          %v1893 = vsub.f32 %v447, %v1892
          %v1894 = vand.u32 %v1893, 4294901760
          %1895 = vmatpush1.msra.mxu0 %v1894
          %1896 = vmatprep.subr.mxu0 0.0
          %v1897 = vand.u32 %v448, 4294901760
          %v1898 = vsub.f32 %v448, %v1897
          %v1899 = vand.u32 %v1898, 4294901760
          %1900 = vmatpush1.msra.mxu0 %v1899
          %1901 = vmatprep.subr.mxu0 0.0
          %v1902 = vand.u32 %v449, 4294901760
          %v1903 = vsub.f32 %v449, %v1902
          %v1904 = vand.u32 %v1903, 4294901760
          %1905 = vmatpush1.msra.mxu0 %v1904
          %1906 = vmatprep.subr.mxu0 0.0
          %v1907 = vand.u32 %v450, 4294901760
          %v1908 = vsub.f32 %v450, %v1907
          %v1909 = vand.u32 %v1908, 4294901760
          %1910 = vmatpush1.msra.mxu0 %v1909
          %1911 = vmatprep.subr.mxu0 0.0
          %v1912 = vand.u32 %v451, 4294901760
          %v1913 = vsub.f32 %v451, %v1912
          %v1914 = vand.u32 %v1913, 4294901760
          %1915 = vmatpush1.msra.mxu0 %v1914
          %1916 = vmatprep.subr.mxu0 0.0
          %v1917 = vand.u32 %v452, 4294901760
          %v1918 = vsub.f32 %v452, %v1917
          %v1919 = vand.u32 %v1918, 4294901760
          %1920 = vmatpush1.msra.mxu0 %v1919
          %1921 = vmatprep.subr.mxu0 0.0
          %v1922 = vand.u32 %v453, 4294901760
          %v1923 = vsub.f32 %v453, %v1922
          %v1924 = vand.u32 %v1923, 4294901760
          %1925 = vmatpush1.msra.mxu0 %v1924
          %1926 = vmatprep.subr.mxu0 0.0
          %v1927 = vand.u32 %v454, 4294901760
          %v1928 = vsub.f32 %v454, %v1927
          %v1929 = vand.u32 %v1928, 4294901760
          %1930 = vmatpush1.msra.mxu0 %v1929
          %1931 = vmatprep.subr.mxu0 0.0
          %1932 = vmatpush1.msra.mxu0 0.0
          %1933 = vmatprep.subr.mxu0 0.0
          %1934 = vmatpush1.msra.mxu0 0.0
          %1935 = vmatprep.subr.mxu0 0.0
          %1936 = vmatpush1.msra.mxu0 0.0
          %1937 = vmatprep.subr.mxu0 0.0
          %1938 = vmatpush1.msra.mxu0 0.0
          %1939 = vmatprep.subr.mxu0 0.0
          %1940 = vmatpush1.msra.mxu0 0.0
          %1941 = vmatprep.subr.mxu0 0.0
          %1942 = vmatpush1.msra.mxu0 0.0
          %1943 = vmatprep.subr.mxu0 0.0
          %1944 = vmatpush1.msra.mxu0 0.0
          %1945 = vmatprep.subr.mxu0 0.0
          %1946 = vmatpush1.msra.mxu0 0.0
          %1947 = vmatprep.subr.mxu0 0.0
          %1948 = vmatpush1.msra.mxu0 0.0
          %1949 = vmatprep.subr.mxu0 0.0
          %1950 = vmatpush1.msra.mxu0 0.0
          %1951 = vmatprep.subr.mxu0 0.0
          %1952 = vmatpush1.msra.mxu0 0.0
          %1953 = vmatprep.subr.mxu0 0.0
          %1954 = vmatpush1.msra.mxu0 0.0
          %1955 = vmatprep.subr.mxu0 0.0
          %1956 = vmatpush1.msra.mxu0 0.0
          %1957 = vmatprep.subr.mxu0 0.0
          %1958 = vmatpush1.msra.mxu0 0.0
          %1959 = vmatprep.subr.mxu0 0.0
          %1960 = vmatpush1.msra.mxu0 0.0
          %1961 = vmatprep.subr.mxu0 0.0
          %1962 = vmatpush1.msra.mxu0 0.0
          %1963 = vmatprep.mubr.f32.mxu0 0.0
          %v1964 = vand.u32 %v407, 4294901760
          %1965 = vmatmul.mubr.f32.gmra.mrb[0].mxu0 %v1964
          %v1966 = vpop.f32.mrb[0].mxu0
          %v1967 = vadd.f32 %v1600, %v1966
          %v1968 = vpop.f32.mrb[0].mxu0
          %1969 = vmatprep.mubr.f32.mxu0 0.0
          %v1970 = vand.u32 %v408, 4294901760
          %1971 = vmatmul.mubr.f32.gmra.mrb[0].mxu0 %v1970
          %v1972 = vpop.f32.mrb[0].mxu0
          %v1973 = vadd.f32 %v1608, %v1972
          %v1974 = vpop.f32.mrb[0].mxu0
          %1975 = vmatprep.mubr.f32.mxu0 0.0
          %v1976 = vand.u32 %v409, 4294901760
          %1977 = vmatmul.mubr.f32.gmra.mrb[0].mxu0 %v1976
          %v1978 = vpop.f32.mrb[0].mxu0
          %v1979 = vadd.f32 %v1616, %v1978
          %v1980 = vpop.f32.mrb[0].mxu0
          %1981 = vmatprep.mubr.f32.mxu0 0.0
          %v1982 = vand.u32 %v410, 4294901760
          %1983 = vmatmul.mubr.f32.gmra.mrb[0].mxu0 %v1982
          %v1984 = vpop.f32.mrb[0].mxu0
          %v1985 = vadd.f32 %v1624, %v1984
          %v1986 = vpop.f32.mrb[0].mxu0
          %1987 = vmatprep.mubr.f32.mxu0 0.0
          %v1988 = vand.u32 %v411, 4294901760
          %1989 = vmatmul.mubr.f32.gmra.mrb[0].mxu0 %v1988
          %v1990 = vpop.f32.mrb[0].mxu0
          %v1991 = vadd.f32 %v1632, %v1990
          %v1992 = vpop.f32.mrb[0].mxu0
          %1993 = vmatprep.mubr.f32.mxu0 0.0
          %v1994 = vand.u32 %v412, 4294901760
          %1995 = vmatmul.mubr.f32.gmra.mrb[0].mxu0 %v1994
          %v1996 = vpop.f32.mrb[0].mxu0
          %v1997 = vadd.f32 %v1640, %v1996
          %v1998 = vpop.f32.mrb[0].mxu0
          %1999 = vmatprep.mubr.f32.mxu0 0.0
          %v2000 = vand.u32 %v413, 4294901760
          %2001 = vmatmul.mubr.f32.gmra.mrb[0].mxu0 %v2000
          %v2002 = vpop.f32.mrb[0].mxu0
          %v2003 = vadd.f32 %v1648, %v2002
          %v2004 = vpop.f32.mrb[0].mxu0
          %2005 = vmatprep.mubr.f32.mxu0 0.0
          %v2006 = vand.u32 %v414, 4294901760
          %2007 = vmatmul.mubr.f32.gmra.mrb[0].mxu0 %v2006
          %v2008 = vpop.f32.mrb[0].mxu0
          %v2009 = vadd.f32 %v1656, %v2008
          %v2010 = vpop.f32.mrb[0].mxu0
          %2011 = vmatprep.mubr.f32.mxu0 0.0
          %v2012 = vand.u32 %v415, 4294901760
          %2013 = vmatmul.mubr.f32.gmra.mrb[0].mxu0 %v2012
          %v2014 = vpop.f32.mrb[0].mxu0
          %v2015 = vadd.f32 %v1664, %v2014
          %v2016 = vpop.f32.mrb[0].mxu0
          %2017 = vmatprep.mubr.f32.mxu0 0.0
          %v2018 = vand.u32 %v416, 4294901760
          %2019 = vmatmul.mubr.f32.gmra.mrb[0].mxu0 %v2018
          %v2020 = vpop.f32.mrb[0].mxu0
          %v2021 = vadd.f32 %v1672, %v2020
          %v2022 = vpop.f32.mrb[0].mxu0
          %2023 = vmatprep.mubr.f32.mxu0 0.0
          %v2024 = vand.u32 %v417, 4294901760
          %2025 = vmatmul.mubr.f32.gmra.mrb[0].mxu0 %v2024
          %v2026 = vpop.f32.mrb[0].mxu0
          %v2027 = vadd.f32 %v1680, %v2026
          %v2028 = vpop.f32.mrb[0].mxu0
          %2029 = vmatprep.mubr.f32.mxu0 0.0
          %v2030 = vand.u32 %v418, 4294901760
          %2031 = vmatmul.mubr.f32.gmra.mrb[0].mxu0 %v2030
          %v2032 = vpop.f32.mrb[0].mxu0
          %v2033 = vadd.f32 %v1688, %v2032
          %v2034 = vpop.f32.mrb[0].mxu0
          %2035 = vmatprep.mubr.f32.mxu0 0.0
          %v2036 = vand.u32 %v419, 4294901760
          %2037 = vmatmul.mubr.f32.gmra.mrb[0].mxu0 %v2036
          %v2038 = vpop.f32.mrb[0].mxu0
          %v2039 = vadd.f32 %v1696, %v2038
          %v2040 = vpop.f32.mrb[0].mxu0
          %2041 = vmatprep.mubr.f32.mxu0 0.0
          %v2042 = vand.u32 %v420, 4294901760
          %2043 = vmatmul.mubr.f32.gmra.mrb[0].mxu0 %v2042
          %v2044 = vpop.f32.mrb[0].mxu0
          %v2045 = vadd.f32 %v1704, %v2044
          %v2046 = vpop.f32.mrb[0].mxu0
          %2047 = vmatprep.mubr.f32.mxu0 0.0
          %v2048 = vand.u32 %v421, 4294901760
          %2049 = vmatmul.mubr.f32.gmra.mrb[0].mxu0 %v2048
          %v2050 = vpop.f32.mrb[0].mxu0
          %v2051 = vadd.f32 %v1712, %v2050
          %v2052 = vpop.f32.mrb[0].mxu0
          %2053 = vmatprep.mubr.f32.mxu0 0.0
          %v2054 = vand.u32 %v422, 4294901760
          %2055 = vmatmul.mubr.f32.gmra.mrb[0].mxu0 %v2054
          %v2056 = vpop.f32.mrb[0].mxu0
          %v2057 = vadd.f32 %v1720, %v2056
          %v2058 = vpop.f32.mrb[0].mxu0
          %2059 = vmatprep.mubr.f32.mxu0 0.0
          %v2060 = vand.u32 %v423, 4294901760
          %2061 = vmatmul.mubr.f32.gmra.mrb[0].mxu0 %v2060
          %v2062 = vpop.f32.mrb[0].mxu0
          %v2063 = vadd.f32 %v1728, %v2062
          %v2064 = vpop.f32.mrb[0].mxu0
          %2065 = vmatprep.mubr.f32.mxu0 0.0
          %v2066 = vand.u32 %v424, 4294901760
          %2067 = vmatmul.mubr.f32.gmra.mrb[0].mxu0 %v2066
          %v2068 = vpop.f32.mrb[0].mxu0
          %v2069 = vadd.f32 %v1736, %v2068
          %v2070 = vpop.f32.mrb[0].mxu0
          %2071 = vmatprep.mubr.f32.mxu0 0.0
          %v2072 = vand.u32 %v425, 4294901760
          %2073 = vmatmul.mubr.f32.gmra.mrb[0].mxu0 %v2072
          %v2074 = vpop.f32.mrb[0].mxu0
          %v2075 = vadd.f32 %v1744, %v2074
          %v2076 = vpop.f32.mrb[0].mxu0
          %2077 = vmatprep.mubr.f32.mxu0 0.0
          %v2078 = vand.u32 %v426, 4294901760
          %2079 = vmatmul.mubr.f32.gmra.mrb[0].mxu0 %v2078
          %v2080 = vpop.f32.mrb[0].mxu0
          %v2081 = vadd.f32 %v1752, %v2080
          %v2082 = vpop.f32.mrb[0].mxu0
          %2083 = vmatprep.mubr.f32.mxu0 0.0
          %v2084 = vand.u32 %v427, 4294901760
          %2085 = vmatmul.mubr.f32.gmra.mrb[0].mxu0 %v2084
          %v2086 = vpop.f32.mrb[0].mxu0
          %v2087 = vadd.f32 %v1760, %v2086
          %v2088 = vpop.f32.mrb[0].mxu0
          %2089 = vmatprep.mubr.f32.mxu0 0.0
          %v2090 = vand.u32 %v428, 4294901760
          %2091 = vmatmul.mubr.f32.gmra.mrb[0].mxu0 %v2090
          %v2092 = vpop.f32.mrb[0].mxu0
          %v2093 = vadd.f32 %v1768, %v2092
          %v2094 = vpop.f32.mrb[0].mxu0
          %2095 = vmatprep.mubr.f32.mxu0 0.0
          %v2096 = vand.u32 %v429, 4294901760
          %2097 = vmatmul.mubr.f32.gmra.mrb[0].mxu0 %v2096
          %v2098 = vpop.f32.mrb[0].mxu0
          %v2099 = vadd.f32 %v1776, %v2098
          %v2100 = vpop.f32.mrb[0].mxu0
          %2101 = vmatprep.mubr.f32.mxu0 0.0
          %v2102 = vand.u32 %v430, 4294901760
          %2103 = vmatmul.mubr.f32.gmra.mrb[0].mxu0 %v2102
          %v2104 = vpop.f32.mrb[0].mxu0
          %v2105 = vadd.f32 %v1784, %v2104
          %v2106 = vpop.f32.mrb[0].mxu0
          %2107 = vmatprep.mubr.f32.mxu0 0.0
          %v2108 = vand.u32 %v431, 4294901760
          %2109 = vmatmul.mubr.f32.gmra.mrb[0].mxu0 %v2108
          %v2110 = vpop.f32.mrb[0].mxu0
          %v2111 = vadd.f32 %v1792, %v2110
          %v2112 = vpop.f32.mrb[0].mxu0
          %2113 = vmatprep.mubr.f32.mxu0 0.0
          %v2114 = vand.u32 %v432, 4294901760
          %2115 = vmatmul.mubr.f32.gmra.mrb[0].mxu0 %v2114
          %v2116 = vpop.f32.mrb[0].mxu0
          %v2117 = vadd.f32 %v1800, %v2116
          %v2118 = vpop.f32.mrb[0].mxu0
          %2119 = vmatprep.mubr.f32.mxu0 0.0
          %v2120 = vand.u32 %v433, 4294901760
          %2121 = vmatmul.mubr.f32.gmra.mrb[0].mxu0 %v2120
          %v2122 = vpop.f32.mrb[0].mxu0
          %v2123 = vadd.f32 %v1808, %v2122
          %v2124 = vpop.f32.mrb[0].mxu0
          %2125 = vmatprep.mubr.f32.mxu0 0.0
          %v2126 = vand.u32 %v434, 4294901760
          %2127 = vmatmul.mubr.f32.gmra.mrb[0].mxu0 %v2126
          %v2128 = vpop.f32.mrb[0].mxu0
          %v2129 = vadd.f32 %v1816, %v2128
          %v2130 = vpop.f32.mrb[0].mxu0
          %2131 = vmatprep.mubr.f32.mxu0 0.0
          %v2132 = vand.u32 %v435, 4294901760
          %2133 = vmatmul.mubr.f32.gmra.mrb[0].mxu0 %v2132
          %v2134 = vpop.f32.mrb[0].mxu0
          %v2135 = vadd.f32 %v1824, %v2134
          %v2136 = vpop.f32.mrb[0].mxu0
          %2137 = vmatprep.mubr.f32.mxu0 0.0
          %v2138 = vand.u32 %v436, 4294901760
          %2139 = vmatmul.mubr.f32.gmra.mrb[0].mxu0 %v2138
          %v2140 = vpop.f32.mrb[0].mxu0
          %v2141 = vadd.f32 %v1832, %v2140
          %v2142 = vpop.f32.mrb[0].mxu0
          %2143 = vmatprep.mubr.f32.mxu0 0.0
          %v2144 = vand.u32 %v437, 4294901760
          %2145 = vmatmul.mubr.f32.gmra.mrb[0].mxu0 %v2144
          %v2146 = vpop.f32.mrb[0].mxu0
          %v2147 = vadd.f32 %v1840, %v2146
          %v2148 = vpop.f32.mrb[0].mxu0
          %2149 = vmatprep.mubr.f32.mxu0 0.0
          %v2150 = vand.u32 %v438, 4294901760
          %2151 = vmatmul.mubr.f32.gmra.mrb[0].mxu0 %v2150
          %v2152 = vpop.f32.mrb[0].mxu0
          %v2153 = vadd.f32 %v1848, %v2152
          %v2154 = vpop.f32.mrb[0].mxu0
          %2155 = vdwg.mxu0
          %2156 = vmatprep.subr.mxu0 0.0
          %v2157 = vand.u32 %v439, 4294901760
          %2158 = vmatpush1.msra.mxu0 %v2157
          %2159 = vmatprep.subr.mxu0 0.0
          %v2160 = vand.u32 %v440, 4294901760
          %2161 = vmatpush1.msra.mxu0 %v2160
          %2162 = vmatprep.subr.mxu0 0.0
          %v2163 = vand.u32 %v441, 4294901760
          %2164 = vmatpush1.msra.mxu0 %v2163
          %2165 = vmatprep.subr.mxu0 0.0
          %v2166 = vand.u32 %v442, 4294901760
          %2167 = vmatpush1.msra.mxu0 %v2166
          %2168 = vmatprep.subr.mxu0 0.0
          %v2169 = vand.u32 %v443, 4294901760
          %2170 = vmatpush1.msra.mxu0 %v2169
          %2171 = vmatprep.subr.mxu0 0.0
          %v2172 = vand.u32 %v444, 4294901760
          %2173 = vmatpush1.msra.mxu0 %v2172
          %2174 = vmatprep.subr.mxu0 0.0
          %v2175 = vand.u32 %v445, 4294901760
          %2176 = vmatpush1.msra.mxu0 %v2175
          %2177 = vmatprep.subr.mxu0 0.0
          %v2178 = vand.u32 %v446, 4294901760
          %2179 = vmatpush1.msra.mxu0 %v2178
          %2180 = vmatprep.subr.mxu0 0.0
          %v2181 = vand.u32 %v447, 4294901760
          %2182 = vmatpush1.msra.mxu0 %v2181
          %2183 = vmatprep.subr.mxu0 0.0
          %v2184 = vand.u32 %v448, 4294901760
          %2185 = vmatpush1.msra.mxu0 %v2184
          %2186 = vmatprep.subr.mxu0 0.0
          %v2187 = vand.u32 %v449, 4294901760
          %2188 = vmatpush1.msra.mxu0 %v2187
          %2189 = vmatprep.subr.mxu0 0.0
          %v2190 = vand.u32 %v450, 4294901760
          %2191 = vmatpush1.msra.mxu0 %v2190
          %2192 = vmatprep.subr.mxu0 0.0
          %v2193 = vand.u32 %v451, 4294901760
          %2194 = vmatpush1.msra.mxu0 %v2193
          %2195 = vmatprep.subr.mxu0 0.0
          %v2196 = vand.u32 %v452, 4294901760
          %2197 = vmatpush1.msra.mxu0 %v2196
          %2198 = vmatprep.subr.mxu0 0.0
          %v2199 = vand.u32 %v453, 4294901760
          %2200 = vmatpush1.msra.mxu0 %v2199
          %2201 = vmatprep.subr.mxu0 0.0
          %v2202 = vand.u32 %v454, 4294901760
          %2203 = vmatpush1.msra.mxu0 %v2202
          %2204 = vmatprep.subr.mxu0 0.0
          %2205 = vmatpush1.msra.mxu0 0.0
          %2206 = vmatprep.subr.mxu0 0.0
          %2207 = vmatpush1.msra.mxu0 0.0
          %2208 = vmatprep.subr.mxu0 0.0
          %2209 = vmatpush1.msra.mxu0 0.0
          %2210 = vmatprep.subr.mxu0 0.0
          %2211 = vmatpush1.msra.mxu0 0.0
          %2212 = vmatprep.subr.mxu0 0.0
          %2213 = vmatpush1.msra.mxu0 0.0
          %2214 = vmatprep.subr.mxu0 0.0
          %2215 = vmatpush1.msra.mxu0 0.0
          %2216 = vmatprep.subr.mxu0 0.0
          %2217 = vmatpush1.msra.mxu0 0.0
          %2218 = vmatprep.subr.mxu0 0.0
          %2219 = vmatpush1.msra.mxu0 0.0
          %2220 = vmatprep.subr.mxu0 0.0
          %2221 = vmatpush1.msra.mxu0 0.0
          %2222 = vmatprep.subr.mxu0 0.0
          %2223 = vmatpush1.msra.mxu0 0.0
          %2224 = vmatprep.subr.mxu0 0.0
          %2225 = vmatpush1.msra.mxu0 0.0
          %2226 = vmatprep.subr.mxu0 0.0
          %2227 = vmatpush1.msra.mxu0 0.0
          %2228 = vmatprep.subr.mxu0 0.0
          %2229 = vmatpush1.msra.mxu0 0.0
          %2230 = vmatprep.subr.mxu0 0.0
          %2231 = vmatpush1.msra.mxu0 0.0
          %2232 = vmatprep.subr.mxu0 0.0
          %2233 = vmatpush1.msra.mxu0 0.0
          %2234 = vmatprep.subr.mxu0 0.0
          %2235 = vmatpush1.msra.mxu0 0.0
          %2236 = vmatprep.mubr.f32.mxu0 0.0
          %v2237 = vand.u32 %v407, 4294901760
          %2238 = vmatmul.mubr.f32.gmra.mrb[0].mxu0 %v2237
          %v2239 = vpop.f32.mrb[0].mxu0
          %v2240 = vadd.f32 %v1967, %v2239
          %v2241 = vpop.f32.mrb[0].mxu0
          %2242 = vmatprep.mubr.f32.mxu0 0.0
          %v2243 = vand.u32 %v408, 4294901760
          %2244 = vmatmul.mubr.f32.gmra.mrb[0].mxu0 %v2243
          %v2245 = vpop.f32.mrb[0].mxu0
          %v2246 = vadd.f32 %v1973, %v2245
          %v2247 = vpop.f32.mrb[0].mxu0
          %2248 = vmatprep.mubr.f32.mxu0 0.0
          %v2249 = vand.u32 %v409, 4294901760
          %2250 = vmatmul.mubr.f32.gmra.mrb[0].mxu0 %v2249
          %v2251 = vpop.f32.mrb[0].mxu0
          %v2252 = vadd.f32 %v1979, %v2251
          %v2253 = vpop.f32.mrb[0].mxu0
          %2254 = vmatprep.mubr.f32.mxu0 0.0
          %v2255 = vand.u32 %v410, 4294901760
          %2256 = vmatmul.mubr.f32.gmra.mrb[0].mxu0 %v2255
          %v2257 = vpop.f32.mrb[0].mxu0
          %v2258 = vadd.f32 %v1985, %v2257
          %v2259 = vpop.f32.mrb[0].mxu0
          %2260 = vmatprep.mubr.f32.mxu0 0.0
          %v2261 = vand.u32 %v411, 4294901760
          %2262 = vmatmul.mubr.f32.gmra.mrb[0].mxu0 %v2261
          %v2263 = vpop.f32.mrb[0].mxu0
          %v2264 = vadd.f32 %v1991, %v2263
          %v2265 = vpop.f32.mrb[0].mxu0
          %2266 = vmatprep.mubr.f32.mxu0 0.0
          %v2267 = vand.u32 %v412, 4294901760
          %2268 = vmatmul.mubr.f32.gmra.mrb[0].mxu0 %v2267
          %v2269 = vpop.f32.mrb[0].mxu0
          %v2270 = vadd.f32 %v1997, %v2269
          %v2271 = vpop.f32.mrb[0].mxu0
          %2272 = vmatprep.mubr.f32.mxu0 0.0
          %v2273 = vand.u32 %v413, 4294901760
          %2274 = vmatmul.mubr.f32.gmra.mrb[0].mxu0 %v2273
          %v2275 = vpop.f32.mrb[0].mxu0
          %v2276 = vadd.f32 %v2003, %v2275
          %v2277 = vpop.f32.mrb[0].mxu0
          %2278 = vmatprep.mubr.f32.mxu0 0.0
          %v2279 = vand.u32 %v414, 4294901760
          %2280 = vmatmul.mubr.f32.gmra.mrb[0].mxu0 %v2279
          %v2281 = vpop.f32.mrb[0].mxu0
          %v2282 = vadd.f32 %v2009, %v2281
          %v2283 = vpop.f32.mrb[0].mxu0
          %2284 = vmatprep.mubr.f32.mxu0 0.0
          %v2285 = vand.u32 %v415, 4294901760
          %2286 = vmatmul.mubr.f32.gmra.mrb[0].mxu0 %v2285
          %v2287 = vpop.f32.mrb[0].mxu0
          %v2288 = vadd.f32 %v2015, %v2287
          %v2289 = vpop.f32.mrb[0].mxu0
          %2290 = vmatprep.mubr.f32.mxu0 0.0
          %v2291 = vand.u32 %v416, 4294901760
          %2292 = vmatmul.mubr.f32.gmra.mrb[0].mxu0 %v2291
          %v2293 = vpop.f32.mrb[0].mxu0
          %v2294 = vadd.f32 %v2021, %v2293
          %v2295 = vpop.f32.mrb[0].mxu0
          %2296 = vmatprep.mubr.f32.mxu0 0.0
          %v2297 = vand.u32 %v417, 4294901760
          %2298 = vmatmul.mubr.f32.gmra.mrb[0].mxu0 %v2297
          %v2299 = vpop.f32.mrb[0].mxu0
          %v2300 = vadd.f32 %v2027, %v2299
          %v2301 = vpop.f32.mrb[0].mxu0
          %2302 = vmatprep.mubr.f32.mxu0 0.0
          %v2303 = vand.u32 %v418, 4294901760
          %2304 = vmatmul.mubr.f32.gmra.mrb[0].mxu0 %v2303
          %v2305 = vpop.f32.mrb[0].mxu0
          %v2306 = vadd.f32 %v2033, %v2305
          %v2307 = vpop.f32.mrb[0].mxu0
          %2308 = vmatprep.mubr.f32.mxu0 0.0
          %v2309 = vand.u32 %v419, 4294901760
          %2310 = vmatmul.mubr.f32.gmra.mrb[0].mxu0 %v2309
          %v2311 = vpop.f32.mrb[0].mxu0
          %v2312 = vadd.f32 %v2039, %v2311
          %v2313 = vpop.f32.mrb[0].mxu0
          %2314 = vmatprep.mubr.f32.mxu0 0.0
          %v2315 = vand.u32 %v420, 4294901760
          %2316 = vmatmul.mubr.f32.gmra.mrb[0].mxu0 %v2315
          %v2317 = vpop.f32.mrb[0].mxu0
          %v2318 = vadd.f32 %v2045, %v2317
          %v2319 = vpop.f32.mrb[0].mxu0
          %2320 = vmatprep.mubr.f32.mxu0 0.0
          %v2321 = vand.u32 %v421, 4294901760
          %2322 = vmatmul.mubr.f32.gmra.mrb[0].mxu0 %v2321
          %v2323 = vpop.f32.mrb[0].mxu0
          %v2324 = vadd.f32 %v2051, %v2323
          %v2325 = vpop.f32.mrb[0].mxu0
          %2326 = vmatprep.mubr.f32.mxu0 0.0
          %v2327 = vand.u32 %v422, 4294901760
          %2328 = vmatmul.mubr.f32.gmra.mrb[0].mxu0 %v2327
          %v2329 = vpop.f32.mrb[0].mxu0
          %v2330 = vadd.f32 %v2057, %v2329
          %v2331 = vpop.f32.mrb[0].mxu0
          %2332 = vmatprep.mubr.f32.mxu0 0.0
          %v2333 = vand.u32 %v423, 4294901760
          %2334 = vmatmul.mubr.f32.gmra.mrb[0].mxu0 %v2333
          %v2335 = vpop.f32.mrb[0].mxu0
          %v2336 = vadd.f32 %v2063, %v2335
          %v2337 = vpop.f32.mrb[0].mxu0
          %2338 = vmatprep.mubr.f32.mxu0 0.0
          %v2339 = vand.u32 %v424, 4294901760
          %2340 = vmatmul.mubr.f32.gmra.mrb[0].mxu0 %v2339
          %v2341 = vpop.f32.mrb[0].mxu0
          %v2342 = vadd.f32 %v2069, %v2341
          %v2343 = vpop.f32.mrb[0].mxu0
          %2344 = vmatprep.mubr.f32.mxu0 0.0
          %v2345 = vand.u32 %v425, 4294901760
          %2346 = vmatmul.mubr.f32.gmra.mrb[0].mxu0 %v2345
          %v2347 = vpop.f32.mrb[0].mxu0
          %v2348 = vadd.f32 %v2075, %v2347
          %v2349 = vpop.f32.mrb[0].mxu0
          %2350 = vmatprep.mubr.f32.mxu0 0.0
          %v2351 = vand.u32 %v426, 4294901760
          %2352 = vmatmul.mubr.f32.gmra.mrb[0].mxu0 %v2351
          %v2353 = vpop.f32.mrb[0].mxu0
          %v2354 = vadd.f32 %v2081, %v2353
          %v2355 = vpop.f32.mrb[0].mxu0
          %2356 = vmatprep.mubr.f32.mxu0 0.0
          %v2357 = vand.u32 %v427, 4294901760
          %2358 = vmatmul.mubr.f32.gmra.mrb[0].mxu0 %v2357
          %v2359 = vpop.f32.mrb[0].mxu0
          %v2360 = vadd.f32 %v2087, %v2359
          %v2361 = vpop.f32.mrb[0].mxu0
          %2362 = vmatprep.mubr.f32.mxu0 0.0
          %v2363 = vand.u32 %v428, 4294901760
          %2364 = vmatmul.mubr.f32.gmra.mrb[0].mxu0 %v2363
          %v2365 = vpop.f32.mrb[0].mxu0
          %v2366 = vadd.f32 %v2093, %v2365
          %v2367 = vpop.f32.mrb[0].mxu0
          %2368 = vmatprep.mubr.f32.mxu0 0.0
          %v2369 = vand.u32 %v429, 4294901760
          %2370 = vmatmul.mubr.f32.gmra.mrb[0].mxu0 %v2369
          %v2371 = vpop.f32.mrb[0].mxu0
          %v2372 = vadd.f32 %v2099, %v2371
          %v2373 = vpop.f32.mrb[0].mxu0
          %2374 = vmatprep.mubr.f32.mxu0 0.0
          %v2375 = vand.u32 %v430, 4294901760
          %2376 = vmatmul.mubr.f32.gmra.mrb[0].mxu0 %v2375
          %v2377 = vpop.f32.mrb[0].mxu0
          %v2378 = vadd.f32 %v2105, %v2377
          %v2379 = vpop.f32.mrb[0].mxu0
          %2380 = vmatprep.mubr.f32.mxu0 0.0
          %v2381 = vand.u32 %v431, 4294901760
          %2382 = vmatmul.mubr.f32.gmra.mrb[0].mxu0 %v2381
          %v2383 = vpop.f32.mrb[0].mxu0
          %v2384 = vadd.f32 %v2111, %v2383
          %v2385 = vpop.f32.mrb[0].mxu0
          %2386 = vmatprep.mubr.f32.mxu0 0.0
          %v2387 = vand.u32 %v432, 4294901760
          %2388 = vmatmul.mubr.f32.gmra.mrb[0].mxu0 %v2387
          %v2389 = vpop.f32.mrb[0].mxu0
          %v2390 = vadd.f32 %v2117, %v2389
          %v2391 = vpop.f32.mrb[0].mxu0
          %2392 = vmatprep.mubr.f32.mxu0 0.0
          %v2393 = vand.u32 %v433, 4294901760
          %2394 = vmatmul.mubr.f32.gmra.mrb[0].mxu0 %v2393
          %v2395 = vpop.f32.mrb[0].mxu0
          %v2396 = vadd.f32 %v2123, %v2395
          %v2397 = vpop.f32.mrb[0].mxu0
          %2398 = vmatprep.mubr.f32.mxu0 0.0
          %v2399 = vand.u32 %v434, 4294901760
          %2400 = vmatmul.mubr.f32.gmra.mrb[0].mxu0 %v2399
          %v2401 = vpop.f32.mrb[0].mxu0
          %v2402 = vadd.f32 %v2129, %v2401
          %v2403 = vpop.f32.mrb[0].mxu0
          %2404 = vmatprep.mubr.f32.mxu0 0.0
          %v2405 = vand.u32 %v435, 4294901760
          %2406 = vmatmul.mubr.f32.gmra.mrb[0].mxu0 %v2405
          %v2407 = vpop.f32.mrb[0].mxu0
          %v2408 = vadd.f32 %v2135, %v2407
          %v2409 = vpop.f32.mrb[0].mxu0
          %2410 = vmatprep.mubr.f32.mxu0 0.0
          %v2411 = vand.u32 %v436, 4294901760
          %2412 = vmatmul.mubr.f32.gmra.mrb[0].mxu0 %v2411
          %v2413 = vpop.f32.mrb[0].mxu0
          %v2414 = vadd.f32 %v2141, %v2413
          %v2415 = vpop.f32.mrb[0].mxu0
          %2416 = vmatprep.mubr.f32.mxu0 0.0
          %v2417 = vand.u32 %v437, 4294901760
          %2418 = vmatmul.mubr.f32.gmra.mrb[0].mxu0 %v2417
          %v2419 = vpop.f32.mrb[0].mxu0
          %v2420 = vadd.f32 %v2147, %v2419
          %v2421 = vpop.f32.mrb[0].mxu0
          %2422 = vmatprep.mubr.f32.mxu0 0.0
          %v2423 = vand.u32 %v438, 4294901760
          %2424 = vmatmul.mubr.f32.gmra.mrb[0].mxu0 %v2423
          %v2425 = vpop.f32.mrb[0].mxu0
          %v2426 = vadd.f32 %v2153, %v2425
          %v2427 = vpop.f32.mrb[0].mxu0
          %2428 = vdwg.mxu0
          %2429 = vst [vmem:[%s372] sm:$0xff] %v2240
          %2430 = vst [vmem:[%s372 + $0x8] sm:$0xff] %v2246
          %2431 = vst [vmem:[%s372 + $0x10] sm:$0xff] %v2252
          %2432 = vst [vmem:[%s372 + $0x18] sm:$0xff] %v2258
          %2433 = vst [vmem:[%s372 + $0x20] sm:$0xff] %v2264
          %2434 = vst [vmem:[%s372 + $0x28] sm:$0xff] %v2270
          %2435 = vst [vmem:[%s372 + $0x30] sm:$0xff] %v2276
          %2436 = vst [vmem:[%s372 + $0x38] sm:$0xff] %v2282
          %2437 = vst [vmem:[%s372 + $0x40] sm:$0xff] %v2288
          %2438 = vst [vmem:[%s372 + $0x48] sm:$0xff] %v2294
          %2439 = vst [vmem:[%s372 + $0x50] sm:$0xff] %v2300
          %2440 = vst [vmem:[%s372 + $0x58] sm:$0xff] %v2306
          %2441 = vst [vmem:[%s372 + $0x60] sm:$0xff] %v2312
          %2442 = vst [vmem:[%s372 + $0x68] sm:$0xff] %v2318
          %2443 = vst [vmem:[%s372 + $0x70] sm:$0xff] %v2324
          %2444 = vst [vmem:[%s372 + $0x78] sm:$0xff] %v2330
          %2445 = vst [vmem:[%s379] sm:$0xff] %v2336
          %2446 = vst [vmem:[%s379 + $0x8] sm:$0xff] %v2342
          %2447 = vst [vmem:[%s379 + $0x10] sm:$0xff] %v2348
          %2448 = vst [vmem:[%s379 + $0x18] sm:$0xff] %v2354
          %2449 = vst [vmem:[%s379 + $0x20] sm:$0xff] %v2360
          %2450 = vst [vmem:[%s379 + $0x28] sm:$0xff] %v2366
          %2451 = vst [vmem:[%s379 + $0x30] sm:$0xff] %v2372
          %2452 = vst [vmem:[%s379 + $0x38] sm:$0xff] %v2378
          %2453 = vst [vmem:[%s379 + $0x40] sm:$0xff] %v2384
          %2454 = vst [vmem:[%s379 + $0x48] sm:$0xff] %v2390
          %2455 = vst [vmem:[%s379 + $0x50] sm:$0xff] %v2396
          %2456 = vst [vmem:[%s379 + $0x58] sm:$0xff] %v2402
          %2457 = vst [vmem:[%s379 + $0x60] sm:$0xff] %v2408
          %2458 = vst [vmem:[%s379 + $0x68] sm:$0xff] %v2414
          %2459 = vst [vmem:[%s379 + $0x70] sm:$0xff] %v2420
          %2460 = vst [vmem:[%s379 + $0x78] sm:$0xff] %v2426
        $region48: #{tpu_custom_call.1} parent=31 // pred_fallthru
          _
        // Predicated region
        $region49: #{tpu_custom_call.1} parent=31 // pred_check
          %p2461 = pneg %p401
        $region50: #{tpu_custom_call.1} parent=31 // pred_check_branch
          %2463 = sbr.rel (%p2461) target = $region52
        $region51: #{tpu_custom_call.1} parent=31 // pred_region
          %s2464 = scalar_lea.vmem %s336, 112 [#allocation8]
          %v2465 = vld [vmem:[%s2464] sm:$0xff]
          %v2466 = vld [vmem:[%s2464 + $0x8] sm:$0xff]
          %2467 = vst [vmem:[%s372] sm:$0xff] %v2465
          %2468 = vst [vmem:[%s372 + $0x8] sm:$0xff] %v2466
          %s2469 = scalar_lea.vmem %s345, 112 [#allocation10]
          %v2470 = vld [vmem:[%s2469] sm:$0xff]
          %v2471 = vld [vmem:[%s2469 + $0x8] sm:$0xff]
          %2472 = vst [vmem:[%s379] sm:$0xff] %v2470
          %2473 = vst [vmem:[%s379 + $0x8] sm:$0xff] %v2471
          %s2474 = scalar_lea.vmem %s336, 96 [#allocation8]
          %v2475 = vld [vmem:[%s2474] sm:$0xff]
          %v2476 = vld [vmem:[%s2474 + $0x8] sm:$0xff]
          %s2477 = scalar_lea.vmem %s372, 16 [#allocation11]
          %2478 = vst [vmem:[%s2477] sm:$0xff] %v2475
          %2479 = vst [vmem:[%s2477 + $0x8] sm:$0xff] %v2476
          %s2480 = scalar_lea.vmem %s345, 96 [#allocation10]
          %v2481 = vld [vmem:[%s2480] sm:$0xff]
          %v2482 = vld [vmem:[%s2480 + $0x8] sm:$0xff]
          %s2483 = scalar_lea.vmem %s379, 16 [#allocation12]
          %2484 = vst [vmem:[%s2483] sm:$0xff] %v2481
          %2485 = vst [vmem:[%s2483 + $0x8] sm:$0xff] %v2482
          %s2486 = scalar_lea.vmem %s336, 80 [#allocation8]
          %v2487 = vld [vmem:[%s2486] sm:$0xff]
          %v2488 = vld [vmem:[%s2486 + $0x8] sm:$0xff]
          %s2489 = scalar_lea.vmem %s372, 32 [#allocation11]
          %2490 = vst [vmem:[%s2489] sm:$0xff] %v2487
          %2491 = vst [vmem:[%s2489 + $0x8] sm:$0xff] %v2488
          %s2492 = scalar_lea.vmem %s345, 80 [#allocation10]
          %v2493 = vld [vmem:[%s2492] sm:$0xff]
          %v2494 = vld [vmem:[%s2492 + $0x8] sm:$0xff]
          %s2495 = scalar_lea.vmem %s379, 32 [#allocation12]
          %2496 = vst [vmem:[%s2495] sm:$0xff] %v2493
          %2497 = vst [vmem:[%s2495 + $0x8] sm:$0xff] %v2494
          %s2498 = scalar_lea.vmem %s336, 64 [#allocation8]
          %v2499 = vld [vmem:[%s2498] sm:$0xff]
          %v2500 = vld [vmem:[%s2498 + $0x8] sm:$0xff]
          %s2501 = scalar_lea.vmem %s372, 48 [#allocation11]
          %2502 = vst [vmem:[%s2501] sm:$0xff] %v2499
          %2503 = vst [vmem:[%s2501 + $0x8] sm:$0xff] %v2500
          %s2504 = scalar_lea.vmem %s345, 64 [#allocation10]
          %v2505 = vld [vmem:[%s2504] sm:$0xff]
          %v2506 = vld [vmem:[%s2504 + $0x8] sm:$0xff]
          %s2507 = scalar_lea.vmem %s379, 48 [#allocation12]
          %2508 = vst [vmem:[%s2507] sm:$0xff] %v2505
          %2509 = vst [vmem:[%s2507 + $0x8] sm:$0xff] %v2506
          %s2510 = scalar_lea.vmem %s336, 48 [#allocation8]
          %v2511 = vld [vmem:[%s2510] sm:$0xff]
          %v2512 = vld [vmem:[%s2510 + $0x8] sm:$0xff]
          %s2513 = scalar_lea.vmem %s372, 64 [#allocation11]
          %2514 = vst [vmem:[%s2513] sm:$0xff] %v2511
          %2515 = vst [vmem:[%s2513 + $0x8] sm:$0xff] %v2512
          %s2516 = scalar_lea.vmem %s345, 48 [#allocation10]
          %v2517 = vld [vmem:[%s2516] sm:$0xff]
          %v2518 = vld [vmem:[%s2516 + $0x8] sm:$0xff]
          %s2519 = scalar_lea.vmem %s379, 64 [#allocation12]
          %2520 = vst [vmem:[%s2519] sm:$0xff] %v2517
          %2521 = vst [vmem:[%s2519 + $0x8] sm:$0xff] %v2518
          %s2522 = scalar_lea.vmem %s336, 32 [#allocation8]
          %v2523 = vld [vmem:[%s2522] sm:$0xff]
          %v2524 = vld [vmem:[%s2522 + $0x8] sm:$0xff]
          %s2525 = scalar_lea.vmem %s372, 80 [#allocation11]
          %2526 = vst [vmem:[%s2525] sm:$0xff] %v2523
          %2527 = vst [vmem:[%s2525 + $0x8] sm:$0xff] %v2524
          %s2528 = scalar_lea.vmem %s345, 32 [#allocation10]
          %v2529 = vld [vmem:[%s2528] sm:$0xff]
          %v2530 = vld [vmem:[%s2528 + $0x8] sm:$0xff]
          %s2531 = scalar_lea.vmem %s379, 80 [#allocation12]
          %2532 = vst [vmem:[%s2531] sm:$0xff] %v2529
          %2533 = vst [vmem:[%s2531 + $0x8] sm:$0xff] %v2530
          %s2534 = scalar_lea.vmem %s336, 16 [#allocation8]
          %v2535 = vld [vmem:[%s2534] sm:$0xff]
          %v2536 = vld [vmem:[%s2534 + $0x8] sm:$0xff]
          %s2537 = scalar_lea.vmem %s372, 96 [#allocation11]
          %2538 = vst [vmem:[%s2537] sm:$0xff] %v2535
          %2539 = vst [vmem:[%s2537 + $0x8] sm:$0xff] %v2536
          %s2540 = scalar_lea.vmem %s345, 16 [#allocation10]
          %v2541 = vld [vmem:[%s2540] sm:$0xff]
          %v2542 = vld [vmem:[%s2540 + $0x8] sm:$0xff]
          %s2543 = scalar_lea.vmem %s379, 96 [#allocation12]
          %2544 = vst [vmem:[%s2543] sm:$0xff] %v2541
          %2545 = vst [vmem:[%s2543 + $0x8] sm:$0xff] %v2542
          %v2546 = vld [vmem:[%s336] sm:$0xff]
          %v2547 = vld [vmem:[%s336 + $0x8] sm:$0xff]
          %s2548 = scalar_lea.vmem %s372, 112 [#allocation11]
          %2549 = vst [vmem:[%s2548] sm:$0xff] %v2546
          %2550 = vst [vmem:[%s2548 + $0x8] sm:$0xff] %v2547
          %v2551 = vld [vmem:[%s345] sm:$0xff]
          %v2552 = vld [vmem:[%s345 + $0x8] sm:$0xff]
          %s2553 = scalar_lea.vmem %s379, 112 [#allocation12]
          %2554 = vst [vmem:[%s2553] sm:$0xff] %v2551
          %2555 = vst [vmem:[%s2553 + $0x8] sm:$0xff] %v2552
        $region52: #{tpu_custom_call.1} parent=31 // pred_fallthru
          _
        %p2556 = por %p401, %p403
        %p2557 = pneg %p2556
        // Predicated region
        $region53: #{tpu_custom_call.1} parent=31 // pred_check
          _
        $region54: #{tpu_custom_call.1} parent=31 // pred_check_branch
          %2559 = sbr.rel (%p2556) target = $region56
        $region55: #{tpu_custom_call.1} parent=31 // pred_region
          %v2560 = vld [vmem:[%s336] sm:$0xff]
          %v2561 = vld [vmem:[%s336 + $0x8] sm:$0xff]
          %v2562 = vld [vmem:[%s336 + $0x10] sm:$0xff]
          %v2563 = vld [vmem:[%s336 + $0x18] sm:$0xff]
          %v2564 = vld [vmem:[%s336 + $0x20] sm:$0xff]
          %v2565 = vld [vmem:[%s336 + $0x28] sm:$0xff]
          %v2566 = vld [vmem:[%s336 + $0x30] sm:$0xff]
          %v2567 = vld [vmem:[%s336 + $0x38] sm:$0xff]
          %v2568 = vld [vmem:[%s336 + $0x40] sm:$0xff]
          %v2569 = vld [vmem:[%s336 + $0x48] sm:$0xff]
          %v2570 = vld [vmem:[%s336 + $0x50] sm:$0xff]
          %v2571 = vld [vmem:[%s336 + $0x58] sm:$0xff]
          %v2572 = vld [vmem:[%s336 + $0x60] sm:$0xff]
          %v2573 = vld [vmem:[%s336 + $0x68] sm:$0xff]
          %v2574 = vld [vmem:[%s336 + $0x70] sm:$0xff]
          %v2575 = vld [vmem:[%s336 + $0x78] sm:$0xff]
          %2576 = vst [vmem:[%s372] sm:$0xff] %v2560
          %2577 = vst [vmem:[%s372 + $0x8] sm:$0xff] %v2561
          %2578 = vst [vmem:[%s372 + $0x10] sm:$0xff] %v2562
          %2579 = vst [vmem:[%s372 + $0x18] sm:$0xff] %v2563
          %2580 = vst [vmem:[%s372 + $0x20] sm:$0xff] %v2564
          %2581 = vst [vmem:[%s372 + $0x28] sm:$0xff] %v2565
          %2582 = vst [vmem:[%s372 + $0x30] sm:$0xff] %v2566
          %2583 = vst [vmem:[%s372 + $0x38] sm:$0xff] %v2567
          %2584 = vst [vmem:[%s372 + $0x40] sm:$0xff] %v2568
          %2585 = vst [vmem:[%s372 + $0x48] sm:$0xff] %v2569
          %2586 = vst [vmem:[%s372 + $0x50] sm:$0xff] %v2570
          %2587 = vst [vmem:[%s372 + $0x58] sm:$0xff] %v2571
          %2588 = vst [vmem:[%s372 + $0x60] sm:$0xff] %v2572
          %2589 = vst [vmem:[%s372 + $0x68] sm:$0xff] %v2573
          %2590 = vst [vmem:[%s372 + $0x70] sm:$0xff] %v2574
          %2591 = vst [vmem:[%s372 + $0x78] sm:$0xff] %v2575
          %v2592 = vld [vmem:[%s345] sm:$0xff]
          %v2593 = vld [vmem:[%s345 + $0x8] sm:$0xff]
          %v2594 = vld [vmem:[%s345 + $0x10] sm:$0xff]
          %v2595 = vld [vmem:[%s345 + $0x18] sm:$0xff]
          %v2596 = vld [vmem:[%s345 + $0x20] sm:$0xff]
          %v2597 = vld [vmem:[%s345 + $0x28] sm:$0xff]
          %v2598 = vld [vmem:[%s345 + $0x30] sm:$0xff]
          %v2599 = vld [vmem:[%s345 + $0x38] sm:$0xff]
          %v2600 = vld [vmem:[%s345 + $0x40] sm:$0xff]
          %v2601 = vld [vmem:[%s345 + $0x48] sm:$0xff]
          %v2602 = vld [vmem:[%s345 + $0x50] sm:$0xff]
          %v2603 = vld [vmem:[%s345 + $0x58] sm:$0xff]
          %v2604 = vld [vmem:[%s345 + $0x60] sm:$0xff]
          %v2605 = vld [vmem:[%s345 + $0x68] sm:$0xff]
          %v2606 = vld [vmem:[%s345 + $0x70] sm:$0xff]
          %v2607 = vld [vmem:[%s345 + $0x78] sm:$0xff]
          %2608 = vst [vmem:[%s379] sm:$0xff] %v2592
          %2609 = vst [vmem:[%s379 + $0x8] sm:$0xff] %v2593
          %2610 = vst [vmem:[%s379 + $0x10] sm:$0xff] %v2594
          %2611 = vst [vmem:[%s379 + $0x18] sm:$0xff] %v2595
          %2612 = vst [vmem:[%s379 + $0x20] sm:$0xff] %v2596
          %2613 = vst [vmem:[%s379 + $0x28] sm:$0xff] %v2597
          %2614 = vst [vmem:[%s379 + $0x30] sm:$0xff] %v2598
          %2615 = vst [vmem:[%s379 + $0x38] sm:$0xff] %v2599
          %2616 = vst [vmem:[%s379 + $0x40] sm:$0xff] %v2600
          %2617 = vst [vmem:[%s379 + $0x48] sm:$0xff] %v2601
          %2618 = vst [vmem:[%s379 + $0x50] sm:$0xff] %v2602
          %2619 = vst [vmem:[%s379 + $0x58] sm:$0xff] %v2603
          %2620 = vst [vmem:[%s379 + $0x60] sm:$0xff] %v2604
          %2621 = vst [vmem:[%s379 + $0x68] sm:$0xff] %v2605
          %2622 = vst [vmem:[%s379 + $0x70] sm:$0xff] %v2606
          %2623 = vst [vmem:[%s379 + $0x78] sm:$0xff] %v2607
        $region56: #{tpu_custom_call.1} parent=31 // pred_fallthru
          _
        %s2624 = sand.u32 %s180, 1
        %s2625 = scalar_lea.sflag [#allocation7], %s2624
        %s2626 = sand.u32 %s180, 1
        %s2627 = smul.addr %s2626, 128
        %s2628 = scalar_lea.vmem [#allocation11], %s2627
        %s2629 = sand.u32 %s210, 1
        %s2630 = scalar_lea.sflag [#allocation13], %s2629
        %s2631 = sand.u32 %s210, 1
        %s2632 = smul.addr %s2631, 128
        %s2633 = scalar_lea.vmem [#allocation12], %s2632
        // Predicated region
        $region57: #{tpu_custom_call.1} parent=31 // pred_check
          %p2634 = pneg %p190
        $region58: #{tpu_custom_call.1} parent=31 // pred_check_branch
          %2636 = sbr.rel (%p2634) target = $region60
        $region59: #{tpu_custom_call.1} parent=31 // pred_region
          %s2637 = smul.u32 8, %s42
          %s2639 = ssub.s32 2048, 2048
          %2640 = vsyncadd %s2625, %s2639
          %s2641 = smul.addr %s2637, 4
          %s2642 = sadd.s32 %s43, %s2641
          %s2643 = smul.addr %s41, 32
          %s2644 = sadd.s32 %s2642, %s2643
          %s2645 = smul.addr %s2644, 128
          %s2646 = scalar_lea.hbm %s5, %s2645
          %s2647 = sshll.u32 %s2628, 4
          %s2648 = int_to_ptr.vmem [resolvable:$true] %s2647
          %2653 = dma.vmem_to_hbm [thread:$0]  %s2648, 2048, %s2646, %s2625, 128, 256, 8
        $region60: #{tpu_custom_call.1} parent=31 // pred_fallthru
          _
        // Predicated region
        $region61: #{tpu_custom_call.1} parent=31 // pred_check
          %p2654 = pneg %p220
        $region62: #{tpu_custom_call.1} parent=31 // pred_check_branch
          %2656 = sbr.rel (%p2654) target = $region64
        $region63: #{tpu_custom_call.1} parent=31 // pred_region
          %s2657 = smul.u32 8, %s42
          %s2659 = ssub.s32 2048, 2048
          %2660 = vsyncadd %s2630, %s2659
          %s2661 = smul.addr %s2657, 4
          %s2662 = sadd.s32 %s43, %s2661
          %s2663 = smul.addr %s41, 32
          %s2664 = sadd.s32 %s2662, %s2663
          %s2665 = smul.addr %s2664, 128
          %s2666 = scalar_lea.hbm %s6, %s2665
          %s2667 = sshll.u32 %s2633, 4
          %s2668 = int_to_ptr.vmem [resolvable:$true] %s2667
          %2673 = dma.vmem_to_hbm [thread:$0]  %s2668, 2048, %s2666, %s2630, 128, 256, 8
        $region64: #{tpu_custom_call.1} parent=31 // pred_fallthru
          _
      $region32: #{tpu_custom_call.1} parent=5 // pred_fallthru
        _
      %p2674 = scmp.le.s32.totalorder 2, %s31
      // Predicated region
      $region65: #{tpu_custom_call.1} parent=5 // pred_check
        %p2675 = pneg %p2674
      $region66: #{tpu_custom_call.1} parent=5 // pred_check_branch
        %2677 = sbr.rel (%p2675) target = $region68
      $region67: #{tpu_custom_call.1} parent=5 // pred_region
        %s2678 = ssub.s32 %s31, 2
        // Predicated region
        $region69: #{tpu_custom_call.1} parent=67 // pred_check
          %p2679 = pneg %p196
        $region70: #{tpu_custom_call.1} parent=67 // pred_check_branch
          %2681 = sbr.rel (%p2679) target = $region72
        $region71: #{tpu_custom_call.1} parent=67 // pred_region
          %s2682 = sand.u32 %s181, 1
          %s2683 = scalar_lea.sflag [#allocation7], %s2682
          %s2684 = sand.u32 %s181, 1
          %s2685 = smul.addr %s2684, 128
          %s2686 = scalar_lea.vmem [#allocation11], %s2685
          %2687 = dma.done %s2683, 2048
        $region72: #{tpu_custom_call.1} parent=67 // pred_fallthru
          _
        // Predicated region
        $region73: #{tpu_custom_call.1} parent=67 // pred_check
          %p2688 = pneg %p226
        $region74: #{tpu_custom_call.1} parent=67 // pred_check_branch
          %2690 = sbr.rel (%p2688) target = $region76
        $region75: #{tpu_custom_call.1} parent=67 // pred_region
          %s2691 = sand.u32 %s211, 1
          %s2692 = scalar_lea.sflag [#allocation13], %s2691
          %s2693 = sand.u32 %s211, 1
          %s2694 = smul.addr %s2693, 128
          %s2695 = scalar_lea.vmem [#allocation12], %s2694
          %2696 = dma.done %s2692, 2048
        $region76: #{tpu_custom_call.1} parent=67 // pred_fallthru
          _
      $region68: #{tpu_custom_call.1} parent=5 // pred_fallthru
        _
    $region6: #{tpu_custom_call.1} parent=1 // loop_footer
      %s35 = sadd.s32 1, %s31
    $region7: #{tpu_custom_call.1} parent=1 // loop_footer_branch
      %30 = sbr.rel target = $region3
    $region8: #{tpu_custom_call.1} parent=1 // loop_exit
      _
    %2697 = vsyncpa [#allocation6], 1
    %s2698 = scalar_lea.sflag [#allocation6], 1
    %2699 = vsyncpa %s2698, 1
    %2700 = vsyncpa [#allocation9], 1
    %s2701 = scalar_lea.sflag [#allocation9], 1
    %2702 = vsyncpa %s2701, 1
    %2703 = vsyncpa [#allocation7], 1
    %s2704 = scalar_lea.sflag [#allocation7], 1
    %2705 = vsyncpa %s2704, 1
    %2706 = vsyncpa [#allocation13], 1
    %s2707 = scalar_lea.sflag [#allocation13], 1
    %2708 = vsyncpa %s2707, 1

</llo_original>
